<compile_context>
chip_gen: v7x
topology: tpu7x:2x2x1
jax: 0.10.0
libtpu: 0.0.40
codegen_flags: <defaults>
</compile_context>

<pallas_src>
import functools

import jax
import jax.numpy as jnp
from jax.experimental import pallas as pl
from jax.experimental.pallas import tpu as pltpu

LANE = 128


def _round_up(x, m):
    return ((x + m - 1) // m) * m


# ---------------------------------------------------------------------------
# Fused Pallas kernel: conv stem (9 shifted matmuls) + ReLU + GAP + head
# ---------------------------------------------------------------------------
def fused_backbone_kernel(x_ref, wconv_ref, bconv_ref, pool_ref, wfc_ref,
                          bfc_ref, o_ref, *, cin, np_rows, tap_offsets):
    """One image per grid step.

    x_ref    : [Next, C]       f32   flattened zero-padded image (+halo rows)
    wconv_ref: [9, C, H_PAD]   bf16  per-tap conv weights
    bconv_ref: [1, H_PAD]      f32
    pool_ref : [1, Np]         f32   1/(H*W) on interior rows, 0 on borders
    wfc_ref  : [H_PAD, NC_PAD] bf16
    bfc_ref  : [1, NC_PAD]     f32
    o_ref    : [1, NC_PAD]     f32
    """
    del cin  # implicit in the ref shapes

    # 3x3 "same" conv as 9 accumulated MXU matmuls over shifted row windows
    # of the flattened padded image (static sublane-offset slices of the ref).
    acc = None
    for t, off in enumerate(tap_offsets):
        xs = x_ref[pl.ds(off, np_rows), :].astype(jnp.bfloat16)     # [Np, C]
        contrib = jnp.dot(xs, wconv_ref[t],
                          preferred_element_type=jnp.float32)       # [Np, H_PAD]
        acc = contrib if acc is None else acc + contrib

    feat = jnp.maximum(acc + bconv_ref[...], 0.0)                    # f32

    # Global average pool as a single MXU matmul; pool_vec already carries the
    # 1/HW scale and zeros out the padded-border rows of the padded grid.
    pooled = jnp.dot(pool_ref[...], feat,
                     preferred_element_type=jnp.float32)             # [1, H_PAD]

    logits = jnp.dot(pooled.astype(jnp.bfloat16), wfc_ref[...],
                     preferred_element_type=jnp.float32) + bfc_ref[...]
    o_ref[...] = logits


# ---------------------------------------------------------------------------
# Wrapper (JAX glue: layout conversion, spatial halo pad, lane padding)
# ---------------------------------------------------------------------------
@jax.jit
def basic_model_forward(x_nchw, params):
    w_conv, b_conv, w_fc, b_fc = params
    B, C_in, H, W = x_nchw.shape
    K, hidden = w_conv.shape                     # K = 9 * C_in
    num_classes = w_fc.shape[1]

    Hp, Wp = H + 2, W + 2                        # spatially padded grid
    Np = Hp * Wp                                 # flattened padded rows
    EXT = Wp + 1                                 # halo so every tap slice is in-bounds
    Next = Np + 2 * EXT

    H_PAD = _round_up(hidden, LANE)              # 128 (do NOT pad to 256)
    NC_PAD = _round_up(num_classes, LANE)        # 128

    # NCHW -> NHWC, zero-pad spatially (+1), flatten, add zero halo rows.
    # This is the only activation buffer the kernel reads: ~(H+2)(W+2)*C per
    # image instead of HW*9C (im2col) or HW*128 (K-padded im2col).
    x_nhwc = jnp.transpose(x_nchw, (0, 2, 3, 1))
    xp = jnp.pad(x_nhwc, ((0, 0), (1, 1), (1, 1), (0, 0)))
    x_ext = jnp.pad(xp.reshape(B, Np, C_in),
                    ((0, 0), (EXT, EXT), (0, 0))).astype(jnp.float32)

    # Conv weight: [9C, hidden] -> lane-padded, per-tap [9, C, H_PAD] bf16.
    wc = jnp.pad(w_conv, ((0, 0), (0, H_PAD - hidden))).astype(jnp.bfloat16)
    wc = wc.reshape(9, C_in, H_PAD)
    bc = jnp.pad(b_conv, (0, H_PAD - hidden)).reshape(1, H_PAD).astype(jnp.float32)
    wf = jnp.pad(w_fc, ((0, H_PAD - hidden),
                        (0, NC_PAD - num_classes))).astype(jnp.bfloat16)
    bf_ = jnp.pad(b_fc, (0, NC_PAD - num_classes)).reshape(1, NC_PAD).astype(jnp.float32)

    # Pooling vector over the padded grid: 1/(H*W) on interior rows, 0 on the
    # border rows (whose conv values are junk by construction).
    rows = jnp.arange(Np)
    hp, wp = rows // Wp, rows % Wp
    interior = (hp >= 1) & (hp <= H) & (wp >= 1) & (wp <= W)
    pool_vec = jnp.where(interior, 1.0 / (H * W), 0.0).reshape(1, Np).astype(jnp.float32)

    # Static row offsets of the 9 taps in the flattened padded image.
    tap_offsets = tuple(EXT + (i - 1) * Wp + (j - 1)
                        for i in range(3) for j in range(3))

    kernel = functools.partial(fused_backbone_kernel, cin=C_in,
                               np_rows=Np, tap_offsets=tap_offsets)

    logits_pad = pl.pallas_call(
        kernel,
        out_shape=jax.ShapeDtypeStruct((B, 1, NC_PAD), jnp.float32),
        grid_spec=pltpu.PrefetchScalarGridSpec(
            num_scalar_prefetch=0,
            grid=(B,),
            in_specs=[
                # last-two block dims equal the full array dims -> legal tiles
                pl.BlockSpec((None, Next, C_in), lambda b: (b, 0, 0)),
                pl.BlockSpec((9, C_in, H_PAD), lambda b: (0, 0, 0)),
                pl.BlockSpec((1, H_PAD), lambda b: (0, 0)),
                pl.BlockSpec((1, Np), lambda b: (0, 0)),
                pl.BlockSpec((H_PAD, NC_PAD), lambda b: (0, 0)),
                pl.BlockSpec((1, NC_PAD), lambda b: (0, 0)),
            ],
            out_specs=pl.BlockSpec((None, 1, NC_PAD), lambda b: (b, 0, 0)),
        ),
        compiler_params=pltpu.CompilerParams(
            dimension_semantics=("parallel",)),
    )(x_ext, wc, bc, pool_vec, wf, bf_)

    return logits_pad[:, 0, :num_classes]


# ---------------------------------------------------------------------------
# Pure-JAX reference (same bf16-operand / f32-accumulate math)
# ---------------------------------------------------------------------------
def im2col_3x3_same(x_nhwc):
    B, H, W, C = x_nhwc.shape
    xp = jnp.pad(x_nhwc, ((0, 0), (1, 1), (1, 1), (0, 0)))
    taps = [xp[:, i:i + H, j:j + W, :] for i in range(3) for j in range(3)]
    cols = jnp.stack(taps, axis=3)                              # [B,H,W,9,C]
    return cols.reshape(B, H * W, 9 * C)


def reference_forward(x_nchw, params):
    w_conv, b_conv, w_fc, b_fc = params
    x_nhwc = jnp.transpose(x_nchw, (0, 2, 3, 1))
    cols = im2col_3x3_same(x_nhwc)                              # [B, HW, 9C]
    feat = jnp.einsum("bmk,kh->bmh",
                      cols.astype(jnp.bfloat16), w_conv.astype(jnp.bfloat16),
                      preferred_element_type=jnp.float32) + b_conv
    feat = jnp.maximum(feat, 0.0)
    pooled = feat.mean(axis=1)                                  # [B, hidden]
    return jnp.dot(pooled.astype(jnp.bfloat16), w_fc.astype(jnp.bfloat16),
                   preferred_element_type=jnp.float32) + b_fc


# ---------------------------------------------------------------------------
# Main
# ---------------------------------------------------------------------------
if __name__ == "__main__":
    # ModelConfig analog: in_channels=4, out_channels(num_classes)=8, hidden=32
    B, C_in, H, W = 2, 4, 16, 16
    hidden, num_classes = 32, 8

    key = jax.random.PRNGKey(0)
    kx, kw1, kb1, kw2, kb2 = jax.random.split(key, 5)

    x = jax.random.normal(kx, (B, C_in, H, W), dtype=jnp.float32)
    w_conv = jax.random.normal(kw1, (9 * C_in, hidden), dtype=jnp.float32) * 0.05
    b_conv = jax.random.normal(kb1, (hidden,), dtype=jnp.float32) * 0.01
    w_fc = jax.random.normal(kw2, (hidden, num_classes), dtype=jnp.float32) * 0.05
    b_fc = jax.random.normal(kb2, (num_classes,), dtype=jnp.float32) * 0.01
    params = (w_conv, b_conv, w_fc, b_fc)

    out = jax.block_until_ready(basic_model_forward(x, params))
    ref = reference_forward(x, params)

    assert out.shape == (B, num_classes)
    assert jnp.allclose(out, ref, atol=2e-3, rtol=2e-3), (out, ref)

    print("KERNEL_OK")
</pallas_src>

<mosaic_0001>
module attributes {stable_mosaic.version = 11 : i64} {
  func.func @fused_backbone_kernel(%arg0: i32, %arg1: memref<1x362x4xf32, #tpu.memory_space<vmem>>, %arg2: memref<9x4x128xbf16, #tpu.memory_space<vmem>>, %arg3: memref<1x128xf32, #tpu.memory_space<vmem>>, %arg4: memref<1x324xf32, #tpu.memory_space<vmem>>, %arg5: memref<128x128xbf16, #tpu.memory_space<vmem>>, %arg6: memref<1x128xf32, #tpu.memory_space<vmem>>, %arg7: memref<1x1x128xf32, #tpu.memory_space<vmem>>) attributes {dimension_semantics = [#tpu.dimension_semantics<parallel>], iteration_bounds = array<i64: 2>, scalar_prefetch = 0 : i64, scratch_operands = 0 : i64, tpu.core_type = #tpu.core_type<tc>, window_params = [{transform_indices = @transform_0, window_bounds = array<i64: 1, 362, 4>}, {pipeline_mode = #tpu.pipeline_mode<synchronous>, transform_indices = @transform_1, window_bounds = array<i64: 9, 4, 128>}, {pipeline_mode = #tpu.pipeline_mode<synchronous>, transform_indices = @transform_2, window_bounds = array<i64: 1, 128>}, {pipeline_mode = #tpu.pipeline_mode<synchronous>, transform_indices = @transform_3, window_bounds = array<i64: 1, 324>}, {pipeline_mode = #tpu.pipeline_mode<synchronous>, transform_indices = @transform_4, window_bounds = array<i64: 128, 128>}, {pipeline_mode = #tpu.pipeline_mode<synchronous>, transform_indices = @transform_5, window_bounds = array<i64: 1, 128>}, {transform_indices = @transform_6, window_bounds = array<i64: 1, 1, 128>}]} {
    %c0 = arith.constant 0 : index
    %c0_0 = arith.constant 0 : index
    %c0_1 = arith.constant 0 : index
    %0 = vector.load %arg1[%c0, %c0_0, %c0_1] : memref<1x362x4xf32, #tpu.memory_space<vmem>>, vector<1x324x4xf32>
    %1 = vector.shape_cast %0 : vector<1x324x4xf32> to vector<324x4xf32>
    %2 = arith.truncf %1 : vector<324x4xf32> to vector<324x4xbf16>
    %c0_2 = arith.constant 0 : index
    %c0_3 = arith.constant 0 : index
    %c0_4 = arith.constant 0 : index
    %3 = vector.load %arg2[%c0_2, %c0_3, %c0_4] : memref<9x4x128xbf16, #tpu.memory_space<vmem>>, vector<1x4x128xbf16>
    %4 = vector.shape_cast %3 : vector<1x4x128xbf16> to vector<4x128xbf16>
    %cst = arith.constant dense<0.000000e+00> : vector<324x128xf32>
    %5 = tpu.matmul %2, %4, %cst {dimension_numbers = #tpu.dot_dimension_numbers<[1], [0], [0], [1], [0, 0, 1, 1], [], []>} : vector<324x4xbf16>, vector<4x128xbf16>, vector<324x128xf32> -> vector<324x128xf32>
    %c0_5 = arith.constant 0 : index
    %c1 = arith.constant 1 : index
    %c0_6 = arith.constant 0 : index
    %6 = vector.load %arg1[%c0_5, %c1, %c0_6] : memref<1x362x4xf32, #tpu.memory_space<vmem>>, vector<1x324x4xf32>
    %7 = vector.shape_cast %6 : vector<1x324x4xf32> to vector<324x4xf32>
    %8 = arith.truncf %7 : vector<324x4xf32> to vector<324x4xbf16>
    %c1_7 = arith.constant 1 : index
    %c0_8 = arith.constant 0 : index
    %c0_9 = arith.constant 0 : index
    %9 = vector.load %arg2[%c1_7, %c0_8, %c0_9] : memref<9x4x128xbf16, #tpu.memory_space<vmem>>, vector<1x4x128xbf16>
    %10 = vector.shape_cast %9 : vector<1x4x128xbf16> to vector<4x128xbf16>
    %cst_10 = arith.constant dense<0.000000e+00> : vector<324x128xf32>
    %11 = tpu.matmul %8, %10, %cst_10 {dimension_numbers = #tpu.dot_dimension_numbers<[1], [0], [0], [1], [0, 0, 1, 1], [], []>} : vector<324x4xbf16>, vector<4x128xbf16>, vector<324x128xf32> -> vector<324x128xf32>
    %12 = arith.addf %5, %11 : vector<324x128xf32>
    %c0_11 = arith.constant 0 : index
    %c2 = arith.constant 2 : index
    %c0_12 = arith.constant 0 : index
    %13 = vector.load %arg1[%c0_11, %c2, %c0_12] : memref<1x362x4xf32, #tpu.memory_space<vmem>>, vector<1x324x4xf32>
    %14 = vector.shape_cast %13 : vector<1x324x4xf32> to vector<324x4xf32>
    %15 = arith.truncf %14 : vector<324x4xf32> to vector<324x4xbf16>
    %c2_13 = arith.constant 2 : index
    %c0_14 = arith.constant 0 : index
    %c0_15 = arith.constant 0 : index
    %16 = vector.load %arg2[%c2_13, %c0_14, %c0_15] : memref<9x4x128xbf16, #tpu.memory_space<vmem>>, vector<1x4x128xbf16>
    %17 = vector.shape_cast %16 : vector<1x4x128xbf16> to vector<4x128xbf16>
    %cst_16 = arith.constant dense<0.000000e+00> : vector<324x128xf32>
    %18 = tpu.matmul %15, %17, %cst_16 {dimension_numbers = #tpu.dot_dimension_numbers<[1], [0], [0], [1], [0, 0, 1, 1], [], []>} : vector<324x4xbf16>, vector<4x128xbf16>, vector<324x128xf32> -> vector<324x128xf32>
    %19 = arith.addf %12, %18 : vector<324x128xf32>
    %c0_17 = arith.constant 0 : index
    %c18 = arith.constant 18 : index
    %c0_18 = arith.constant 0 : index
    %20 = vector.load %arg1[%c0_17, %c18, %c0_18] : memref<1x362x4xf32, #tpu.memory_space<vmem>>, vector<1x324x4xf32>
    %21 = vector.shape_cast %20 : vector<1x324x4xf32> to vector<324x4xf32>
    %22 = arith.truncf %21 : vector<324x4xf32> to vector<324x4xbf16>
    %c3 = arith.constant 3 : index
    %c0_19 = arith.constant 0 : index
    %c0_20 = arith.constant 0 : index
    %23 = vector.load %arg2[%c3, %c0_19, %c0_20] : memref<9x4x128xbf16, #tpu.memory_space<vmem>>, vector<1x4x128xbf16>
    %24 = vector.shape_cast %23 : vector<1x4x128xbf16> to vector<4x128xbf16>
    %cst_21 = arith.constant dense<0.000000e+00> : vector<324x128xf32>
    %25 = tpu.matmul %22, %24, %cst_21 {dimension_numbers = #tpu.dot_dimension_numbers<[1], [0], [0], [1], [0, 0, 1, 1], [], []>} : vector<324x4xbf16>, vector<4x128xbf16>, vector<324x128xf32> -> vector<324x128xf32>
    %26 = arith.addf %19, %25 : vector<324x128xf32>
    %c0_22 = arith.constant 0 : index
    %c19 = arith.constant 19 : index
    %c0_23 = arith.constant 0 : index
    %27 = vector.load %arg1[%c0_22, %c19, %c0_23] : memref<1x362x4xf32, #tpu.memory_space<vmem>>, vector<1x324x4xf32>
    %28 = vector.shape_cast %27 : vector<1x324x4xf32> to vector<324x4xf32>
    %29 = arith.truncf %28 : vector<324x4xf32> to vector<324x4xbf16>
    %c4 = arith.constant 4 : index
    %c0_24 = arith.constant 0 : index
    %c0_25 = arith.constant 0 : index
    %30 = vector.load %arg2[%c4, %c0_24, %c0_25] : memref<9x4x128xbf16, #tpu.memory_space<vmem>>, vector<1x4x128xbf16>
    %31 = vector.shape_cast %30 : vector<1x4x128xbf16> to vector<4x128xbf16>
    %cst_26 = arith.constant dense<0.000000e+00> : vector<324x128xf32>
    %32 = tpu.matmul %29, %31, %cst_26 {dimension_numbers = #tpu.dot_dimension_numbers<[1], [0], [0], [1], [0, 0, 1, 1], [], []>} : vector<324x4xbf16>, vector<4x128xbf16>, vector<324x128xf32> -> vector<324x128xf32>
    %33 = arith.addf %26, %32 : vector<324x128xf32>
    %c0_27 = arith.constant 0 : index
    %c20 = arith.constant 20 : index
    %c0_28 = arith.constant 0 : index
    %34 = vector.load %arg1[%c0_27, %c20, %c0_28] : memref<1x362x4xf32, #tpu.memory_space<vmem>>, vector<1x324x4xf32>
    %35 = vector.shape_cast %34 : vector<1x324x4xf32> to vector<324x4xf32>
    %36 = arith.truncf %35 : vector<324x4xf32> to vector<324x4xbf16>
    %c5 = arith.constant 5 : index
    %c0_29 = arith.constant 0 : index
    %c0_30 = arith.constant 0 : index
    %37 = vector.load %arg2[%c5, %c0_29, %c0_30] : memref<9x4x128xbf16, #tpu.memory_space<vmem>>, vector<1x4x128xbf16>
    %38 = vector.shape_cast %37 : vector<1x4x128xbf16> to vector<4x128xbf16>
    %cst_31 = arith.constant dense<0.000000e+00> : vector<324x128xf32>
    %39 = tpu.matmul %36, %38, %cst_31 {dimension_numbers = #tpu.dot_dimension_numbers<[1], [0], [0], [1], [0, 0, 1, 1], [], []>} : vector<324x4xbf16>, vector<4x128xbf16>, vector<324x128xf32> -> vector<324x128xf32>
    %40 = arith.addf %33, %39 : vector<324x128xf32>
    %c0_32 = arith.constant 0 : index
    %c36 = arith.constant 36 : index
    %c0_33 = arith.constant 0 : index
    %41 = vector.load %arg1[%c0_32, %c36, %c0_33] : memref<1x362x4xf32, #tpu.memory_space<vmem>>, vector<1x324x4xf32>
    %42 = vector.shape_cast %41 : vector<1x324x4xf32> to vector<324x4xf32>
    %43 = arith.truncf %42 : vector<324x4xf32> to vector<324x4xbf16>
    %c6 = arith.constant 6 : index
    %c0_34 = arith.constant 0 : index
    %c0_35 = arith.constant 0 : index
    %44 = vector.load %arg2[%c6, %c0_34, %c0_35] : memref<9x4x128xbf16, #tpu.memory_space<vmem>>, vector<1x4x128xbf16>
    %45 = vector.shape_cast %44 : vector<1x4x128xbf16> to vector<4x128xbf16>
    %cst_36 = arith.constant dense<0.000000e+00> : vector<324x128xf32>
    %46 = tpu.matmul %43, %45, %cst_36 {dimension_numbers = #tpu.dot_dimension_numbers<[1], [0], [0], [1], [0, 0, 1, 1], [], []>} : vector<324x4xbf16>, vector<4x128xbf16>, vector<324x128xf32> -> vector<324x128xf32>
    %47 = arith.addf %40, %46 : vector<324x128xf32>
    %c0_37 = arith.constant 0 : index
    %c37 = arith.constant 37 : index
    %c0_38 = arith.constant 0 : index
    %48 = vector.load %arg1[%c0_37, %c37, %c0_38] : memref<1x362x4xf32, #tpu.memory_space<vmem>>, vector<1x324x4xf32>
    %49 = vector.shape_cast %48 : vector<1x324x4xf32> to vector<324x4xf32>
    %50 = arith.truncf %49 : vector<324x4xf32> to vector<324x4xbf16>
    %c7 = arith.constant 7 : index
    %c0_39 = arith.constant 0 : index
    %c0_40 = arith.constant 0 : index
    %51 = vector.load %arg2[%c7, %c0_39, %c0_40] : memref<9x4x128xbf16, #tpu.memory_space<vmem>>, vector<1x4x128xbf16>
    %52 = vector.shape_cast %51 : vector<1x4x128xbf16> to vector<4x128xbf16>
    %cst_41 = arith.constant dense<0.000000e+00> : vector<324x128xf32>
    %53 = tpu.matmul %50, %52, %cst_41 {dimension_numbers = #tpu.dot_dimension_numbers<[1], [0], [0], [1], [0, 0, 1, 1], [], []>} : vector<324x4xbf16>, vector<4x128xbf16>, vector<324x128xf32> -> vector<324x128xf32>
    %54 = arith.addf %47, %53 : vector<324x128xf32>
    %c0_42 = arith.constant 0 : index
    %c38 = arith.constant 38 : index
    %c0_43 = arith.constant 0 : index
    %55 = vector.load %arg1[%c0_42, %c38, %c0_43] : memref<1x362x4xf32, #tpu.memory_space<vmem>>, vector<1x324x4xf32>
    %56 = vector.shape_cast %55 : vector<1x324x4xf32> to vector<324x4xf32>
    %57 = arith.truncf %56 : vector<324x4xf32> to vector<324x4xbf16>
    %c8 = arith.constant 8 : index
    %c0_44 = arith.constant 0 : index
    %c0_45 = arith.constant 0 : index
    %58 = vector.load %arg2[%c8, %c0_44, %c0_45] : memref<9x4x128xbf16, #tpu.memory_space<vmem>>, vector<1x4x128xbf16>
    %59 = vector.shape_cast %58 : vector<1x4x128xbf16> to vector<4x128xbf16>
    %cst_46 = arith.constant dense<0.000000e+00> : vector<324x128xf32>
    %60 = tpu.matmul %57, %59, %cst_46 {dimension_numbers = #tpu.dot_dimension_numbers<[1], [0], [0], [1], [0, 0, 1, 1], [], []>} : vector<324x4xbf16>, vector<4x128xbf16>, vector<324x128xf32> -> vector<324x128xf32>
    %61 = arith.addf %54, %60 : vector<324x128xf32>
    %c0_47 = arith.constant 0 : index
    %c0_48 = arith.constant 0 : index
    %62 = vector.load %arg3[%c0_47, %c0_48] : memref<1x128xf32, #tpu.memory_space<vmem>>, vector<1x128xf32>
    %63 = vector.broadcast %62 : vector<1x128xf32> to vector<324x128xf32>
    %64 = arith.addf %61, %63 : vector<324x128xf32>
    %cst_49 = arith.constant 0.000000e+00 : f32
    %65 = vector.broadcast %cst_49 : f32 to vector<324x128xf32>
    %66 = arith.maximumf %64, %65 : vector<324x128xf32>
    %c0_50 = arith.constant 0 : index
    %c0_51 = arith.constant 0 : index
    %67 = vector.load %arg4[%c0_50, %c0_51] : memref<1x324xf32, #tpu.memory_space<vmem>>, vector<1x324xf32>
    %cst_52 = arith.constant dense<0.000000e+00> : vector<1x128xf32>
    %68 = tpu.matmul %67, %66, %cst_52 {dimension_numbers = #tpu.dot_dimension_numbers<[1], [0], [0], [1], [0, 0, 1, 1], [], []>} : vector<1x324xf32>, vector<324x128xf32>, vector<1x128xf32> -> vector<1x128xf32>
    %69 = arith.truncf %68 : vector<1x128xf32> to vector<1x128xbf16>
    %c0_53 = arith.constant 0 : index
    %c0_54 = arith.constant 0 : index
    %70 = vector.load %arg5[%c0_53, %c0_54] : memref<128x128xbf16, #tpu.memory_space<vmem>>, vector<128x128xbf16>
    %cst_55 = arith.constant dense<0.000000e+00> : vector<1x128xf32>
    %71 = tpu.matmul %69, %70, %cst_55 {dimension_numbers = #tpu.dot_dimension_numbers<[1], [0], [0], [1], [0, 0, 1, 1], [], []>} : vector<1x128xbf16>, vector<128x128xbf16>, vector<1x128xf32> -> vector<1x128xf32>
    %c0_56 = arith.constant 0 : index
    %c0_57 = arith.constant 0 : index
    %72 = vector.load %arg6[%c0_56, %c0_57] : memref<1x128xf32, #tpu.memory_space<vmem>>, vector<1x128xf32>
    %73 = arith.addf %71, %72 : vector<1x128xf32>
    %c0_58 = arith.constant 0 : index
    %c0_59 = arith.constant 0 : index
    %c0_60 = arith.constant 0 : index
    %74 = vector.load %arg7[%c0_58, %c0_59, %c0_60] : memref<1x1x128xf32, #tpu.memory_space<vmem>>, vector<1x1x128xf32>
    %75 = vector.shape_cast %74 : vector<1x1x128xf32> to vector<1x128xf32>
    %76 = vector.shape_cast %73 : vector<1x128xf32> to vector<1x1x128xf32>
    tpu.vector_store %arg7[%c0_58, %c0_59, %c0_60], %76 {strides = array<i32>} : memref<1x1x128xf32, #tpu.memory_space<vmem>>, vector<1x1x128xf32>,
    return
  }
  func.func @transform_0(%arg0: i32) -> (i32, i32, i32) {
    %c0_i32 = arith.constant 0 : i32
    %c0_i32_0 = arith.constant 0 : i32
    %c0_i32_1 = arith.constant 0 : i32
    return %arg0, %c0_i32, %c0_i32_0 : i32, i32, i32
  }
  func.func @transform_1(%arg0: i32) -> (i32, i32, i32) {
    %c0_i32 = arith.constant 0 : i32
    %c0_i32_0 = arith.constant 0 : i32
    %c0_i32_1 = arith.constant 0 : i32
    %c0_i32_2 = arith.constant 0 : i32
    return %c0_i32, %c0_i32_0, %c0_i32_1 : i32, i32, i32
  }
  func.func @transform_2(%arg0: i32) -> (i32, i32) {
    %c0_i32 = arith.constant 0 : i32
    %c0_i32_0 = arith.constant 0 : i32
    %c0_i32_1 = arith.constant 0 : i32
    return %c0_i32, %c0_i32_0 : i32, i32
  }
  func.func @transform_3(%arg0: i32) -> (i32, i32) {
    %c0_i32 = arith.constant 0 : i32
    %c0_i32_0 = arith.constant 0 : i32
    %c0_i32_1 = arith.constant 0 : i32
    return %c0_i32, %c0_i32_0 : i32, i32
  }
  func.func @transform_4(%arg0: i32) -> (i32, i32) {
    %c0_i32 = arith.constant 0 : i32
    %c0_i32_0 = arith.constant 0 : i32
    %c0_i32_1 = arith.constant 0 : i32
    return %c0_i32, %c0_i32_0 : i32, i32
  }
  func.func @transform_5(%arg0: i32) -> (i32, i32) {
    %c0_i32 = arith.constant 0 : i32
    %c0_i32_0 = arith.constant 0 : i32
    %c0_i32_1 = arith.constant 0 : i32
    return %c0_i32, %c0_i32_0 : i32, i32
  }
  func.func @transform_6(%arg0: i32) -> (i32, i32, i32) {
    %c0_i32 = arith.constant 0 : i32
    %c0_i32_0 = arith.constant 0 : i32
    %c0_i32_1 = arith.constant 0 : i32
    return %arg0, %c0_i32, %c0_i32_0 : i32, i32, i32
  }
}

</mosaic_0001>

<llo_original>
// kernel: basic_model_forward.1
$region0: #{basic_model_forward.1}
  #allocation0 [shape = 'u32[]', space=smem, size = 0x4, offset = 0x4, fixed_abs, tag = 'smem constant byte address 0x4 - core index']
  #allocation1 [shape = 'u32[144,128]{1,0:T(1,128)}', space=vmem, size = 0x12000, scoped, tag = 'internal scratch']
  %s0 = inlined_call_operand.vmem [shape: f32[2,362,4], index: 0, kind: input, shape index: {}]
  %s1 = inlined_call_operand.vmem [shape: bf16[9,4,128], index: 1, kind: input, shape index: {}]
  %s2 = inlined_call_operand.vmem [shape: f32[1,128], index: 2, kind: input, shape index: {}]
  %s3 = inlined_call_operand.vmem [shape: f32[1,324], index: 3, kind: input, shape index: {}]
  %s4 = inlined_call_operand.vmem [shape: bf16[128,128], index: 4, kind: input, shape index: {}]
  %s5 = inlined_call_operand.vmem [shape: f32[1,128], index: 5, kind: input, shape index: {}]
  %s6 = inlined_call_operand.hbm [shape: f32[2,1,128], index: 6, kind: output, shape index: {}]
  %s7 = sld [smem:[#allocation0]]
  $region57: #{basic_model_forward.1} parent=0
    _
  %s9 = ssub.s32 1, %s7
  %s10 = scalar_select 0, %s9, %s7
  $region1: #{basic_model_forward.1} parent=0
    #allocation2 [shape = 'u8[1024]{0}', space=vmem, size = 0x400, scoped, tag = 'output window, operand 0']
    #allocation3 [shape = 's32[2]{0}', space=sflag, size = 0x8, scoped, tag = 'scoped memory for basic_model_forward.1']
    %11 = vsyncpa [#allocation3], 0
    %s12 = scalar_lea.sflag [#allocation3], 1
    %13 = vsyncpa %s12, 0
    loop: start=0, step=1, limit=4
    $region2: #{basic_model_forward.1} parent=1 // loop_pre_header
      _
    $region3: #{basic_model_forward.1} parent=1 // loop_header
      %s15 = sphi 0, %s19
      %p16 = scmp.ge.s32.totalorder %s15, 4
      %s25 = sphi 0, %s27
      %s28 = sphi 0, %s25
      %s29 = sphi 0, %s28
      %s45 = sphi 0, %s29
      %s49 = sphi 0, %s49
      %s51 = sphi 0, %s49
      %s52 = sphi 0, %s51
      %s66 = sphi 0, %s52
      %s70 = sphi 0, %s70
      %s72 = sphi 0, %s70
      %s73 = sphi 0, %s72
      %s87 = sphi 0, %s73
      %s91 = sphi 0, %s91
      %s93 = sphi 0, %s91
      %s94 = sphi 0, %s93
      %s108 = sphi 0, %s94
      %s112 = sphi 0, %s112
      %s114 = sphi 0, %s112
      %s115 = sphi 0, %s114
      %s129 = sphi 0, %s115
      %s133 = sphi 0, %s133
      %s135 = sphi 0, %s133
      %s136 = sphi 0, %s135
      %s150 = sphi 0, %s136
      %s156 = sphi 0, %s158
      %s159 = sphi 0, %s156
      %s160 = sphi 0, %s159
      %s176 = sphi 0, %s160
    $region4: #{basic_model_forward.1} parent=1 // loop_header_branch
      %18 = sbr.rel (%p16) target = $region8
    $region5: #{basic_model_forward.1} parent=1 // loop_body
      %s20 = ssub.s32 %s15, 1
      %s21 = ssub.s32 %s15, 2
      %s22 = sadd.s32 %s15, 1
      %s23 = ssub.s32 %s15, %s22
      %p24 = scmp.eq.s32.totalorder %s23, 0
      %s26 = sadd.s32 %s25, 1
      %s27 = scalar_select %p24, %s25, %s26
      %p30 = pneg %p24
      %p31 = scmp.eq.s32.totalorder %s15, 1
      %p32 = por %p30, %p31
      %p33 = scmp.ne.s32.totalorder %s25, %s28
      %p34 = scmp.eq.s32.totalorder %s15, 0
      %p35 = por %p33, %p34
      %p36 = scmp.ne.s32.totalorder %s25, %s28
      %p37 = scmp.eq.s32.totalorder %s20, 1
      %p38 = por %p36, %p37
      %p39 = scmp.ne.s32.totalorder %s28, %s29
      %p40 = scmp.eq.s32.totalorder %s20, 0
      %p41 = por %p39, %p40
      %p42 = scmp.ne.s32.totalorder %s28, %s29
      %p43 = scmp.eq.s32.totalorder %s21, 1
      %p44 = por %p42, %p43
      %p46 = scmp.ne.s32.totalorder %s29, %s45
      %p47 = scmp.eq.s32.totalorder %s21, 0
      %p48 = por %p46, %p47
      %s50 = sadd.s32 %s49, 1
      %p53 = scmp.eq.s32.totalorder %s15, 1
      %p54 = scmp.ne.s32.totalorder %s49, %s51
      %p55 = scmp.eq.s32.totalorder %s15, 0
      %p56 = por %p54, %p55
      %p57 = scmp.ne.s32.totalorder %s49, %s51
      %p58 = scmp.eq.s32.totalorder %s20, 1
      %p59 = por %p57, %p58
      %p60 = scmp.ne.s32.totalorder %s51, %s52
      %p61 = scmp.eq.s32.totalorder %s20, 0
      %p62 = por %p60, %p61
      %p63 = scmp.ne.s32.totalorder %s51, %s52
      %p64 = scmp.eq.s32.totalorder %s21, 1
      %p65 = por %p63, %p64
      %p67 = scmp.ne.s32.totalorder %s52, %s66
      %p68 = scmp.eq.s32.totalorder %s21, 0
      %p69 = por %p67, %p68
      %s71 = sadd.s32 %s70, 1
      %p74 = scmp.eq.s32.totalorder %s15, 1
      %p75 = scmp.ne.s32.totalorder %s70, %s72
      %p76 = scmp.eq.s32.totalorder %s15, 0
      %p77 = por %p75, %p76
      %p78 = scmp.ne.s32.totalorder %s70, %s72
      %p79 = scmp.eq.s32.totalorder %s20, 1
      %p80 = por %p78, %p79
      %p81 = scmp.ne.s32.totalorder %s72, %s73
      %p82 = scmp.eq.s32.totalorder %s20, 0
      %p83 = por %p81, %p82
      %p84 = scmp.ne.s32.totalorder %s72, %s73
      %p85 = scmp.eq.s32.totalorder %s21, 1
      %p86 = por %p84, %p85
      %p88 = scmp.ne.s32.totalorder %s73, %s87
      %p89 = scmp.eq.s32.totalorder %s21, 0
      %p90 = por %p88, %p89
      %s92 = sadd.s32 %s91, 1
      %p95 = scmp.eq.s32.totalorder %s15, 1
      %p96 = scmp.ne.s32.totalorder %s91, %s93
      %p97 = scmp.eq.s32.totalorder %s15, 0
      %p98 = por %p96, %p97
      %p99 = scmp.ne.s32.totalorder %s91, %s93
      %p100 = scmp.eq.s32.totalorder %s20, 1
      %p101 = por %p99, %p100
      %p102 = scmp.ne.s32.totalorder %s93, %s94
      %p103 = scmp.eq.s32.totalorder %s20, 0
      %p104 = por %p102, %p103
      %p105 = scmp.ne.s32.totalorder %s93, %s94
      %p106 = scmp.eq.s32.totalorder %s21, 1
      %p107 = por %p105, %p106
      %p109 = scmp.ne.s32.totalorder %s94, %s108
      %p110 = scmp.eq.s32.totalorder %s21, 0
      %p111 = por %p109, %p110
      %s113 = sadd.s32 %s112, 1
      %p116 = scmp.eq.s32.totalorder %s15, 1
      %p117 = scmp.ne.s32.totalorder %s112, %s114
      %p118 = scmp.eq.s32.totalorder %s15, 0
      %p119 = por %p117, %p118
      %p120 = scmp.ne.s32.totalorder %s112, %s114
      %p121 = scmp.eq.s32.totalorder %s20, 1
      %p122 = por %p120, %p121
      %p123 = scmp.ne.s32.totalorder %s114, %s115
      %p124 = scmp.eq.s32.totalorder %s20, 0
      %p125 = por %p123, %p124
      %p126 = scmp.ne.s32.totalorder %s114, %s115
      %p127 = scmp.eq.s32.totalorder %s21, 1
      %p128 = por %p126, %p127
      %p130 = scmp.ne.s32.totalorder %s115, %s129
      %p131 = scmp.eq.s32.totalorder %s21, 0
      %p132 = por %p130, %p131
      %s134 = sadd.s32 %s133, 1
      %p137 = scmp.eq.s32.totalorder %s15, 1
      %p138 = scmp.ne.s32.totalorder %s133, %s135
      %p139 = scmp.eq.s32.totalorder %s15, 0
      %p140 = por %p138, %p139
      %p141 = scmp.ne.s32.totalorder %s133, %s135
      %p142 = scmp.eq.s32.totalorder %s20, 1
      %p143 = por %p141, %p142
      %p144 = scmp.ne.s32.totalorder %s135, %s136
      %p145 = scmp.eq.s32.totalorder %s20, 0
      %p146 = por %p144, %p145
      %p147 = scmp.ne.s32.totalorder %s135, %s136
      %p148 = scmp.eq.s32.totalorder %s21, 1
      %p149 = por %p147, %p148
      %p151 = scmp.ne.s32.totalorder %s136, %s150
      %p152 = scmp.eq.s32.totalorder %s21, 0
      %p153 = por %p151, %p152
      %s154 = ssub.s32 %s15, %s22
      %p155 = scmp.eq.s32.totalorder %s154, 0
      %s157 = sadd.s32 %s156, 1
      %s158 = scalar_select %p155, %s156, %s157
      %p161 = pneg %p155
      %p162 = scmp.eq.s32.totalorder %s15, 1
      %p163 = por %p161, %p162
      %p164 = scmp.ne.s32.totalorder %s156, %s159
      %p165 = scmp.eq.s32.totalorder %s15, 0
      %p166 = por %p164, %p165
      %p167 = scmp.ne.s32.totalorder %s156, %s159
      %p168 = scmp.eq.s32.totalorder %s20, 1
      %p169 = por %p167, %p168
      %p170 = scmp.ne.s32.totalorder %s159, %s160
      %p171 = scmp.eq.s32.totalorder %s20, 0
      %p172 = por %p170, %p171
      %p173 = scmp.ne.s32.totalorder %s159, %s160
      %p174 = scmp.eq.s32.totalorder %s21, 1
      %p175 = por %p173, %p174
      %p177 = scmp.ne.s32.totalorder %s160, %s176
      %p178 = scmp.eq.s32.totalorder %s21, 0
      %p179 = por %p177, %p178
      %p180 = scmp.le.s32.totalorder 1, %s15
      %p181 = scmp.lt.s32.totalorder %s15, 3
      %p182 = pnand %p180, %p181
      %p183 = pneg %p182
      // Predicated region
      $region9: #{basic_model_forward.1} parent=5 // pred_check
        _
      $region10: #{basic_model_forward.1} parent=5 // pred_check_branch
        %185 = sbr.rel (%p182) target = $region12
      $region11: #{basic_model_forward.1} parent=5 // pred_region
        %s186 = ssub.s32 %s15, 1
        // Predicated region
        $region13: #{basic_model_forward.1} parent=11 // pred_check
          %p187 = pneg %p62
        $region14: #{basic_model_forward.1} parent=11 // pred_check_branch
          %189 = sbr.rel (%p187) target = $region16
        $region15: #{basic_model_forward.1} parent=11 // pred_region
          _
        $region16: #{basic_model_forward.1} parent=11 // pred_fallthru
          _
        // Predicated region
        $region17: #{basic_model_forward.1} parent=11 // pred_check
          %p190 = pneg %p83
        $region18: #{basic_model_forward.1} parent=11 // pred_check_branch
          %192 = sbr.rel (%p190) target = $region20
        $region19: #{basic_model_forward.1} parent=11 // pred_region
          _
        $region20: #{basic_model_forward.1} parent=11 // pred_fallthru
          _
        // Predicated region
        $region21: #{basic_model_forward.1} parent=11 // pred_check
          %p193 = pneg %p104
        $region22: #{basic_model_forward.1} parent=11 // pred_check_branch
          %195 = sbr.rel (%p193) target = $region24
        $region23: #{basic_model_forward.1} parent=11 // pred_region
          _
        $region24: #{basic_model_forward.1} parent=11 // pred_fallthru
          _
        // Predicated region
        $region25: #{basic_model_forward.1} parent=11 // pred_check
          %p196 = pneg %p125
        $region26: #{basic_model_forward.1} parent=11 // pred_check_branch
          %198 = sbr.rel (%p196) target = $region28
        $region27: #{basic_model_forward.1} parent=11 // pred_region
          _
        $region28: #{basic_model_forward.1} parent=11 // pred_fallthru
          _
        // Predicated region
        $region29: #{basic_model_forward.1} parent=11 // pred_check
          %p199 = pneg %p146
        $region30: #{basic_model_forward.1} parent=11 // pred_check_branch
          %201 = sbr.rel (%p199) target = $region32
        $region31: #{basic_model_forward.1} parent=11 // pred_region
          _
        $region32: #{basic_model_forward.1} parent=11 // pred_fallthru
          _
      $region12: #{basic_model_forward.1} parent=5 // pred_fallthru
        _
      %p202 = scmp.lt.s32.totalorder %s15, 2
      // Predicated region
      $region33: #{basic_model_forward.1} parent=5 // pred_check
        %p203 = pneg %p202
      $region34: #{basic_model_forward.1} parent=5 // pred_check_branch
        %205 = sbr.rel (%p203) target = $region36
      $region35: #{basic_model_forward.1} parent=5 // pred_region
        // Predicated region
        $region37: #{basic_model_forward.1} parent=35 // pred_check
          %p206 = pneg %p35
        $region38: #{basic_model_forward.1} parent=35 // pred_check_branch
          %208 = sbr.rel (%p206) target = $region40
        $region39: #{basic_model_forward.1} parent=35 // pred_region
          %p209 = scmp.lt.s32.totalorder %s15, 1
          %s210 = scalar_select %p209, %s15, 1
          %s211 = smul.addr %s210, 46
          %s212 = smul.addr %s211, 8
          %s213 = scalar_lea.vmem %s0, %s212
        $region40: #{basic_model_forward.1} parent=35 // pred_fallthru
          _
      $region36: #{basic_model_forward.1} parent=5 // pred_fallthru
        _
      %p214 = scmp.le.s32.totalorder 1, %s15
      %p215 = scmp.lt.s32.totalorder %s15, 3
      %p216 = pnand %p214, %p215
      %p217 = pneg %p216
      // Predicated region
      $region41: #{basic_model_forward.1} parent=5 // pred_check
        _
      $region42: #{basic_model_forward.1} parent=5 // pred_check_branch
        %219 = sbr.rel (%p216) target = $region44
      $region43: #{basic_model_forward.1} parent=5 // pred_region
        %s220 = ssub.s32 %s15, 1
        %p221 = scmp.lt.s32.totalorder %s20, 1
        %s222 = scalar_select %p221, %s20, 1
        %s223 = smul.addr %s222, 46
        %s224 = smul.addr %s223, 8
        %s225 = scalar_lea.vmem %s0, %s224
        %p226 = pneg %p41
        %p227 = pneg %p38
        %p228 = pneg %p62
        %p229 = pneg %p59
        %p230 = pneg %p83
        %p231 = pneg %p80
        %p232 = pneg %p104
        %p233 = pneg %p101
        %p234 = pneg %p125
        %p235 = pneg %p122
        %p236 = pneg %p146
        %p237 = pneg %p143
        %p238 = pneg %p172
        %p239 = pneg %p169
        %s240 = sand.u32 %s159, 1
        %s241 = scalar_lea.sflag [#allocation3], %s240
        %s242 = sand.u32 %s159, 1
        %s243 = scalar_lea.vmem [#allocation2], %s242
        %p244 = scmp.lt.s32.totalorder %s20, 1
        %s245 = scalar_select %p244, %s20, 1
        %s246 = smul.addr %s245, 46
        %s247 = smul.addr %s246, 8
        %s248 = scalar_lea.vmem %s0, %s247
        %v250 = vld [vmem:[%s248] sm:$0xff]
        %v251 = vld [vmem:[%s248 + $0x8] sm:$0xff]
        %v252 = vld [vmem:[%s248 + $0x10] sm:$0xff]
        %v253 = vld [vmem:[%s248 + $0x18] sm:$0xff]
        %v254 = vld [vmem:[%s248 + $0x20] sm:$0xff]
        %v255 = vld [vmem:[%s248 + $0x28] sm:$0xff]
        %v256 = vld [vmem:[%s248 + $0x30] sm:$0xff]
        %v257 = vld [vmem:[%s248 + $0x38] sm:$0xff]
        %v258 = vld [vmem:[%s248 + $0x40] sm:$0xff]
        %v259 = vld [vmem:[%s248 + $0x48] sm:$0xff]
        %v260 = vld [vmem:[%s248 + $0x50] sm:$0xff]
        %v261 = vld [vmem:[%s248 + $0x58] sm:$0xff]
        %v262 = vld [vmem:[%s248 + $0x60] sm:$0xff]
        %v263 = vld [vmem:[%s248 + $0x68] sm:$0xff]
        %v264 = vld [vmem:[%s248 + $0x70] sm:$0xff]
        %v265 = vld [vmem:[%s248 + $0x78] sm:$0xff]
        %v266 = vld [vmem:[%s248 + $0x80] sm:$0xff]
        %v267 = vld [vmem:[%s248 + $0x88] sm:$0xff]
        %v268 = vld [vmem:[%s248 + $0x90] sm:$0xff]
        %v269 = vld [vmem:[%s248 + $0x98] sm:$0xff]
        %v270 = vld [vmem:[%s248 + $0xa0] sm:$0xff]
        %v271 = vld [vmem:[%s248 + $0xa8] sm:$0xff]
        %v272 = vld [vmem:[%s248 + $0xb0] sm:$0xff]
        %v273 = vld [vmem:[%s248 + $0xb8] sm:$0xff]
        %v274 = vld [vmem:[%s248 + $0xc0] sm:$0xff]
        %v275 = vld [vmem:[%s248 + $0xc8] sm:$0xff]
        %v276 = vld [vmem:[%s248 + $0xd0] sm:$0xff]
        %v277 = vld [vmem:[%s248 + $0xd8] sm:$0xff]
        %v278 = vld [vmem:[%s248 + $0xe0] sm:$0xff]
        %v279 = vld [vmem:[%s248 + $0xe8] sm:$0xff]
        %v280 = vld [vmem:[%s248 + $0xf0] sm:$0xff]
        %v281 = vld [vmem:[%s248 + $0xf8] sm:$0xff]
        %v282 = vld [vmem:[%s248 + $0x100] sm:$0xff]
        %v283 = vld [vmem:[%s248 + $0x108] sm:$0xff]
        %v284 = vld [vmem:[%s248 + $0x110] sm:$0xff]
        %v285 = vld [vmem:[%s248 + $0x118] sm:$0xff]
        %v286 = vld [vmem:[%s248 + $0x120] sm:$0xff]
        %v287 = vld [vmem:[%s248 + $0x128] sm:$0xff]
        %v288 = vld [vmem:[%s248 + $0x130] sm:$0xff]
        %v289 = vld [vmem:[%s248 + $0x138] sm:$0xff]
        %v290 = vld [vmem:[%s248 + $0x140] sm:$0xf]
        %v291 = vpack.c.bf16 %v251, %v250
        %v292 = vpack.c.bf16 %v253, %v252
        %v293 = vpack.c.bf16 %v255, %v254
        %v294 = vpack.c.bf16 %v257, %v256
        %v295 = vpack.c.bf16 %v259, %v258
        %v296 = vpack.c.bf16 %v261, %v260
        %v297 = vpack.c.bf16 %v263, %v262
        %v298 = vpack.c.bf16 %v265, %v264
        %v299 = vpack.c.bf16 %v267, %v266
        %v300 = vpack.c.bf16 %v269, %v268
        %v301 = vpack.c.bf16 %v271, %v270
        %v302 = vpack.c.bf16 %v273, %v272
        %v303 = vpack.c.bf16 %v275, %v274
        %v304 = vpack.c.bf16 %v277, %v276
        %v305 = vpack.c.bf16 %v279, %v278
        %v306 = vpack.c.bf16 %v281, %v280
        %v307 = vpack.c.bf16 %v283, %v282
        %v308 = vpack.c.bf16 %v285, %v284
        %v309 = vpack.c.bf16 %v287, %v286
        %v310 = vpack.c.bf16 %v289, %v288
        %v311 = vpack.c.bf16 %v290, %v290
        %v312 = vld [vmem:[%s1] sm:$0x3]
        %v313 = vld [vmem:[%s248 + $0x1] sm:$0xff]
        %v314 = vld [vmem:[%s248 + $0x9] sm:$0xff]
        %v315 = vld [vmem:[%s248 + $0x11] sm:$0xff]
        %v316 = vld [vmem:[%s248 + $0x19] sm:$0xff]
        %v317 = vld [vmem:[%s248 + $0x21] sm:$0xff]
        %v318 = vld [vmem:[%s248 + $0x29] sm:$0xff]
        %v319 = vld [vmem:[%s248 + $0x31] sm:$0xff]
        %v320 = vld [vmem:[%s248 + $0x39] sm:$0xff]
        %v321 = vld [vmem:[%s248 + $0x41] sm:$0xff]
        %v322 = vld [vmem:[%s248 + $0x49] sm:$0xff]
        %v323 = vld [vmem:[%s248 + $0x51] sm:$0xff]
        %v324 = vld [vmem:[%s248 + $0x59] sm:$0xff]
        %v325 = vld [vmem:[%s248 + $0x61] sm:$0xff]
        %v326 = vld [vmem:[%s248 + $0x69] sm:$0xff]
        %v327 = vld [vmem:[%s248 + $0x71] sm:$0xff]
        %v328 = vld [vmem:[%s248 + $0x79] sm:$0xff]
        %v329 = vld [vmem:[%s248 + $0x81] sm:$0xff]
        %v330 = vld [vmem:[%s248 + $0x89] sm:$0xff]
        %v331 = vld [vmem:[%s248 + $0x91] sm:$0xff]
        %v332 = vld [vmem:[%s248 + $0x99] sm:$0xff]
        %v333 = vld [vmem:[%s248 + $0xa1] sm:$0xff]
        %v334 = vld [vmem:[%s248 + $0xa9] sm:$0xff]
        %v335 = vld [vmem:[%s248 + $0xb1] sm:$0xff]
        %v336 = vld [vmem:[%s248 + $0xb9] sm:$0xff]
        %v337 = vld [vmem:[%s248 + $0xc1] sm:$0xff]
        %v338 = vld [vmem:[%s248 + $0xc9] sm:$0xff]
        %v339 = vld [vmem:[%s248 + $0xd1] sm:$0xff]
        %v340 = vld [vmem:[%s248 + $0xd9] sm:$0xff]
        %v341 = vld [vmem:[%s248 + $0xe1] sm:$0xff]
        %v342 = vld [vmem:[%s248 + $0xe9] sm:$0xff]
        %v343 = vld [vmem:[%s248 + $0xf1] sm:$0xff]
        %v344 = vld [vmem:[%s248 + $0xf9] sm:$0xff]
        %v345 = vld [vmem:[%s248 + $0x101] sm:$0xff]
        %v346 = vld [vmem:[%s248 + $0x109] sm:$0xff]
        %v347 = vld [vmem:[%s248 + $0x111] sm:$0xff]
        %v348 = vld [vmem:[%s248 + $0x119] sm:$0xff]
        %v349 = vld [vmem:[%s248 + $0x121] sm:$0xff]
        %v350 = vld [vmem:[%s248 + $0x129] sm:$0xff]
        %v351 = vld [vmem:[%s248 + $0x131] sm:$0xff]
        %v352 = vld [vmem:[%s248 + $0x139] sm:$0xff]
        %v353 = vld [vmem:[%s248 + $0x141] sm:$0xf]
        %v354 = vpack.c.bf16 %v314, %v313
        %v355 = vpack.c.bf16 %v316, %v315
        %v356 = vpack.c.bf16 %v318, %v317
        %v357 = vpack.c.bf16 %v320, %v319
        %v358 = vpack.c.bf16 %v322, %v321
        %v359 = vpack.c.bf16 %v324, %v323
        %v360 = vpack.c.bf16 %v326, %v325
        %v361 = vpack.c.bf16 %v328, %v327
        %v362 = vpack.c.bf16 %v330, %v329
        %v363 = vpack.c.bf16 %v332, %v331
        %v364 = vpack.c.bf16 %v334, %v333
        %v365 = vpack.c.bf16 %v336, %v335
        %v366 = vpack.c.bf16 %v338, %v337
        %v367 = vpack.c.bf16 %v340, %v339
        %v368 = vpack.c.bf16 %v342, %v341
        %v369 = vpack.c.bf16 %v344, %v343
        %v370 = vpack.c.bf16 %v346, %v345
        %v371 = vpack.c.bf16 %v348, %v347
        %v372 = vpack.c.bf16 %v350, %v349
        %v373 = vpack.c.bf16 %v352, %v351
        %v374 = vpack.c.bf16 %v353, %v353
        %s375 = scalar_lea.vmem %s1, 2
        %v376 = vld [vmem:[%s375] sm:$0x3]
        %vm377 = vcmask 31744
        %v379 = vsel %vm377, %v354, 0
        %v382 = vsel %vm377, %v355, 0
        %v385 = vsel %vm377, %v356, 0
        %v388 = vsel %vm377, %v357, 0
        %v391 = vsel %vm377, %v358, 0
        %v394 = vsel %vm377, %v359, 0
        %v397 = vsel %vm377, %v360, 0
        %v400 = vsel %vm377, %v361, 0
        %v403 = vsel %vm377, %v362, 0
        %v406 = vsel %vm377, %v363, 0
        %v409 = vsel %vm377, %v364, 0
        %v412 = vsel %vm377, %v365, 0
        %v415 = vsel %vm377, %v366, 0
        %v418 = vsel %vm377, %v367, 0
        %v421 = vsel %vm377, %v368, 0
        %v424 = vsel %vm377, %v369, 0
        %v427 = vsel %vm377, %v370, 0
        %v430 = vsel %vm377, %v371, 0
        %v433 = vsel %vm377, %v372, 0
        %v436 = vsel %vm377, %v373, 0
        %v439 = vsel %vm377, %v374, 0
        %vm441 = vcmask 1041408
        %v443 = vsel %vm441, %v376, 0
        %445 = vmatprep.subr.bf16.mxu0 0
        %446 = vmatpush1.bf16.msra.mxu0 %v443
        %447 = vmatprep.subr.bf16.mxu0 0
        %448 = vmatpush1.bf16.msra.mxu0 0
        %449 = vmatprep.subr.bf16.mxu0 0
        %450 = vmatpush1.bf16.msra.mxu0 0
        %451 = vmatprep.subr.bf16.mxu0 0
        %452 = vmatpush1.bf16.msra.mxu0 0
        %453 = vmatprep.subr.bf16.mxu0 0
        %454 = vmatpush1.bf16.msra.mxu0 0
        %455 = vmatprep.subr.bf16.mxu0 0
        %456 = vmatpush1.bf16.msra.mxu0 0
        %457 = vmatprep.subr.bf16.mxu0 0
        %458 = vmatpush1.bf16.msra.mxu0 0
        %459 = vmatprep.subr.bf16.mxu0 0
        %460 = vmatpush1.bf16.msra.mxu0 0
        %461 = vmatprep.subr.bf16.mxu0 0
        %462 = vmatpush1.bf16.msra.mxu0 0
        %463 = vmatprep.subr.bf16.mxu0 0
        %464 = vmatpush1.bf16.msra.mxu0 0
        %465 = vmatprep.subr.bf16.mxu0 0
        %466 = vmatpush1.bf16.msra.mxu0 0
        %467 = vmatprep.subr.bf16.mxu0 0
        %468 = vmatpush1.bf16.msra.mxu0 0
        %469 = vmatprep.subr.bf16.mxu0 0
        %470 = vmatpush1.bf16.msra.mxu0 0
        %471 = vmatprep.subr.bf16.mxu0 0
        %472 = vmatpush1.bf16.msra.mxu0 0
        %473 = vmatprep.subr.bf16.mxu0 0
        %474 = vmatpush1.bf16.msra.mxu0 0
        %475 = vmatprep.subr.bf16.mxu0 0
        %476 = vmatpush1.bf16.msra.mxu0 0
        %477 = vmatprep.mubr.bf16.mxu0 0
        %478 = vmatmul.mubr.bf16.gmra.mrb[0].mxu0 %v379
        %v479 = vpop.f32.mrb[0].mxu0
        %v480 = vadd.f32 0.0, %v479
        %v481 = vpop.f32.mrb[0].mxu0
        %v482 = vpop.f32.mrb[0].mxu0
        %v483 = vadd.f32 0.0, %v482
        %v484 = vpop.f32.mrb[0].mxu0
        %485 = vmatprep.mubr.bf16.mxu0 0
        %486 = vmatmul.mubr.bf16.gmra.mrb[0].mxu0 %v382
        %v487 = vpop.f32.mrb[0].mxu0
        %v488 = vadd.f32 0.0, %v487
        %v489 = vpop.f32.mrb[0].mxu0
        %v490 = vpop.f32.mrb[0].mxu0
        %v491 = vadd.f32 0.0, %v490
        %v492 = vpop.f32.mrb[0].mxu0
        %493 = vmatprep.mubr.bf16.mxu0 0
        %494 = vmatmul.mubr.bf16.gmra.mrb[0].mxu0 %v385
        %v495 = vpop.f32.mrb[0].mxu0
        %v496 = vadd.f32 0.0, %v495
        %v497 = vpop.f32.mrb[0].mxu0
        %v498 = vpop.f32.mrb[0].mxu0
        %v499 = vadd.f32 0.0, %v498
        %v500 = vpop.f32.mrb[0].mxu0
        %501 = vmatprep.mubr.bf16.mxu0 0
        %502 = vmatmul.mubr.bf16.gmra.mrb[0].mxu0 %v388
        %v503 = vpop.f32.mrb[0].mxu0
        %v504 = vadd.f32 0.0, %v503
        %v505 = vpop.f32.mrb[0].mxu0
        %v506 = vpop.f32.mrb[0].mxu0
        %v507 = vadd.f32 0.0, %v506
        %v508 = vpop.f32.mrb[0].mxu0
        %509 = vmatprep.mubr.bf16.mxu0 0
        %510 = vmatmul.mubr.bf16.gmra.mrb[0].mxu0 %v391
        %v511 = vpop.f32.mrb[0].mxu0
        %v512 = vadd.f32 0.0, %v511
        %v513 = vpop.f32.mrb[0].mxu0
        %v514 = vpop.f32.mrb[0].mxu0
        %v515 = vadd.f32 0.0, %v514
        %v516 = vpop.f32.mrb[0].mxu0
        %517 = vmatprep.mubr.bf16.mxu0 0
        %518 = vmatmul.mubr.bf16.gmra.mrb[0].mxu0 %v394
        %v519 = vpop.f32.mrb[0].mxu0
        %v520 = vadd.f32 0.0, %v519
        %v521 = vpop.f32.mrb[0].mxu0
        %v522 = vpop.f32.mrb[0].mxu0
        %v523 = vadd.f32 0.0, %v522
        %v524 = vpop.f32.mrb[0].mxu0
        %525 = vmatprep.mubr.bf16.mxu0 0
        %526 = vmatmul.mubr.bf16.gmra.mrb[0].mxu0 %v397
        %v527 = vpop.f32.mrb[0].mxu0
        %v528 = vadd.f32 0.0, %v527
        %v529 = vpop.f32.mrb[0].mxu0
        %v530 = vpop.f32.mrb[0].mxu0
        %v531 = vadd.f32 0.0, %v530
        %v532 = vpop.f32.mrb[0].mxu0
        %533 = vmatprep.mubr.bf16.mxu0 0
        %534 = vmatmul.mubr.bf16.gmra.mrb[0].mxu0 %v400
        %v535 = vpop.f32.mrb[0].mxu0
        %v536 = vadd.f32 0.0, %v535
        %v537 = vpop.f32.mrb[0].mxu0
        %v538 = vpop.f32.mrb[0].mxu0
        %v539 = vadd.f32 0.0, %v538
        %v540 = vpop.f32.mrb[0].mxu0
        %541 = vmatprep.mubr.bf16.mxu0 0
        %542 = vmatmul.mubr.bf16.gmra.mrb[0].mxu0 %v403
        %v543 = vpop.f32.mrb[0].mxu0
        %v544 = vadd.f32 0.0, %v543
        %v545 = vpop.f32.mrb[0].mxu0
        %v546 = vpop.f32.mrb[0].mxu0
        %v547 = vadd.f32 0.0, %v546
        %v548 = vpop.f32.mrb[0].mxu0
        %549 = vmatprep.mubr.bf16.mxu0 0
        %550 = vmatmul.mubr.bf16.gmra.mrb[0].mxu0 %v406
        %v551 = vpop.f32.mrb[0].mxu0
        %v552 = vadd.f32 0.0, %v551
        %v553 = vpop.f32.mrb[0].mxu0
        %v554 = vpop.f32.mrb[0].mxu0
        %v555 = vadd.f32 0.0, %v554
        %v556 = vpop.f32.mrb[0].mxu0
        %557 = vmatprep.mubr.bf16.mxu0 0
        %558 = vmatmul.mubr.bf16.gmra.mrb[0].mxu0 %v409
        %v559 = vpop.f32.mrb[0].mxu0
        %v560 = vadd.f32 0.0, %v559
        %v561 = vpop.f32.mrb[0].mxu0
        %v562 = vpop.f32.mrb[0].mxu0
        %v563 = vadd.f32 0.0, %v562
        %v564 = vpop.f32.mrb[0].mxu0
        %565 = vmatprep.mubr.bf16.mxu0 0
        %566 = vmatmul.mubr.bf16.gmra.mrb[0].mxu0 %v412
        %v567 = vpop.f32.mrb[0].mxu0
        %v568 = vadd.f32 0.0, %v567
        %v569 = vpop.f32.mrb[0].mxu0
        %v570 = vpop.f32.mrb[0].mxu0
        %v571 = vadd.f32 0.0, %v570
        %v572 = vpop.f32.mrb[0].mxu0
        %573 = vmatprep.mubr.bf16.mxu0 0
        %574 = vmatmul.mubr.bf16.gmra.mrb[0].mxu0 %v415
        %v575 = vpop.f32.mrb[0].mxu0
        %v576 = vadd.f32 0.0, %v575
        %v577 = vpop.f32.mrb[0].mxu0
        %v578 = vpop.f32.mrb[0].mxu0
        %v579 = vadd.f32 0.0, %v578
        %v580 = vpop.f32.mrb[0].mxu0
        %581 = vmatprep.mubr.bf16.mxu0 0
        %582 = vmatmul.mubr.bf16.gmra.mrb[0].mxu0 %v418
        %v583 = vpop.f32.mrb[0].mxu0
        %v584 = vadd.f32 0.0, %v583
        %v585 = vpop.f32.mrb[0].mxu0
        %v586 = vpop.f32.mrb[0].mxu0
        %v587 = vadd.f32 0.0, %v586
        %v588 = vpop.f32.mrb[0].mxu0
        %589 = vmatprep.mubr.bf16.mxu0 0
        %590 = vmatmul.mubr.bf16.gmra.mrb[0].mxu0 %v421
        %v591 = vpop.f32.mrb[0].mxu0
        %v592 = vadd.f32 0.0, %v591
        %v593 = vpop.f32.mrb[0].mxu0
        %v594 = vpop.f32.mrb[0].mxu0
        %v595 = vadd.f32 0.0, %v594
        %v596 = vpop.f32.mrb[0].mxu0
        %597 = vmatprep.mubr.bf16.mxu0 0
        %598 = vmatmul.mubr.bf16.gmra.mrb[0].mxu0 %v424
        %v599 = vpop.f32.mrb[0].mxu0
        %v600 = vadd.f32 0.0, %v599
        %v601 = vpop.f32.mrb[0].mxu0
        %v602 = vpop.f32.mrb[0].mxu0
        %v603 = vadd.f32 0.0, %v602
        %v604 = vpop.f32.mrb[0].mxu0
        %605 = vmatprep.mubr.bf16.mxu0 0
        %606 = vmatmul.mubr.bf16.gmra.mrb[0].mxu0 %v427
        %v607 = vpop.f32.mrb[0].mxu0
        %v608 = vadd.f32 0.0, %v607
        %v609 = vpop.f32.mrb[0].mxu0
        %v610 = vpop.f32.mrb[0].mxu0
        %v611 = vadd.f32 0.0, %v610
        %v612 = vpop.f32.mrb[0].mxu0
        %613 = vmatprep.mubr.bf16.mxu0 0
        %614 = vmatmul.mubr.bf16.gmra.mrb[0].mxu0 %v430
        %v615 = vpop.f32.mrb[0].mxu0
        %v616 = vadd.f32 0.0, %v615
        %v617 = vpop.f32.mrb[0].mxu0
        %v618 = vpop.f32.mrb[0].mxu0
        %v619 = vadd.f32 0.0, %v618
        %v620 = vpop.f32.mrb[0].mxu0
        %621 = vmatprep.mubr.bf16.mxu0 0
        %622 = vmatmul.mubr.bf16.gmra.mrb[0].mxu0 %v433
        %v623 = vpop.f32.mrb[0].mxu0
        %v624 = vadd.f32 0.0, %v623
        %v625 = vpop.f32.mrb[0].mxu0
        %v626 = vpop.f32.mrb[0].mxu0
        %v627 = vadd.f32 0.0, %v626
        %v628 = vpop.f32.mrb[0].mxu0
        %629 = vmatprep.mubr.bf16.mxu0 0
        %630 = vmatmul.mubr.bf16.gmra.mrb[0].mxu0 %v436
        %v631 = vpop.f32.mrb[0].mxu0
        %v632 = vadd.f32 0.0, %v631
        %v633 = vpop.f32.mrb[0].mxu0
        %v634 = vpop.f32.mrb[0].mxu0
        %v635 = vadd.f32 0.0, %v634
        %v636 = vpop.f32.mrb[0].mxu0
        %637 = vmatprep.mubr.bf16.mxu0 0
        %638 = vmatmul.mubr.bf16.gmra.mrb[0].mxu0 %v439
        %v639 = vpop.f32.mrb[0].mxu0
        %v640 = vadd.f32 0.0, %v639
        %v641 = vpop.f32.mrb[0].mxu0
        %v642 = vpop.f32.mrb[0].mxu0
        %v643 = vpop.f32.mrb[0].mxu0
        %644 = vdwg.mxu0
        %v646 = vsel %vm377, %v291, 0
        %v649 = vsel %vm377, %v292, 0
        %v652 = vsel %vm377, %v293, 0
        %v655 = vsel %vm377, %v294, 0
        %v658 = vsel %vm377, %v295, 0
        %v661 = vsel %vm377, %v296, 0
        %v664 = vsel %vm377, %v297, 0
        %v667 = vsel %vm377, %v298, 0
        %v670 = vsel %vm377, %v299, 0
        %v673 = vsel %vm377, %v300, 0
        %v676 = vsel %vm377, %v301, 0
        %v679 = vsel %vm377, %v302, 0
        %v682 = vsel %vm377, %v303, 0
        %v685 = vsel %vm377, %v304, 0
        %v688 = vsel %vm377, %v305, 0
        %v691 = vsel %vm377, %v306, 0
        %v694 = vsel %vm377, %v307, 0
        %v697 = vsel %vm377, %v308, 0
        %v700 = vsel %vm377, %v309, 0
        %v703 = vsel %vm377, %v310, 0
        %v706 = vsel %vm377, %v311, 0
        %v709 = vsel %vm441, %v312, 0
        %711 = vmatprep.subr.bf16.mxu0 0
        %712 = vmatpush1.bf16.msra.mxu0 %v709
        %713 = vmatprep.subr.bf16.mxu0 0
        %714 = vmatpush1.bf16.msra.mxu0 0
        %715 = vmatprep.subr.bf16.mxu0 0
        %716 = vmatpush1.bf16.msra.mxu0 0
        %717 = vmatprep.subr.bf16.mxu0 0
        %718 = vmatpush1.bf16.msra.mxu0 0
        %719 = vmatprep.subr.bf16.mxu0 0
        %720 = vmatpush1.bf16.msra.mxu0 0
        %721 = vmatprep.subr.bf16.mxu0 0
        %722 = vmatpush1.bf16.msra.mxu0 0
        %723 = vmatprep.subr.bf16.mxu0 0
        %724 = vmatpush1.bf16.msra.mxu0 0
        %725 = vmatprep.subr.bf16.mxu0 0
        %726 = vmatpush1.bf16.msra.mxu0 0
        %727 = vmatprep.subr.bf16.mxu0 0
        %728 = vmatpush1.bf16.msra.mxu0 0
        %729 = vmatprep.subr.bf16.mxu0 0
        %730 = vmatpush1.bf16.msra.mxu0 0
        %731 = vmatprep.subr.bf16.mxu0 0
        %732 = vmatpush1.bf16.msra.mxu0 0
        %733 = vmatprep.subr.bf16.mxu0 0
        %734 = vmatpush1.bf16.msra.mxu0 0
        %735 = vmatprep.subr.bf16.mxu0 0
        %736 = vmatpush1.bf16.msra.mxu0 0
        %737 = vmatprep.subr.bf16.mxu0 0
        %738 = vmatpush1.bf16.msra.mxu0 0
        %739 = vmatprep.subr.bf16.mxu0 0
        %740 = vmatpush1.bf16.msra.mxu0 0
        %741 = vmatprep.subr.bf16.mxu0 0
        %742 = vmatpush1.bf16.msra.mxu0 0
        %743 = vmatprep.mubr.bf16.mxu0 0
        %744 = vmatmul.mubr.bf16.gmra.mrb[0].mxu0 %v646
        %v745 = vpop.f32.mrb[0].mxu0
        %v746 = vadd.f32 %v480, %v745
        %v747 = vpop.f32.mrb[0].mxu0
        %v748 = vpop.f32.mrb[0].mxu0
        %v749 = vadd.f32 %v483, %v748
        %v750 = vpop.f32.mrb[0].mxu0
        %751 = vmatprep.mubr.bf16.mxu0 0
        %752 = vmatmul.mubr.bf16.gmra.mrb[0].mxu0 %v649
        %v753 = vpop.f32.mrb[0].mxu0
        %v754 = vadd.f32 %v488, %v753
        %v755 = vpop.f32.mrb[0].mxu0
        %v756 = vpop.f32.mrb[0].mxu0
        %v757 = vadd.f32 %v491, %v756
        %v758 = vpop.f32.mrb[0].mxu0
        %759 = vmatprep.mubr.bf16.mxu0 0
        %760 = vmatmul.mubr.bf16.gmra.mrb[0].mxu0 %v652
        %v761 = vpop.f32.mrb[0].mxu0
        %v762 = vadd.f32 %v496, %v761
        %v763 = vpop.f32.mrb[0].mxu0
        %v764 = vpop.f32.mrb[0].mxu0
        %v765 = vadd.f32 %v499, %v764
        %v766 = vpop.f32.mrb[0].mxu0
        %767 = vmatprep.mubr.bf16.mxu0 0
        %768 = vmatmul.mubr.bf16.gmra.mrb[0].mxu0 %v655
        %v769 = vpop.f32.mrb[0].mxu0
        %v770 = vadd.f32 %v504, %v769
        %v771 = vpop.f32.mrb[0].mxu0
        %v772 = vpop.f32.mrb[0].mxu0
        %v773 = vadd.f32 %v507, %v772
        %v774 = vpop.f32.mrb[0].mxu0
        %775 = vmatprep.mubr.bf16.mxu0 0
        %776 = vmatmul.mubr.bf16.gmra.mrb[0].mxu0 %v658
        %v777 = vpop.f32.mrb[0].mxu0
        %v778 = vadd.f32 %v512, %v777
        %v779 = vpop.f32.mrb[0].mxu0
        %v780 = vpop.f32.mrb[0].mxu0
        %v781 = vadd.f32 %v515, %v780
        %v782 = vpop.f32.mrb[0].mxu0
        %783 = vmatprep.mubr.bf16.mxu0 0
        %784 = vmatmul.mubr.bf16.gmra.mrb[0].mxu0 %v661
        %v785 = vpop.f32.mrb[0].mxu0
        %v786 = vadd.f32 %v520, %v785
        %v787 = vpop.f32.mrb[0].mxu0
        %v788 = vpop.f32.mrb[0].mxu0
        %v789 = vadd.f32 %v523, %v788
        %v790 = vpop.f32.mrb[0].mxu0
        %791 = vmatprep.mubr.bf16.mxu0 0
        %792 = vmatmul.mubr.bf16.gmra.mrb[0].mxu0 %v664
        %v793 = vpop.f32.mrb[0].mxu0
        %v794 = vadd.f32 %v528, %v793
        %v795 = vpop.f32.mrb[0].mxu0
        %v796 = vpop.f32.mrb[0].mxu0
        %v797 = vadd.f32 %v531, %v796
        %v798 = vpop.f32.mrb[0].mxu0
        %799 = vmatprep.mubr.bf16.mxu0 0
        %800 = vmatmul.mubr.bf16.gmra.mrb[0].mxu0 %v667
        %v801 = vpop.f32.mrb[0].mxu0
        %v802 = vadd.f32 %v536, %v801
        %v803 = vpop.f32.mrb[0].mxu0
        %v804 = vpop.f32.mrb[0].mxu0
        %v805 = vadd.f32 %v539, %v804
        %v806 = vpop.f32.mrb[0].mxu0
        %807 = vmatprep.mubr.bf16.mxu0 0
        %808 = vmatmul.mubr.bf16.gmra.mrb[0].mxu0 %v670
        %v809 = vpop.f32.mrb[0].mxu0
        %v810 = vadd.f32 %v544, %v809
        %v811 = vpop.f32.mrb[0].mxu0
        %v812 = vpop.f32.mrb[0].mxu0
        %v813 = vadd.f32 %v547, %v812
        %v814 = vpop.f32.mrb[0].mxu0
        %815 = vmatprep.mubr.bf16.mxu0 0
        %816 = vmatmul.mubr.bf16.gmra.mrb[0].mxu0 %v673
        %v817 = vpop.f32.mrb[0].mxu0
        %v818 = vadd.f32 %v552, %v817
        %v819 = vpop.f32.mrb[0].mxu0
        %v820 = vpop.f32.mrb[0].mxu0
        %v821 = vadd.f32 %v555, %v820
        %v822 = vpop.f32.mrb[0].mxu0
        %823 = vmatprep.mubr.bf16.mxu0 0
        %824 = vmatmul.mubr.bf16.gmra.mrb[0].mxu0 %v676
        %v825 = vpop.f32.mrb[0].mxu0
        %v826 = vadd.f32 %v560, %v825
        %v827 = vpop.f32.mrb[0].mxu0
        %v828 = vpop.f32.mrb[0].mxu0
        %v829 = vadd.f32 %v563, %v828
        %v830 = vpop.f32.mrb[0].mxu0
        %831 = vmatprep.mubr.bf16.mxu0 0
        %832 = vmatmul.mubr.bf16.gmra.mrb[0].mxu0 %v679
        %v833 = vpop.f32.mrb[0].mxu0
        %v834 = vadd.f32 %v568, %v833
        %v835 = vpop.f32.mrb[0].mxu0
        %v836 = vpop.f32.mrb[0].mxu0
        %v837 = vadd.f32 %v571, %v836
        %v838 = vpop.f32.mrb[0].mxu0
        %839 = vmatprep.mubr.bf16.mxu0 0
        %840 = vmatmul.mubr.bf16.gmra.mrb[0].mxu0 %v682
        %v841 = vpop.f32.mrb[0].mxu0
        %v842 = vadd.f32 %v576, %v841
        %v843 = vpop.f32.mrb[0].mxu0
        %v844 = vpop.f32.mrb[0].mxu0
        %v845 = vadd.f32 %v579, %v844
        %v846 = vpop.f32.mrb[0].mxu0
        %847 = vmatprep.mubr.bf16.mxu0 0
        %848 = vmatmul.mubr.bf16.gmra.mrb[0].mxu0 %v685
        %v849 = vpop.f32.mrb[0].mxu0
        %v850 = vadd.f32 %v584, %v849
        %v851 = vpop.f32.mrb[0].mxu0
        %v852 = vpop.f32.mrb[0].mxu0
        %v853 = vadd.f32 %v587, %v852
        %v854 = vpop.f32.mrb[0].mxu0
        %855 = vmatprep.mubr.bf16.mxu0 0
        %856 = vmatmul.mubr.bf16.gmra.mrb[0].mxu0 %v688
        %v857 = vpop.f32.mrb[0].mxu0
        %v858 = vadd.f32 %v592, %v857
        %v859 = vpop.f32.mrb[0].mxu0
        %v860 = vpop.f32.mrb[0].mxu0
        %v861 = vadd.f32 %v595, %v860
        %v862 = vpop.f32.mrb[0].mxu0
        %863 = vmatprep.mubr.bf16.mxu0 0
        %864 = vmatmul.mubr.bf16.gmra.mrb[0].mxu0 %v691
        %v865 = vpop.f32.mrb[0].mxu0
        %v866 = vadd.f32 %v600, %v865
        %v867 = vpop.f32.mrb[0].mxu0
        %v868 = vpop.f32.mrb[0].mxu0
        %v869 = vadd.f32 %v603, %v868
        %v870 = vpop.f32.mrb[0].mxu0
        %871 = vmatprep.mubr.bf16.mxu0 0
        %872 = vmatmul.mubr.bf16.gmra.mrb[0].mxu0 %v694
        %v873 = vpop.f32.mrb[0].mxu0
        %v874 = vadd.f32 %v608, %v873
        %v875 = vpop.f32.mrb[0].mxu0
        %v876 = vpop.f32.mrb[0].mxu0
        %v877 = vadd.f32 %v611, %v876
        %v878 = vpop.f32.mrb[0].mxu0
        %879 = vmatprep.mubr.bf16.mxu0 0
        %880 = vmatmul.mubr.bf16.gmra.mrb[0].mxu0 %v697
        %v881 = vpop.f32.mrb[0].mxu0
        %v882 = vadd.f32 %v616, %v881
        %v883 = vpop.f32.mrb[0].mxu0
        %v884 = vpop.f32.mrb[0].mxu0
        %v885 = vadd.f32 %v619, %v884
        %v886 = vpop.f32.mrb[0].mxu0
        %887 = vmatprep.mubr.bf16.mxu0 0
        %888 = vmatmul.mubr.bf16.gmra.mrb[0].mxu0 %v700
        %v889 = vpop.f32.mrb[0].mxu0
        %v890 = vadd.f32 %v624, %v889
        %v891 = vpop.f32.mrb[0].mxu0
        %v892 = vpop.f32.mrb[0].mxu0
        %v893 = vadd.f32 %v627, %v892
        %v894 = vpop.f32.mrb[0].mxu0
        %895 = vmatprep.mubr.bf16.mxu0 0
        %896 = vmatmul.mubr.bf16.gmra.mrb[0].mxu0 %v703
        %v897 = vpop.f32.mrb[0].mxu0
        %v898 = vadd.f32 %v632, %v897
        %v899 = vpop.f32.mrb[0].mxu0
        %v900 = vpop.f32.mrb[0].mxu0
        %v901 = vadd.f32 %v635, %v900
        %v902 = vpop.f32.mrb[0].mxu0
        %903 = vmatprep.mubr.bf16.mxu0 0
        %904 = vmatmul.mubr.bf16.gmra.mrb[0].mxu0 %v706
        %v905 = vpop.f32.mrb[0].mxu0
        %v906 = vadd.f32 %v640, %v905
        %v907 = vpop.f32.mrb[0].mxu0
        %v908 = vpop.f32.mrb[0].mxu0
        %v909 = vpop.f32.mrb[0].mxu0
        %910 = vdwg.mxu0
        %v911 = vld [vmem:[%s248 + $0x2] sm:$0xff]
        %v912 = vld [vmem:[%s248 + $0xa] sm:$0xff]
        %v913 = vld [vmem:[%s248 + $0x12] sm:$0xff]
        %v914 = vld [vmem:[%s248 + $0x1a] sm:$0xff]
        %v915 = vld [vmem:[%s248 + $0x22] sm:$0xff]
        %v916 = vld [vmem:[%s248 + $0x2a] sm:$0xff]
        %v917 = vld [vmem:[%s248 + $0x32] sm:$0xff]
        %v918 = vld [vmem:[%s248 + $0x3a] sm:$0xff]
        %v919 = vld [vmem:[%s248 + $0x42] sm:$0xff]
        %v920 = vld [vmem:[%s248 + $0x4a] sm:$0xff]
        %v921 = vld [vmem:[%s248 + $0x52] sm:$0xff]
        %v922 = vld [vmem:[%s248 + $0x5a] sm:$0xff]
        %v923 = vld [vmem:[%s248 + $0x62] sm:$0xff]
        %v924 = vld [vmem:[%s248 + $0x6a] sm:$0xff]
        %v925 = vld [vmem:[%s248 + $0x72] sm:$0xff]
        %v926 = vld [vmem:[%s248 + $0x7a] sm:$0xff]
        %v927 = vld [vmem:[%s248 + $0x82] sm:$0xff]
        %v928 = vld [vmem:[%s248 + $0x8a] sm:$0xff]
        %v929 = vld [vmem:[%s248 + $0x92] sm:$0xff]
        %v930 = vld [vmem:[%s248 + $0x9a] sm:$0xff]
        %v931 = vld [vmem:[%s248 + $0xa2] sm:$0xff]
        %v932 = vld [vmem:[%s248 + $0xaa] sm:$0xff]
        %v933 = vld [vmem:[%s248 + $0xb2] sm:$0xff]
        %v934 = vld [vmem:[%s248 + $0xba] sm:$0xff]
        %v935 = vld [vmem:[%s248 + $0xc2] sm:$0xff]
        %v936 = vld [vmem:[%s248 + $0xca] sm:$0xff]
        %v937 = vld [vmem:[%s248 + $0xd2] sm:$0xff]
        %v938 = vld [vmem:[%s248 + $0xda] sm:$0xff]
        %v939 = vld [vmem:[%s248 + $0xe2] sm:$0xff]
        %v940 = vld [vmem:[%s248 + $0xea] sm:$0xff]
        %v941 = vld [vmem:[%s248 + $0xf2] sm:$0xff]
        %v942 = vld [vmem:[%s248 + $0xfa] sm:$0xff]
        %v943 = vld [vmem:[%s248 + $0x102] sm:$0xff]
        %v944 = vld [vmem:[%s248 + $0x10a] sm:$0xff]
        %v945 = vld [vmem:[%s248 + $0x112] sm:$0xff]
        %v946 = vld [vmem:[%s248 + $0x11a] sm:$0xff]
        %v947 = vld [vmem:[%s248 + $0x122] sm:$0xff]
        %v948 = vld [vmem:[%s248 + $0x12a] sm:$0xff]
        %v949 = vld [vmem:[%s248 + $0x132] sm:$0xff]
        %v950 = vld [vmem:[%s248 + $0x13a] sm:$0xff]
        %v951 = vld [vmem:[%s248 + $0x142] sm:$0xf]
        %v952 = vpack.c.bf16 %v912, %v911
        %v953 = vpack.c.bf16 %v914, %v913
        %v954 = vpack.c.bf16 %v916, %v915
        %v955 = vpack.c.bf16 %v918, %v917
        %v956 = vpack.c.bf16 %v920, %v919
        %v957 = vpack.c.bf16 %v922, %v921
        %v958 = vpack.c.bf16 %v924, %v923
        %v959 = vpack.c.bf16 %v926, %v925
        %v960 = vpack.c.bf16 %v928, %v927
        %v961 = vpack.c.bf16 %v930, %v929
        %v962 = vpack.c.bf16 %v932, %v931
        %v963 = vpack.c.bf16 %v934, %v933
        %v964 = vpack.c.bf16 %v936, %v935
        %v965 = vpack.c.bf16 %v938, %v937
        %v966 = vpack.c.bf16 %v940, %v939
        %v967 = vpack.c.bf16 %v942, %v941
        %v968 = vpack.c.bf16 %v944, %v943
        %v969 = vpack.c.bf16 %v946, %v945
        %v970 = vpack.c.bf16 %v948, %v947
        %v971 = vpack.c.bf16 %v950, %v949
        %v972 = vpack.c.bf16 %v951, %v951
        %s973 = scalar_lea.vmem %s1, 4
        %v974 = vld [vmem:[%s973] sm:$0x3]
        %v976 = vsel %vm377, %v952, 0
        %v979 = vsel %vm377, %v953, 0
        %v982 = vsel %vm377, %v954, 0
        %v985 = vsel %vm377, %v955, 0
        %v988 = vsel %vm377, %v956, 0
        %v991 = vsel %vm377, %v957, 0
        %v994 = vsel %vm377, %v958, 0
        %v997 = vsel %vm377, %v959, 0
        %v1000 = vsel %vm377, %v960, 0
        %v1003 = vsel %vm377, %v961, 0
        %v1006 = vsel %vm377, %v962, 0
        %v1009 = vsel %vm377, %v963, 0
        %v1012 = vsel %vm377, %v964, 0
        %v1015 = vsel %vm377, %v965, 0
        %v1018 = vsel %vm377, %v966, 0
        %v1021 = vsel %vm377, %v967, 0
        %v1024 = vsel %vm377, %v968, 0
        %v1027 = vsel %vm377, %v969, 0
        %v1030 = vsel %vm377, %v970, 0
        %v1033 = vsel %vm377, %v971, 0
        %v1036 = vsel %vm377, %v972, 0
        %v1039 = vsel %vm441, %v974, 0
        %1041 = vmatprep.subr.bf16.mxu0 0
        %1042 = vmatpush1.bf16.msra.mxu0 %v1039
        %1043 = vmatprep.subr.bf16.mxu0 0
        %1044 = vmatpush1.bf16.msra.mxu0 0
        %1045 = vmatprep.subr.bf16.mxu0 0
        %1046 = vmatpush1.bf16.msra.mxu0 0
        %1047 = vmatprep.subr.bf16.mxu0 0
        %1048 = vmatpush1.bf16.msra.mxu0 0
        %1049 = vmatprep.subr.bf16.mxu0 0
        %1050 = vmatpush1.bf16.msra.mxu0 0
        %1051 = vmatprep.subr.bf16.mxu0 0
        %1052 = vmatpush1.bf16.msra.mxu0 0
        %1053 = vmatprep.subr.bf16.mxu0 0
        %1054 = vmatpush1.bf16.msra.mxu0 0
        %1055 = vmatprep.subr.bf16.mxu0 0
        %1056 = vmatpush1.bf16.msra.mxu0 0
        %1057 = vmatprep.subr.bf16.mxu0 0
        %1058 = vmatpush1.bf16.msra.mxu0 0
        %1059 = vmatprep.subr.bf16.mxu0 0
        %1060 = vmatpush1.bf16.msra.mxu0 0
        %1061 = vmatprep.subr.bf16.mxu0 0
        %1062 = vmatpush1.bf16.msra.mxu0 0
        %1063 = vmatprep.subr.bf16.mxu0 0
        %1064 = vmatpush1.bf16.msra.mxu0 0
        %1065 = vmatprep.subr.bf16.mxu0 0
        %1066 = vmatpush1.bf16.msra.mxu0 0
        %1067 = vmatprep.subr.bf16.mxu0 0
        %1068 = vmatpush1.bf16.msra.mxu0 0
        %1069 = vmatprep.subr.bf16.mxu0 0
        %1070 = vmatpush1.bf16.msra.mxu0 0
        %1071 = vmatprep.subr.bf16.mxu0 0
        %1072 = vmatpush1.bf16.msra.mxu0 0
        %1073 = vmatprep.mubr.bf16.mxu0 0
        %1074 = vmatmul.mubr.bf16.gmra.mrb[0].mxu0 %v976
        %v1075 = vpop.f32.mrb[0].mxu0
        %v1076 = vadd.f32 0.0, %v1075
        %v1077 = vpop.f32.mrb[0].mxu0
        %v1078 = vpop.f32.mrb[0].mxu0
        %v1079 = vadd.f32 0.0, %v1078
        %v1080 = vpop.f32.mrb[0].mxu0
        %1081 = vmatprep.mubr.bf16.mxu0 0
        %1082 = vmatmul.mubr.bf16.gmra.mrb[0].mxu0 %v979
        %v1083 = vpop.f32.mrb[0].mxu0
        %v1084 = vadd.f32 0.0, %v1083
        %v1085 = vpop.f32.mrb[0].mxu0
        %v1086 = vpop.f32.mrb[0].mxu0
        %v1087 = vadd.f32 0.0, %v1086
        %v1088 = vpop.f32.mrb[0].mxu0
        %1089 = vmatprep.mubr.bf16.mxu0 0
        %1090 = vmatmul.mubr.bf16.gmra.mrb[0].mxu0 %v982
        %v1091 = vpop.f32.mrb[0].mxu0
        %v1092 = vadd.f32 0.0, %v1091
        %v1093 = vpop.f32.mrb[0].mxu0
        %v1094 = vpop.f32.mrb[0].mxu0
        %v1095 = vadd.f32 0.0, %v1094
        %v1096 = vpop.f32.mrb[0].mxu0
        %1097 = vmatprep.mubr.bf16.mxu0 0
        %1098 = vmatmul.mubr.bf16.gmra.mrb[0].mxu0 %v985
        %v1099 = vpop.f32.mrb[0].mxu0
        %v1100 = vadd.f32 0.0, %v1099
        %v1101 = vpop.f32.mrb[0].mxu0
        %v1102 = vpop.f32.mrb[0].mxu0
        %v1103 = vadd.f32 0.0, %v1102
        %v1104 = vpop.f32.mrb[0].mxu0
        %1105 = vmatprep.mubr.bf16.mxu0 0
        %1106 = vmatmul.mubr.bf16.gmra.mrb[0].mxu0 %v988
        %v1107 = vpop.f32.mrb[0].mxu0
        %v1108 = vadd.f32 0.0, %v1107
        %v1109 = vpop.f32.mrb[0].mxu0
        %v1110 = vpop.f32.mrb[0].mxu0
        %v1111 = vadd.f32 0.0, %v1110
        %v1112 = vpop.f32.mrb[0].mxu0
        %1113 = vmatprep.mubr.bf16.mxu0 0
        %1114 = vmatmul.mubr.bf16.gmra.mrb[0].mxu0 %v991
        %v1115 = vpop.f32.mrb[0].mxu0
        %v1116 = vadd.f32 0.0, %v1115
        %v1117 = vpop.f32.mrb[0].mxu0
        %v1118 = vpop.f32.mrb[0].mxu0
        %v1119 = vadd.f32 0.0, %v1118
        %v1120 = vpop.f32.mrb[0].mxu0
        %1121 = vmatprep.mubr.bf16.mxu0 0
        %1122 = vmatmul.mubr.bf16.gmra.mrb[0].mxu0 %v994
        %v1123 = vpop.f32.mrb[0].mxu0
        %v1124 = vadd.f32 0.0, %v1123
        %v1125 = vpop.f32.mrb[0].mxu0
        %v1126 = vpop.f32.mrb[0].mxu0
        %v1127 = vadd.f32 0.0, %v1126
        %v1128 = vpop.f32.mrb[0].mxu0
        %1129 = vmatprep.mubr.bf16.mxu0 0
        %1130 = vmatmul.mubr.bf16.gmra.mrb[0].mxu0 %v997
        %v1131 = vpop.f32.mrb[0].mxu0
        %v1132 = vadd.f32 0.0, %v1131
        %v1133 = vpop.f32.mrb[0].mxu0
        %v1134 = vpop.f32.mrb[0].mxu0
        %v1135 = vadd.f32 0.0, %v1134
        %v1136 = vpop.f32.mrb[0].mxu0
        %1137 = vmatprep.mubr.bf16.mxu0 0
        %1138 = vmatmul.mubr.bf16.gmra.mrb[0].mxu0 %v1000
        %v1139 = vpop.f32.mrb[0].mxu0
        %v1140 = vadd.f32 0.0, %v1139
        %v1141 = vpop.f32.mrb[0].mxu0
        %v1142 = vpop.f32.mrb[0].mxu0
        %v1143 = vadd.f32 0.0, %v1142
        %v1144 = vpop.f32.mrb[0].mxu0
        %1145 = vmatprep.mubr.bf16.mxu0 0
        %1146 = vmatmul.mubr.bf16.gmra.mrb[0].mxu0 %v1003
        %v1147 = vpop.f32.mrb[0].mxu0
        %v1148 = vadd.f32 0.0, %v1147
        %v1149 = vpop.f32.mrb[0].mxu0
        %v1150 = vpop.f32.mrb[0].mxu0
        %v1151 = vadd.f32 0.0, %v1150
        %v1152 = vpop.f32.mrb[0].mxu0
        %1153 = vmatprep.mubr.bf16.mxu0 0
        %1154 = vmatmul.mubr.bf16.gmra.mrb[0].mxu0 %v1006
        %v1155 = vpop.f32.mrb[0].mxu0
        %v1156 = vadd.f32 0.0, %v1155
        %v1157 = vpop.f32.mrb[0].mxu0
        %v1158 = vpop.f32.mrb[0].mxu0
        %v1159 = vadd.f32 0.0, %v1158
        %v1160 = vpop.f32.mrb[0].mxu0
        %1161 = vmatprep.mubr.bf16.mxu0 0
        %1162 = vmatmul.mubr.bf16.gmra.mrb[0].mxu0 %v1009
        %v1163 = vpop.f32.mrb[0].mxu0
        %v1164 = vadd.f32 0.0, %v1163
        %v1165 = vpop.f32.mrb[0].mxu0
        %v1166 = vpop.f32.mrb[0].mxu0
        %v1167 = vadd.f32 0.0, %v1166
        %v1168 = vpop.f32.mrb[0].mxu0
        %1169 = vmatprep.mubr.bf16.mxu0 0
        %1170 = vmatmul.mubr.bf16.gmra.mrb[0].mxu0 %v1012
        %v1171 = vpop.f32.mrb[0].mxu0
        %v1172 = vadd.f32 0.0, %v1171
        %v1173 = vpop.f32.mrb[0].mxu0
        %v1174 = vpop.f32.mrb[0].mxu0
        %v1175 = vadd.f32 0.0, %v1174
        %v1176 = vpop.f32.mrb[0].mxu0
        %1177 = vmatprep.mubr.bf16.mxu0 0
        %1178 = vmatmul.mubr.bf16.gmra.mrb[0].mxu0 %v1015
        %v1179 = vpop.f32.mrb[0].mxu0
        %v1180 = vadd.f32 0.0, %v1179
        %v1181 = vpop.f32.mrb[0].mxu0
        %v1182 = vpop.f32.mrb[0].mxu0
        %v1183 = vadd.f32 0.0, %v1182
        %v1184 = vpop.f32.mrb[0].mxu0
        %1185 = vmatprep.mubr.bf16.mxu0 0
        %1186 = vmatmul.mubr.bf16.gmra.mrb[0].mxu0 %v1018
        %v1187 = vpop.f32.mrb[0].mxu0
        %v1188 = vadd.f32 0.0, %v1187
        %v1189 = vpop.f32.mrb[0].mxu0
        %v1190 = vpop.f32.mrb[0].mxu0
        %v1191 = vadd.f32 0.0, %v1190
        %v1192 = vpop.f32.mrb[0].mxu0
        %1193 = vmatprep.mubr.bf16.mxu0 0
        %1194 = vmatmul.mubr.bf16.gmra.mrb[0].mxu0 %v1021
        %v1195 = vpop.f32.mrb[0].mxu0
        %v1196 = vadd.f32 0.0, %v1195
        %v1197 = vpop.f32.mrb[0].mxu0
        %v1198 = vpop.f32.mrb[0].mxu0
        %v1199 = vadd.f32 0.0, %v1198
        %v1200 = vpop.f32.mrb[0].mxu0
        %1201 = vmatprep.mubr.bf16.mxu0 0
        %1202 = vmatmul.mubr.bf16.gmra.mrb[0].mxu0 %v1024
        %v1203 = vpop.f32.mrb[0].mxu0
        %v1204 = vadd.f32 0.0, %v1203
        %v1205 = vpop.f32.mrb[0].mxu0
        %v1206 = vpop.f32.mrb[0].mxu0
        %v1207 = vadd.f32 0.0, %v1206
        %v1208 = vpop.f32.mrb[0].mxu0
        %1209 = vmatprep.mubr.bf16.mxu0 0
        %1210 = vmatmul.mubr.bf16.gmra.mrb[0].mxu0 %v1027
        %v1211 = vpop.f32.mrb[0].mxu0
        %v1212 = vadd.f32 0.0, %v1211
        %v1213 = vpop.f32.mrb[0].mxu0
        %v1214 = vpop.f32.mrb[0].mxu0
        %v1215 = vadd.f32 0.0, %v1214
        %v1216 = vpop.f32.mrb[0].mxu0
        %1217 = vmatprep.mubr.bf16.mxu0 0
        %1218 = vmatmul.mubr.bf16.gmra.mrb[0].mxu0 %v1030
        %v1219 = vpop.f32.mrb[0].mxu0
        %v1220 = vadd.f32 0.0, %v1219
        %v1221 = vpop.f32.mrb[0].mxu0
        %v1222 = vpop.f32.mrb[0].mxu0
        %v1223 = vadd.f32 0.0, %v1222
        %v1224 = vpop.f32.mrb[0].mxu0
        %1225 = vmatprep.mubr.bf16.mxu0 0
        %1226 = vmatmul.mubr.bf16.gmra.mrb[0].mxu0 %v1033
        %v1227 = vpop.f32.mrb[0].mxu0
        %v1228 = vadd.f32 0.0, %v1227
        %v1229 = vpop.f32.mrb[0].mxu0
        %v1230 = vpop.f32.mrb[0].mxu0
        %v1231 = vadd.f32 0.0, %v1230
        %v1232 = vpop.f32.mrb[0].mxu0
        %1233 = vmatprep.mubr.bf16.mxu0 0
        %1234 = vmatmul.mubr.bf16.gmra.mrb[0].mxu0 %v1036
        %v1235 = vpop.f32.mrb[0].mxu0
        %v1236 = vadd.f32 0.0, %v1235
        %v1237 = vpop.f32.mrb[0].mxu0
        %v1238 = vpop.f32.mrb[0].mxu0
        %v1239 = vpop.f32.mrb[0].mxu0
        %1240 = vdwg.mxu0
        %v1241 = vadd.f32 %v746, %v1076
        %v1242 = vadd.f32 %v749, %v1079
        %v1243 = vadd.f32 %v754, %v1084
        %v1244 = vadd.f32 %v757, %v1087
        %v1245 = vadd.f32 %v762, %v1092
        %v1246 = vadd.f32 %v765, %v1095
        %v1247 = vadd.f32 %v770, %v1100
        %v1248 = vadd.f32 %v773, %v1103
        %v1249 = vadd.f32 %v778, %v1108
        %v1250 = vadd.f32 %v781, %v1111
        %v1251 = vadd.f32 %v786, %v1116
        %v1252 = vadd.f32 %v789, %v1119
        %v1253 = vadd.f32 %v794, %v1124
        %v1254 = vadd.f32 %v797, %v1127
        %v1255 = vadd.f32 %v802, %v1132
        %v1256 = vadd.f32 %v805, %v1135
        %v1257 = vadd.f32 %v810, %v1140
        %v1258 = vadd.f32 %v813, %v1143
        %v1259 = vadd.f32 %v818, %v1148
        %v1260 = vadd.f32 %v821, %v1151
        %v1261 = vadd.f32 %v826, %v1156
        %v1262 = vadd.f32 %v829, %v1159
        %v1263 = vadd.f32 %v834, %v1164
        %v1264 = vadd.f32 %v837, %v1167
        %v1265 = vadd.f32 %v842, %v1172
        %v1266 = vadd.f32 %v845, %v1175
        %v1267 = vadd.f32 %v850, %v1180
        %v1268 = vadd.f32 %v853, %v1183
        %v1269 = vadd.f32 %v858, %v1188
        %v1270 = vadd.f32 %v861, %v1191
        %v1271 = vadd.f32 %v866, %v1196
        %v1272 = vadd.f32 %v869, %v1199
        %v1273 = vadd.f32 %v874, %v1204
        %v1274 = vadd.f32 %v877, %v1207
        %v1275 = vadd.f32 %v882, %v1212
        %v1276 = vadd.f32 %v885, %v1215
        %v1277 = vadd.f32 %v890, %v1220
        %v1278 = vadd.f32 %v893, %v1223
        %v1279 = vadd.f32 %v898, %v1228
        %v1280 = vadd.f32 %v901, %v1231
        %v1281 = vadd.f32 %v906, %v1236
        %v1282 = vld [vmem:[%s248 + $0x12] sm:$0xff]
        %v1283 = vld [vmem:[%s248 + $0x1a] sm:$0xff]
        %v1284 = vld [vmem:[%s248 + $0x22] sm:$0xff]
        %v1285 = vld [vmem:[%s248 + $0x2a] sm:$0xff]
        %v1286 = vld [vmem:[%s248 + $0x32] sm:$0xff]
        %v1287 = vld [vmem:[%s248 + $0x3a] sm:$0xff]
        %v1288 = vld [vmem:[%s248 + $0x42] sm:$0xff]
        %v1289 = vld [vmem:[%s248 + $0x4a] sm:$0xff]
        %v1290 = vld [vmem:[%s248 + $0x52] sm:$0xff]
        %v1291 = vld [vmem:[%s248 + $0x5a] sm:$0xff]
        %v1292 = vld [vmem:[%s248 + $0x62] sm:$0xff]
        %v1293 = vld [vmem:[%s248 + $0x6a] sm:$0xff]
        %v1294 = vld [vmem:[%s248 + $0x72] sm:$0xff]
        %v1295 = vld [vmem:[%s248 + $0x7a] sm:$0xff]
        %v1296 = vld [vmem:[%s248 + $0x82] sm:$0xff]
        %v1297 = vld [vmem:[%s248 + $0x8a] sm:$0xff]
        %v1298 = vld [vmem:[%s248 + $0x92] sm:$0xff]
        %v1299 = vld [vmem:[%s248 + $0x9a] sm:$0xff]
        %v1300 = vld [vmem:[%s248 + $0xa2] sm:$0xff]
        %v1301 = vld [vmem:[%s248 + $0xaa] sm:$0xff]
        %v1302 = vld [vmem:[%s248 + $0xb2] sm:$0xff]
        %v1303 = vld [vmem:[%s248 + $0xba] sm:$0xff]
        %v1304 = vld [vmem:[%s248 + $0xc2] sm:$0xff]
        %v1305 = vld [vmem:[%s248 + $0xca] sm:$0xff]
        %v1306 = vld [vmem:[%s248 + $0xd2] sm:$0xff]
        %v1307 = vld [vmem:[%s248 + $0xda] sm:$0xff]
        %v1308 = vld [vmem:[%s248 + $0xe2] sm:$0xff]
        %v1309 = vld [vmem:[%s248 + $0xea] sm:$0xff]
        %v1310 = vld [vmem:[%s248 + $0xf2] sm:$0xff]
        %v1311 = vld [vmem:[%s248 + $0xfa] sm:$0xff]
        %v1312 = vld [vmem:[%s248 + $0x102] sm:$0xff]
        %v1313 = vld [vmem:[%s248 + $0x10a] sm:$0xff]
        %v1314 = vld [vmem:[%s248 + $0x112] sm:$0xff]
        %v1315 = vld [vmem:[%s248 + $0x11a] sm:$0xff]
        %v1316 = vld [vmem:[%s248 + $0x122] sm:$0xff]
        %v1317 = vld [vmem:[%s248 + $0x12a] sm:$0xff]
        %v1318 = vld [vmem:[%s248 + $0x132] sm:$0xff]
        %v1319 = vld [vmem:[%s248 + $0x13a] sm:$0xff]
        %v1320 = vld [vmem:[%s248 + $0x142] sm:$0xff]
        %v1321 = vld [vmem:[%s248 + $0x14a] sm:$0xff]
        %v1322 = vld [vmem:[%s248 + $0x152] sm:$0xf]
        %v1323 = vpack.c.bf16 %v1283, %v1282
        %v1324 = vpack.c.bf16 %v1285, %v1284
        %v1325 = vpack.c.bf16 %v1287, %v1286
        %v1326 = vpack.c.bf16 %v1289, %v1288
        %v1327 = vpack.c.bf16 %v1291, %v1290
        %v1328 = vpack.c.bf16 %v1293, %v1292
        %v1329 = vpack.c.bf16 %v1295, %v1294
        %v1330 = vpack.c.bf16 %v1297, %v1296
        %v1331 = vpack.c.bf16 %v1299, %v1298
        %v1332 = vpack.c.bf16 %v1301, %v1300
        %v1333 = vpack.c.bf16 %v1303, %v1302
        %v1334 = vpack.c.bf16 %v1305, %v1304
        %v1335 = vpack.c.bf16 %v1307, %v1306
        %v1336 = vpack.c.bf16 %v1309, %v1308
        %v1337 = vpack.c.bf16 %v1311, %v1310
        %v1338 = vpack.c.bf16 %v1313, %v1312
        %v1339 = vpack.c.bf16 %v1315, %v1314
        %v1340 = vpack.c.bf16 %v1317, %v1316
        %v1341 = vpack.c.bf16 %v1319, %v1318
        %v1342 = vpack.c.bf16 %v1321, %v1320
        %v1343 = vpack.c.bf16 %v1322, %v1322
        %s1344 = scalar_lea.vmem %s1, 6
        %v1345 = vld [vmem:[%s1344] sm:$0x3]
        %v1347 = vsel %vm377, %v1323, 0
        %v1350 = vsel %vm377, %v1324, 0
        %v1353 = vsel %vm377, %v1325, 0
        %v1356 = vsel %vm377, %v1326, 0
        %v1359 = vsel %vm377, %v1327, 0
        %v1362 = vsel %vm377, %v1328, 0
        %v1365 = vsel %vm377, %v1329, 0
        %v1368 = vsel %vm377, %v1330, 0
        %v1371 = vsel %vm377, %v1331, 0
        %v1374 = vsel %vm377, %v1332, 0
        %v1377 = vsel %vm377, %v1333, 0
        %v1380 = vsel %vm377, %v1334, 0
        %v1383 = vsel %vm377, %v1335, 0
        %v1386 = vsel %vm377, %v1336, 0
        %v1389 = vsel %vm377, %v1337, 0
        %v1392 = vsel %vm377, %v1338, 0
        %v1395 = vsel %vm377, %v1339, 0
        %v1398 = vsel %vm377, %v1340, 0
        %v1401 = vsel %vm377, %v1341, 0
        %v1404 = vsel %vm377, %v1342, 0
        %v1407 = vsel %vm377, %v1343, 0
        %v1410 = vsel %vm441, %v1345, 0
        %1412 = vmatprep.subr.bf16.mxu0 0
        %1413 = vmatpush1.bf16.msra.mxu0 %v1410
        %1414 = vmatprep.subr.bf16.mxu0 0
        %1415 = vmatpush1.bf16.msra.mxu0 0
        %1416 = vmatprep.subr.bf16.mxu0 0
        %1417 = vmatpush1.bf16.msra.mxu0 0
        %1418 = vmatprep.subr.bf16.mxu0 0
        %1419 = vmatpush1.bf16.msra.mxu0 0
        %1420 = vmatprep.subr.bf16.mxu0 0
        %1421 = vmatpush1.bf16.msra.mxu0 0
        %1422 = vmatprep.subr.bf16.mxu0 0
        %1423 = vmatpush1.bf16.msra.mxu0 0
        %1424 = vmatprep.subr.bf16.mxu0 0
        %1425 = vmatpush1.bf16.msra.mxu0 0
        %1426 = vmatprep.subr.bf16.mxu0 0
        %1427 = vmatpush1.bf16.msra.mxu0 0
        %1428 = vmatprep.subr.bf16.mxu0 0
        %1429 = vmatpush1.bf16.msra.mxu0 0
        %1430 = vmatprep.subr.bf16.mxu0 0
        %1431 = vmatpush1.bf16.msra.mxu0 0
        %1432 = vmatprep.subr.bf16.mxu0 0
        %1433 = vmatpush1.bf16.msra.mxu0 0
        %1434 = vmatprep.subr.bf16.mxu0 0
        %1435 = vmatpush1.bf16.msra.mxu0 0
        %1436 = vmatprep.subr.bf16.mxu0 0
        %1437 = vmatpush1.bf16.msra.mxu0 0
        %1438 = vmatprep.subr.bf16.mxu0 0
        %1439 = vmatpush1.bf16.msra.mxu0 0
        %1440 = vmatprep.subr.bf16.mxu0 0
        %1441 = vmatpush1.bf16.msra.mxu0 0
        %1442 = vmatprep.subr.bf16.mxu0 0
        %1443 = vmatpush1.bf16.msra.mxu0 0
        %1444 = vmatprep.mubr.bf16.mxu0 0
        %1445 = vmatmul.mubr.bf16.gmra.mrb[0].mxu0 %v1347
        %v1446 = vpop.f32.mrb[0].mxu0
        %v1447 = vadd.f32 0.0, %v1446
        %v1448 = vpop.f32.mrb[0].mxu0
        %v1449 = vpop.f32.mrb[0].mxu0
        %v1450 = vadd.f32 0.0, %v1449
        %v1451 = vpop.f32.mrb[0].mxu0
        %1452 = vmatprep.mubr.bf16.mxu0 0
        %1453 = vmatmul.mubr.bf16.gmra.mrb[0].mxu0 %v1350
        %v1454 = vpop.f32.mrb[0].mxu0
        %v1455 = vadd.f32 0.0, %v1454
        %v1456 = vpop.f32.mrb[0].mxu0
        %v1457 = vpop.f32.mrb[0].mxu0
        %v1458 = vadd.f32 0.0, %v1457
        %v1459 = vpop.f32.mrb[0].mxu0
        %1460 = vmatprep.mubr.bf16.mxu0 0
        %1461 = vmatmul.mubr.bf16.gmra.mrb[0].mxu0 %v1353
        %v1462 = vpop.f32.mrb[0].mxu0
        %v1463 = vadd.f32 0.0, %v1462
        %v1464 = vpop.f32.mrb[0].mxu0
        %v1465 = vpop.f32.mrb[0].mxu0
        %v1466 = vadd.f32 0.0, %v1465
        %v1467 = vpop.f32.mrb[0].mxu0
        %1468 = vmatprep.mubr.bf16.mxu0 0
        %1469 = vmatmul.mubr.bf16.gmra.mrb[0].mxu0 %v1356
        %v1470 = vpop.f32.mrb[0].mxu0
        %v1471 = vadd.f32 0.0, %v1470
        %v1472 = vpop.f32.mrb[0].mxu0
        %v1473 = vpop.f32.mrb[0].mxu0
        %v1474 = vadd.f32 0.0, %v1473
        %v1475 = vpop.f32.mrb[0].mxu0
        %1476 = vmatprep.mubr.bf16.mxu0 0
        %1477 = vmatmul.mubr.bf16.gmra.mrb[0].mxu0 %v1359
        %v1478 = vpop.f32.mrb[0].mxu0
        %v1479 = vadd.f32 0.0, %v1478
        %v1480 = vpop.f32.mrb[0].mxu0
        %v1481 = vpop.f32.mrb[0].mxu0
        %v1482 = vadd.f32 0.0, %v1481
        %v1483 = vpop.f32.mrb[0].mxu0
        %1484 = vmatprep.mubr.bf16.mxu0 0
        %1485 = vmatmul.mubr.bf16.gmra.mrb[0].mxu0 %v1362
        %v1486 = vpop.f32.mrb[0].mxu0
        %v1487 = vadd.f32 0.0, %v1486
        %v1488 = vpop.f32.mrb[0].mxu0
        %v1489 = vpop.f32.mrb[0].mxu0
        %v1490 = vadd.f32 0.0, %v1489
        %v1491 = vpop.f32.mrb[0].mxu0
        %1492 = vmatprep.mubr.bf16.mxu0 0
        %1493 = vmatmul.mubr.bf16.gmra.mrb[0].mxu0 %v1365
        %v1494 = vpop.f32.mrb[0].mxu0
        %v1495 = vadd.f32 0.0, %v1494
        %v1496 = vpop.f32.mrb[0].mxu0
        %v1497 = vpop.f32.mrb[0].mxu0
        %v1498 = vadd.f32 0.0, %v1497
        %v1499 = vpop.f32.mrb[0].mxu0
        %1500 = vmatprep.mubr.bf16.mxu0 0
        %1501 = vmatmul.mubr.bf16.gmra.mrb[0].mxu0 %v1368
        %v1502 = vpop.f32.mrb[0].mxu0
        %v1503 = vadd.f32 0.0, %v1502
        %v1504 = vpop.f32.mrb[0].mxu0
        %v1505 = vpop.f32.mrb[0].mxu0
        %v1506 = vadd.f32 0.0, %v1505
        %v1507 = vpop.f32.mrb[0].mxu0
        %1508 = vmatprep.mubr.bf16.mxu0 0
        %1509 = vmatmul.mubr.bf16.gmra.mrb[0].mxu0 %v1371
        %v1510 = vpop.f32.mrb[0].mxu0
        %v1511 = vadd.f32 0.0, %v1510
        %v1512 = vpop.f32.mrb[0].mxu0
        %v1513 = vpop.f32.mrb[0].mxu0
        %v1514 = vadd.f32 0.0, %v1513
        %v1515 = vpop.f32.mrb[0].mxu0
        %1516 = vmatprep.mubr.bf16.mxu0 0
        %1517 = vmatmul.mubr.bf16.gmra.mrb[0].mxu0 %v1374
        %v1518 = vpop.f32.mrb[0].mxu0
        %v1519 = vadd.f32 0.0, %v1518
        %v1520 = vpop.f32.mrb[0].mxu0
        %v1521 = vpop.f32.mrb[0].mxu0
        %v1522 = vadd.f32 0.0, %v1521
        %v1523 = vpop.f32.mrb[0].mxu0
        %1524 = vmatprep.mubr.bf16.mxu0 0
        %1525 = vmatmul.mubr.bf16.gmra.mrb[0].mxu0 %v1377
        %v1526 = vpop.f32.mrb[0].mxu0
        %v1527 = vadd.f32 0.0, %v1526
        %v1528 = vpop.f32.mrb[0].mxu0
        %v1529 = vpop.f32.mrb[0].mxu0
        %v1530 = vadd.f32 0.0, %v1529
        %v1531 = vpop.f32.mrb[0].mxu0
        %1532 = vmatprep.mubr.bf16.mxu0 0
        %1533 = vmatmul.mubr.bf16.gmra.mrb[0].mxu0 %v1380
        %v1534 = vpop.f32.mrb[0].mxu0
        %v1535 = vadd.f32 0.0, %v1534
        %v1536 = vpop.f32.mrb[0].mxu0
        %v1537 = vpop.f32.mrb[0].mxu0
        %v1538 = vadd.f32 0.0, %v1537
        %v1539 = vpop.f32.mrb[0].mxu0
        %1540 = vmatprep.mubr.bf16.mxu0 0
        %1541 = vmatmul.mubr.bf16.gmra.mrb[0].mxu0 %v1383
        %v1542 = vpop.f32.mrb[0].mxu0
        %v1543 = vadd.f32 0.0, %v1542
        %v1544 = vpop.f32.mrb[0].mxu0
        %v1545 = vpop.f32.mrb[0].mxu0
        %v1546 = vadd.f32 0.0, %v1545
        %v1547 = vpop.f32.mrb[0].mxu0
        %1548 = vmatprep.mubr.bf16.mxu0 0
        %1549 = vmatmul.mubr.bf16.gmra.mrb[0].mxu0 %v1386
        %v1550 = vpop.f32.mrb[0].mxu0
        %v1551 = vadd.f32 0.0, %v1550
        %v1552 = vpop.f32.mrb[0].mxu0
        %v1553 = vpop.f32.mrb[0].mxu0
        %v1554 = vadd.f32 0.0, %v1553
        %v1555 = vpop.f32.mrb[0].mxu0
        %1556 = vmatprep.mubr.bf16.mxu0 0
        %1557 = vmatmul.mubr.bf16.gmra.mrb[0].mxu0 %v1389
        %v1558 = vpop.f32.mrb[0].mxu0
        %v1559 = vadd.f32 0.0, %v1558
        %v1560 = vpop.f32.mrb[0].mxu0
        %v1561 = vpop.f32.mrb[0].mxu0
        %v1562 = vadd.f32 0.0, %v1561
        %v1563 = vpop.f32.mrb[0].mxu0
        %1564 = vmatprep.mubr.bf16.mxu0 0
        %1565 = vmatmul.mubr.bf16.gmra.mrb[0].mxu0 %v1392
        %v1566 = vpop.f32.mrb[0].mxu0
        %v1567 = vadd.f32 0.0, %v1566
        %v1568 = vpop.f32.mrb[0].mxu0
        %v1569 = vpop.f32.mrb[0].mxu0
        %v1570 = vadd.f32 0.0, %v1569
        %v1571 = vpop.f32.mrb[0].mxu0
        %1572 = vmatprep.mubr.bf16.mxu0 0
        %1573 = vmatmul.mubr.bf16.gmra.mrb[0].mxu0 %v1395
        %v1574 = vpop.f32.mrb[0].mxu0
        %v1575 = vadd.f32 0.0, %v1574
        %v1576 = vpop.f32.mrb[0].mxu0
        %v1577 = vpop.f32.mrb[0].mxu0
        %v1578 = vadd.f32 0.0, %v1577
        %v1579 = vpop.f32.mrb[0].mxu0
        %1580 = vmatprep.mubr.bf16.mxu0 0
        %1581 = vmatmul.mubr.bf16.gmra.mrb[0].mxu0 %v1398
        %v1582 = vpop.f32.mrb[0].mxu0
        %v1583 = vadd.f32 0.0, %v1582
        %v1584 = vpop.f32.mrb[0].mxu0
        %v1585 = vpop.f32.mrb[0].mxu0
        %v1586 = vadd.f32 0.0, %v1585
        %v1587 = vpop.f32.mrb[0].mxu0
        %1588 = vmatprep.mubr.bf16.mxu0 0
        %1589 = vmatmul.mubr.bf16.gmra.mrb[0].mxu0 %v1401
        %v1590 = vpop.f32.mrb[0].mxu0
        %v1591 = vadd.f32 0.0, %v1590
        %v1592 = vpop.f32.mrb[0].mxu0
        %v1593 = vpop.f32.mrb[0].mxu0
        %v1594 = vadd.f32 0.0, %v1593
        %v1595 = vpop.f32.mrb[0].mxu0
        %1596 = vmatprep.mubr.bf16.mxu0 0
        %1597 = vmatmul.mubr.bf16.gmra.mrb[0].mxu0 %v1404
        %v1598 = vpop.f32.mrb[0].mxu0
        %v1599 = vadd.f32 0.0, %v1598
        %v1600 = vpop.f32.mrb[0].mxu0
        %v1601 = vpop.f32.mrb[0].mxu0
        %v1602 = vadd.f32 0.0, %v1601
        %v1603 = vpop.f32.mrb[0].mxu0
        %1604 = vmatprep.mubr.bf16.mxu0 0
        %1605 = vmatmul.mubr.bf16.gmra.mrb[0].mxu0 %v1407
        %v1606 = vpop.f32.mrb[0].mxu0
        %v1607 = vadd.f32 0.0, %v1606
        %v1608 = vpop.f32.mrb[0].mxu0
        %v1609 = vpop.f32.mrb[0].mxu0
        %v1610 = vpop.f32.mrb[0].mxu0
        %1611 = vdwg.mxu0
        %v1612 = vadd.f32 %v1241, %v1447
        %v1613 = vadd.f32 %v1242, %v1450
        %v1614 = vadd.f32 %v1243, %v1455
        %v1615 = vadd.f32 %v1244, %v1458
        %v1616 = vadd.f32 %v1245, %v1463
        %v1617 = vadd.f32 %v1246, %v1466
        %v1618 = vadd.f32 %v1247, %v1471
        %v1619 = vadd.f32 %v1248, %v1474
        %v1620 = vadd.f32 %v1249, %v1479
        %v1621 = vadd.f32 %v1250, %v1482
        %v1622 = vadd.f32 %v1251, %v1487
        %v1623 = vadd.f32 %v1252, %v1490
        %v1624 = vadd.f32 %v1253, %v1495
        %v1625 = vadd.f32 %v1254, %v1498
        %v1626 = vadd.f32 %v1255, %v1503
        %v1627 = vadd.f32 %v1256, %v1506
        %v1628 = vadd.f32 %v1257, %v1511
        %v1629 = vadd.f32 %v1258, %v1514
        %v1630 = vadd.f32 %v1259, %v1519
        %v1631 = vadd.f32 %v1260, %v1522
        %v1632 = vadd.f32 %v1261, %v1527
        %v1633 = vadd.f32 %v1262, %v1530
        %v1634 = vadd.f32 %v1263, %v1535
        %v1635 = vadd.f32 %v1264, %v1538
        %v1636 = vadd.f32 %v1265, %v1543
        %v1637 = vadd.f32 %v1266, %v1546
        %v1638 = vadd.f32 %v1267, %v1551
        %v1639 = vadd.f32 %v1268, %v1554
        %v1640 = vadd.f32 %v1269, %v1559
        %v1641 = vadd.f32 %v1270, %v1562
        %v1642 = vadd.f32 %v1271, %v1567
        %v1643 = vadd.f32 %v1272, %v1570
        %v1644 = vadd.f32 %v1273, %v1575
        %v1645 = vadd.f32 %v1274, %v1578
        %v1646 = vadd.f32 %v1275, %v1583
        %v1647 = vadd.f32 %v1276, %v1586
        %v1648 = vadd.f32 %v1277, %v1591
        %v1649 = vadd.f32 %v1278, %v1594
        %v1650 = vadd.f32 %v1279, %v1599
        %v1651 = vadd.f32 %v1280, %v1602
        %v1652 = vadd.f32 %v1281, %v1607
        %v1653 = vld [vmem:[%s248 + $0x13] sm:$0xff]
        %v1654 = vld [vmem:[%s248 + $0x1b] sm:$0xff]
        %v1655 = vld [vmem:[%s248 + $0x23] sm:$0xff]
        %v1656 = vld [vmem:[%s248 + $0x2b] sm:$0xff]
        %v1657 = vld [vmem:[%s248 + $0x33] sm:$0xff]
        %v1658 = vld [vmem:[%s248 + $0x3b] sm:$0xff]
        %v1659 = vld [vmem:[%s248 + $0x43] sm:$0xff]
        %v1660 = vld [vmem:[%s248 + $0x4b] sm:$0xff]
        %v1661 = vld [vmem:[%s248 + $0x53] sm:$0xff]
        %v1662 = vld [vmem:[%s248 + $0x5b] sm:$0xff]
        %v1663 = vld [vmem:[%s248 + $0x63] sm:$0xff]
        %v1664 = vld [vmem:[%s248 + $0x6b] sm:$0xff]
        %v1665 = vld [vmem:[%s248 + $0x73] sm:$0xff]
        %v1666 = vld [vmem:[%s248 + $0x7b] sm:$0xff]
        %v1667 = vld [vmem:[%s248 + $0x83] sm:$0xff]
        %v1668 = vld [vmem:[%s248 + $0x8b] sm:$0xff]
        %v1669 = vld [vmem:[%s248 + $0x93] sm:$0xff]
        %v1670 = vld [vmem:[%s248 + $0x9b] sm:$0xff]
        %v1671 = vld [vmem:[%s248 + $0xa3] sm:$0xff]
        %v1672 = vld [vmem:[%s248 + $0xab] sm:$0xff]
        %v1673 = vld [vmem:[%s248 + $0xb3] sm:$0xff]
        %v1674 = vld [vmem:[%s248 + $0xbb] sm:$0xff]
        %v1675 = vld [vmem:[%s248 + $0xc3] sm:$0xff]
        %v1676 = vld [vmem:[%s248 + $0xcb] sm:$0xff]
        %v1677 = vld [vmem:[%s248 + $0xd3] sm:$0xff]
        %v1678 = vld [vmem:[%s248 + $0xdb] sm:$0xff]
        %v1679 = vld [vmem:[%s248 + $0xe3] sm:$0xff]
        %v1680 = vld [vmem:[%s248 + $0xeb] sm:$0xff]
        %v1681 = vld [vmem:[%s248 + $0xf3] sm:$0xff]
        %v1682 = vld [vmem:[%s248 + $0xfb] sm:$0xff]
        %v1683 = vld [vmem:[%s248 + $0x103] sm:$0xff]
        %v1684 = vld [vmem:[%s248 + $0x10b] sm:$0xff]
        %v1685 = vld [vmem:[%s248 + $0x113] sm:$0xff]
        %v1686 = vld [vmem:[%s248 + $0x11b] sm:$0xff]
        %v1687 = vld [vmem:[%s248 + $0x123] sm:$0xff]
        %v1688 = vld [vmem:[%s248 + $0x12b] sm:$0xff]
        %v1689 = vld [vmem:[%s248 + $0x133] sm:$0xff]
        %v1690 = vld [vmem:[%s248 + $0x13b] sm:$0xff]
        %v1691 = vld [vmem:[%s248 + $0x143] sm:$0xff]
        %v1692 = vld [vmem:[%s248 + $0x14b] sm:$0xff]
        %v1693 = vld [vmem:[%s248 + $0x153] sm:$0xf]
        %v1694 = vpack.c.bf16 %v1654, %v1653
        %v1695 = vpack.c.bf16 %v1656, %v1655
        %v1696 = vpack.c.bf16 %v1658, %v1657
        %v1697 = vpack.c.bf16 %v1660, %v1659
        %v1698 = vpack.c.bf16 %v1662, %v1661
        %v1699 = vpack.c.bf16 %v1664, %v1663
        %v1700 = vpack.c.bf16 %v1666, %v1665
        %v1701 = vpack.c.bf16 %v1668, %v1667
        %v1702 = vpack.c.bf16 %v1670, %v1669
        %v1703 = vpack.c.bf16 %v1672, %v1671
        %v1704 = vpack.c.bf16 %v1674, %v1673
        %v1705 = vpack.c.bf16 %v1676, %v1675
        %v1706 = vpack.c.bf16 %v1678, %v1677
        %v1707 = vpack.c.bf16 %v1680, %v1679
        %v1708 = vpack.c.bf16 %v1682, %v1681
        %v1709 = vpack.c.bf16 %v1684, %v1683
        %v1710 = vpack.c.bf16 %v1686, %v1685
        %v1711 = vpack.c.bf16 %v1688, %v1687
        %v1712 = vpack.c.bf16 %v1690, %v1689
        %v1713 = vpack.c.bf16 %v1692, %v1691
        %v1714 = vpack.c.bf16 %v1693, %v1693
        %s1715 = scalar_lea.vmem %s1, 8
        %v1716 = vld [vmem:[%s1715] sm:$0x3]
        %v1718 = vsel %vm377, %v1694, 0
        %v1721 = vsel %vm377, %v1695, 0
        %v1724 = vsel %vm377, %v1696, 0
        %v1727 = vsel %vm377, %v1697, 0
        %v1730 = vsel %vm377, %v1698, 0
        %v1733 = vsel %vm377, %v1699, 0
        %v1736 = vsel %vm377, %v1700, 0
        %v1739 = vsel %vm377, %v1701, 0
        %v1742 = vsel %vm377, %v1702, 0
        %v1745 = vsel %vm377, %v1703, 0
        %v1748 = vsel %vm377, %v1704, 0
        %v1751 = vsel %vm377, %v1705, 0
        %v1754 = vsel %vm377, %v1706, 0
        %v1757 = vsel %vm377, %v1707, 0
        %v1760 = vsel %vm377, %v1708, 0
        %v1763 = vsel %vm377, %v1709, 0
        %v1766 = vsel %vm377, %v1710, 0
        %v1769 = vsel %vm377, %v1711, 0
        %v1772 = vsel %vm377, %v1712, 0
        %v1775 = vsel %vm377, %v1713, 0
        %v1778 = vsel %vm377, %v1714, 0
        %v1781 = vsel %vm441, %v1716, 0
        %1783 = vmatprep.subr.bf16.mxu0 0
        %1784 = vmatpush1.bf16.msra.mxu0 %v1781
        %1785 = vmatprep.subr.bf16.mxu0 0
        %1786 = vmatpush1.bf16.msra.mxu0 0
        %1787 = vmatprep.subr.bf16.mxu0 0
        %1788 = vmatpush1.bf16.msra.mxu0 0
        %1789 = vmatprep.subr.bf16.mxu0 0
        %1790 = vmatpush1.bf16.msra.mxu0 0
        %1791 = vmatprep.subr.bf16.mxu0 0
        %1792 = vmatpush1.bf16.msra.mxu0 0
        %1793 = vmatprep.subr.bf16.mxu0 0
        %1794 = vmatpush1.bf16.msra.mxu0 0
        %1795 = vmatprep.subr.bf16.mxu0 0
        %1796 = vmatpush1.bf16.msra.mxu0 0
        %1797 = vmatprep.subr.bf16.mxu0 0
        %1798 = vmatpush1.bf16.msra.mxu0 0
        %1799 = vmatprep.subr.bf16.mxu0 0
        %1800 = vmatpush1.bf16.msra.mxu0 0
        %1801 = vmatprep.subr.bf16.mxu0 0
        %1802 = vmatpush1.bf16.msra.mxu0 0
        %1803 = vmatprep.subr.bf16.mxu0 0
        %1804 = vmatpush1.bf16.msra.mxu0 0
        %1805 = vmatprep.subr.bf16.mxu0 0
        %1806 = vmatpush1.bf16.msra.mxu0 0
        %1807 = vmatprep.subr.bf16.mxu0 0
        %1808 = vmatpush1.bf16.msra.mxu0 0
        %1809 = vmatprep.subr.bf16.mxu0 0
        %1810 = vmatpush1.bf16.msra.mxu0 0
        %1811 = vmatprep.subr.bf16.mxu0 0
        %1812 = vmatpush1.bf16.msra.mxu0 0
        %1813 = vmatprep.subr.bf16.mxu0 0
        %1814 = vmatpush1.bf16.msra.mxu0 0
        %1815 = vmatprep.mubr.bf16.mxu0 0
        %1816 = vmatmul.mubr.bf16.gmra.mrb[0].mxu0 %v1718
        %v1817 = vpop.f32.mrb[0].mxu0
        %v1818 = vadd.f32 0.0, %v1817
        %v1819 = vpop.f32.mrb[0].mxu0
        %v1820 = vpop.f32.mrb[0].mxu0
        %v1821 = vadd.f32 0.0, %v1820
        %v1822 = vpop.f32.mrb[0].mxu0
        %1823 = vmatprep.mubr.bf16.mxu0 0
        %1824 = vmatmul.mubr.bf16.gmra.mrb[0].mxu0 %v1721
        %v1825 = vpop.f32.mrb[0].mxu0
        %v1826 = vadd.f32 0.0, %v1825
        %v1827 = vpop.f32.mrb[0].mxu0
        %v1828 = vpop.f32.mrb[0].mxu0
        %v1829 = vadd.f32 0.0, %v1828
        %v1830 = vpop.f32.mrb[0].mxu0
        %1831 = vmatprep.mubr.bf16.mxu0 0
        %1832 = vmatmul.mubr.bf16.gmra.mrb[0].mxu0 %v1724
        %v1833 = vpop.f32.mrb[0].mxu0
        %v1834 = vadd.f32 0.0, %v1833
        %v1835 = vpop.f32.mrb[0].mxu0
        %v1836 = vpop.f32.mrb[0].mxu0
        %v1837 = vadd.f32 0.0, %v1836
        %v1838 = vpop.f32.mrb[0].mxu0
        %1839 = vmatprep.mubr.bf16.mxu0 0
        %1840 = vmatmul.mubr.bf16.gmra.mrb[0].mxu0 %v1727
        %v1841 = vpop.f32.mrb[0].mxu0
        %v1842 = vadd.f32 0.0, %v1841
        %v1843 = vpop.f32.mrb[0].mxu0
        %v1844 = vpop.f32.mrb[0].mxu0
        %v1845 = vadd.f32 0.0, %v1844
        %v1846 = vpop.f32.mrb[0].mxu0
        %1847 = vmatprep.mubr.bf16.mxu0 0
        %1848 = vmatmul.mubr.bf16.gmra.mrb[0].mxu0 %v1730
        %v1849 = vpop.f32.mrb[0].mxu0
        %v1850 = vadd.f32 0.0, %v1849
        %v1851 = vpop.f32.mrb[0].mxu0
        %v1852 = vpop.f32.mrb[0].mxu0
        %v1853 = vadd.f32 0.0, %v1852
        %v1854 = vpop.f32.mrb[0].mxu0
        %1855 = vmatprep.mubr.bf16.mxu0 0
        %1856 = vmatmul.mubr.bf16.gmra.mrb[0].mxu0 %v1733
        %v1857 = vpop.f32.mrb[0].mxu0
        %v1858 = vadd.f32 0.0, %v1857
        %v1859 = vpop.f32.mrb[0].mxu0
        %v1860 = vpop.f32.mrb[0].mxu0
        %v1861 = vadd.f32 0.0, %v1860
        %v1862 = vpop.f32.mrb[0].mxu0
        %1863 = vmatprep.mubr.bf16.mxu0 0
        %1864 = vmatmul.mubr.bf16.gmra.mrb[0].mxu0 %v1736
        %v1865 = vpop.f32.mrb[0].mxu0
        %v1866 = vadd.f32 0.0, %v1865
        %v1867 = vpop.f32.mrb[0].mxu0
        %v1868 = vpop.f32.mrb[0].mxu0
        %v1869 = vadd.f32 0.0, %v1868
        %v1870 = vpop.f32.mrb[0].mxu0
        %1871 = vmatprep.mubr.bf16.mxu0 0
        %1872 = vmatmul.mubr.bf16.gmra.mrb[0].mxu0 %v1739
        %v1873 = vpop.f32.mrb[0].mxu0
        %v1874 = vadd.f32 0.0, %v1873
        %v1875 = vpop.f32.mrb[0].mxu0
        %v1876 = vpop.f32.mrb[0].mxu0
        %v1877 = vadd.f32 0.0, %v1876
        %v1878 = vpop.f32.mrb[0].mxu0
        %1879 = vmatprep.mubr.bf16.mxu0 0
        %1880 = vmatmul.mubr.bf16.gmra.mrb[0].mxu0 %v1742
        %v1881 = vpop.f32.mrb[0].mxu0
        %v1882 = vadd.f32 0.0, %v1881
        %v1883 = vpop.f32.mrb[0].mxu0
        %v1884 = vpop.f32.mrb[0].mxu0
        %v1885 = vadd.f32 0.0, %v1884
        %v1886 = vpop.f32.mrb[0].mxu0
        %1887 = vmatprep.mubr.bf16.mxu0 0
        %1888 = vmatmul.mubr.bf16.gmra.mrb[0].mxu0 %v1745
        %v1889 = vpop.f32.mrb[0].mxu0
        %v1890 = vadd.f32 0.0, %v1889
        %v1891 = vpop.f32.mrb[0].mxu0
        %v1892 = vpop.f32.mrb[0].mxu0
        %v1893 = vadd.f32 0.0, %v1892
        %v1894 = vpop.f32.mrb[0].mxu0
        %1895 = vmatprep.mubr.bf16.mxu0 0
        %1896 = vmatmul.mubr.bf16.gmra.mrb[0].mxu0 %v1748
        %v1897 = vpop.f32.mrb[0].mxu0
        %v1898 = vadd.f32 0.0, %v1897
        %v1899 = vpop.f32.mrb[0].mxu0
        %v1900 = vpop.f32.mrb[0].mxu0
        %v1901 = vadd.f32 0.0, %v1900
        %v1902 = vpop.f32.mrb[0].mxu0
        %1903 = vmatprep.mubr.bf16.mxu0 0
        %1904 = vmatmul.mubr.bf16.gmra.mrb[0].mxu0 %v1751
        %v1905 = vpop.f32.mrb[0].mxu0
        %v1906 = vadd.f32 0.0, %v1905
        %v1907 = vpop.f32.mrb[0].mxu0
        %v1908 = vpop.f32.mrb[0].mxu0
        %v1909 = vadd.f32 0.0, %v1908
        %v1910 = vpop.f32.mrb[0].mxu0
        %1911 = vmatprep.mubr.bf16.mxu0 0
        %1912 = vmatmul.mubr.bf16.gmra.mrb[0].mxu0 %v1754
        %v1913 = vpop.f32.mrb[0].mxu0
        %v1914 = vadd.f32 0.0, %v1913
        %v1915 = vpop.f32.mrb[0].mxu0
        %v1916 = vpop.f32.mrb[0].mxu0
        %v1917 = vadd.f32 0.0, %v1916
        %v1918 = vpop.f32.mrb[0].mxu0
        %1919 = vmatprep.mubr.bf16.mxu0 0
        %1920 = vmatmul.mubr.bf16.gmra.mrb[0].mxu0 %v1757
        %v1921 = vpop.f32.mrb[0].mxu0
        %v1922 = vadd.f32 0.0, %v1921
        %v1923 = vpop.f32.mrb[0].mxu0
        %v1924 = vpop.f32.mrb[0].mxu0
        %v1925 = vadd.f32 0.0, %v1924
        %v1926 = vpop.f32.mrb[0].mxu0
        %1927 = vmatprep.mubr.bf16.mxu0 0
        %1928 = vmatmul.mubr.bf16.gmra.mrb[0].mxu0 %v1760
        %v1929 = vpop.f32.mrb[0].mxu0
        %v1930 = vadd.f32 0.0, %v1929
        %v1931 = vpop.f32.mrb[0].mxu0
        %v1932 = vpop.f32.mrb[0].mxu0
        %v1933 = vadd.f32 0.0, %v1932
        %v1934 = vpop.f32.mrb[0].mxu0
        %1935 = vmatprep.mubr.bf16.mxu0 0
        %1936 = vmatmul.mubr.bf16.gmra.mrb[0].mxu0 %v1763
        %v1937 = vpop.f32.mrb[0].mxu0
        %v1938 = vadd.f32 0.0, %v1937
        %v1939 = vpop.f32.mrb[0].mxu0
        %v1940 = vpop.f32.mrb[0].mxu0
        %v1941 = vadd.f32 0.0, %v1940
        %v1942 = vpop.f32.mrb[0].mxu0
        %1943 = vmatprep.mubr.bf16.mxu0 0
        %1944 = vmatmul.mubr.bf16.gmra.mrb[0].mxu0 %v1766
        %v1945 = vpop.f32.mrb[0].mxu0
        %v1946 = vadd.f32 0.0, %v1945
        %v1947 = vpop.f32.mrb[0].mxu0
        %v1948 = vpop.f32.mrb[0].mxu0
        %v1949 = vadd.f32 0.0, %v1948
        %v1950 = vpop.f32.mrb[0].mxu0
        %1951 = vmatprep.mubr.bf16.mxu0 0
        %1952 = vmatmul.mubr.bf16.gmra.mrb[0].mxu0 %v1769
        %v1953 = vpop.f32.mrb[0].mxu0
        %v1954 = vadd.f32 0.0, %v1953
        %v1955 = vpop.f32.mrb[0].mxu0
        %v1956 = vpop.f32.mrb[0].mxu0
        %v1957 = vadd.f32 0.0, %v1956
        %v1958 = vpop.f32.mrb[0].mxu0
        %1959 = vmatprep.mubr.bf16.mxu0 0
        %1960 = vmatmul.mubr.bf16.gmra.mrb[0].mxu0 %v1772
        %v1961 = vpop.f32.mrb[0].mxu0
        %v1962 = vadd.f32 0.0, %v1961
        %v1963 = vpop.f32.mrb[0].mxu0
        %v1964 = vpop.f32.mrb[0].mxu0
        %v1965 = vadd.f32 0.0, %v1964
        %v1966 = vpop.f32.mrb[0].mxu0
        %1967 = vmatprep.mubr.bf16.mxu0 0
        %1968 = vmatmul.mubr.bf16.gmra.mrb[0].mxu0 %v1775
        %v1969 = vpop.f32.mrb[0].mxu0
        %v1970 = vadd.f32 0.0, %v1969
        %v1971 = vpop.f32.mrb[0].mxu0
        %v1972 = vpop.f32.mrb[0].mxu0
        %v1973 = vadd.f32 0.0, %v1972
        %v1974 = vpop.f32.mrb[0].mxu0
        %1975 = vmatprep.mubr.bf16.mxu0 0
        %1976 = vmatmul.mubr.bf16.gmra.mrb[0].mxu0 %v1778
        %v1977 = vpop.f32.mrb[0].mxu0
        %v1978 = vadd.f32 0.0, %v1977
        %v1979 = vpop.f32.mrb[0].mxu0
        %v1980 = vpop.f32.mrb[0].mxu0
        %v1981 = vpop.f32.mrb[0].mxu0
        %1982 = vdwg.mxu0
        %v1983 = vadd.f32 %v1612, %v1818
        %v1984 = vadd.f32 %v1613, %v1821
        %v1985 = vadd.f32 %v1614, %v1826
        %v1986 = vadd.f32 %v1615, %v1829
        %v1987 = vadd.f32 %v1616, %v1834
        %v1988 = vadd.f32 %v1617, %v1837
        %v1989 = vadd.f32 %v1618, %v1842
        %v1990 = vadd.f32 %v1619, %v1845
        %v1991 = vadd.f32 %v1620, %v1850
        %v1992 = vadd.f32 %v1621, %v1853
        %v1993 = vadd.f32 %v1622, %v1858
        %v1994 = vadd.f32 %v1623, %v1861
        %v1995 = vadd.f32 %v1624, %v1866
        %v1996 = vadd.f32 %v1625, %v1869
        %v1997 = vadd.f32 %v1626, %v1874
        %v1998 = vadd.f32 %v1627, %v1877
        %v1999 = vadd.f32 %v1628, %v1882
        %v2000 = vadd.f32 %v1629, %v1885
        %v2001 = vadd.f32 %v1630, %v1890
        %v2002 = vadd.f32 %v1631, %v1893
        %v2003 = vadd.f32 %v1632, %v1898
        %v2004 = vadd.f32 %v1633, %v1901
        %v2005 = vadd.f32 %v1634, %v1906
        %v2006 = vadd.f32 %v1635, %v1909
        %v2007 = vadd.f32 %v1636, %v1914
        %v2008 = vadd.f32 %v1637, %v1917
        %v2009 = vadd.f32 %v1638, %v1922
        %v2010 = vadd.f32 %v1639, %v1925
        %v2011 = vadd.f32 %v1640, %v1930
        %v2012 = vadd.f32 %v1641, %v1933
        %v2013 = vadd.f32 %v1642, %v1938
        %v2014 = vadd.f32 %v1643, %v1941
        %v2015 = vadd.f32 %v1644, %v1946
        %v2016 = vadd.f32 %v1645, %v1949
        %v2017 = vadd.f32 %v1646, %v1954
        %v2018 = vadd.f32 %v1647, %v1957
        %v2019 = vadd.f32 %v1648, %v1962
        %v2020 = vadd.f32 %v1649, %v1965
        %v2021 = vadd.f32 %v1650, %v1970
        %v2022 = vadd.f32 %v1651, %v1973
        %v2023 = vadd.f32 %v1652, %v1978
        %v2024 = vld [vmem:[%s248 + $0x14] sm:$0xff]
        %v2025 = vld [vmem:[%s248 + $0x1c] sm:$0xff]
        %v2026 = vld [vmem:[%s248 + $0x24] sm:$0xff]
        %v2027 = vld [vmem:[%s248 + $0x2c] sm:$0xff]
        %v2028 = vld [vmem:[%s248 + $0x34] sm:$0xff]
        %v2029 = vld [vmem:[%s248 + $0x3c] sm:$0xff]
        %v2030 = vld [vmem:[%s248 + $0x44] sm:$0xff]
        %v2031 = vld [vmem:[%s248 + $0x4c] sm:$0xff]
        %v2032 = vld [vmem:[%s248 + $0x54] sm:$0xff]
        %v2033 = vld [vmem:[%s248 + $0x5c] sm:$0xff]
        %v2034 = vld [vmem:[%s248 + $0x64] sm:$0xff]
        %v2035 = vld [vmem:[%s248 + $0x6c] sm:$0xff]
        %v2036 = vld [vmem:[%s248 + $0x74] sm:$0xff]
        %v2037 = vld [vmem:[%s248 + $0x7c] sm:$0xff]
        %v2038 = vld [vmem:[%s248 + $0x84] sm:$0xff]
        %v2039 = vld [vmem:[%s248 + $0x8c] sm:$0xff]
        %v2040 = vld [vmem:[%s248 + $0x94] sm:$0xff]
        %v2041 = vld [vmem:[%s248 + $0x9c] sm:$0xff]
        %v2042 = vld [vmem:[%s248 + $0xa4] sm:$0xff]
        %v2043 = vld [vmem:[%s248 + $0xac] sm:$0xff]
        %v2044 = vld [vmem:[%s248 + $0xb4] sm:$0xff]
        %v2045 = vld [vmem:[%s248 + $0xbc] sm:$0xff]
        %v2046 = vld [vmem:[%s248 + $0xc4] sm:$0xff]
        %v2047 = vld [vmem:[%s248 + $0xcc] sm:$0xff]
        %v2048 = vld [vmem:[%s248 + $0xd4] sm:$0xff]
        %v2049 = vld [vmem:[%s248 + $0xdc] sm:$0xff]
        %v2050 = vld [vmem:[%s248 + $0xe4] sm:$0xff]
        %v2051 = vld [vmem:[%s248 + $0xec] sm:$0xff]
        %v2052 = vld [vmem:[%s248 + $0xf4] sm:$0xff]
        %v2053 = vld [vmem:[%s248 + $0xfc] sm:$0xff]
        %v2054 = vld [vmem:[%s248 + $0x104] sm:$0xff]
        %v2055 = vld [vmem:[%s248 + $0x10c] sm:$0xff]
        %v2056 = vld [vmem:[%s248 + $0x114] sm:$0xff]
        %v2057 = vld [vmem:[%s248 + $0x11c] sm:$0xff]
        %v2058 = vld [vmem:[%s248 + $0x124] sm:$0xff]
        %v2059 = vld [vmem:[%s248 + $0x12c] sm:$0xff]
        %v2060 = vld [vmem:[%s248 + $0x134] sm:$0xff]
        %v2061 = vld [vmem:[%s248 + $0x13c] sm:$0xff]
        %v2062 = vld [vmem:[%s248 + $0x144] sm:$0xff]
        %v2063 = vld [vmem:[%s248 + $0x14c] sm:$0xff]
        %v2064 = vld [vmem:[%s248 + $0x154] sm:$0xf]
        %v2065 = vpack.c.bf16 %v2025, %v2024
        %v2066 = vpack.c.bf16 %v2027, %v2026
        %v2067 = vpack.c.bf16 %v2029, %v2028
        %v2068 = vpack.c.bf16 %v2031, %v2030
        %v2069 = vpack.c.bf16 %v2033, %v2032
        %v2070 = vpack.c.bf16 %v2035, %v2034
        %v2071 = vpack.c.bf16 %v2037, %v2036
        %v2072 = vpack.c.bf16 %v2039, %v2038
        %v2073 = vpack.c.bf16 %v2041, %v2040
        %v2074 = vpack.c.bf16 %v2043, %v2042
        %v2075 = vpack.c.bf16 %v2045, %v2044
        %v2076 = vpack.c.bf16 %v2047, %v2046
        %v2077 = vpack.c.bf16 %v2049, %v2048
        %v2078 = vpack.c.bf16 %v2051, %v2050
        %v2079 = vpack.c.bf16 %v2053, %v2052
        %v2080 = vpack.c.bf16 %v2055, %v2054
        %v2081 = vpack.c.bf16 %v2057, %v2056
        %v2082 = vpack.c.bf16 %v2059, %v2058
        %v2083 = vpack.c.bf16 %v2061, %v2060
        %v2084 = vpack.c.bf16 %v2063, %v2062
        %v2085 = vpack.c.bf16 %v2064, %v2064
        %s2086 = scalar_lea.vmem %s1, 10
        %v2087 = vld [vmem:[%s2086] sm:$0x3]
        %v2089 = vsel %vm377, %v2065, 0
        %v2092 = vsel %vm377, %v2066, 0
        %v2095 = vsel %vm377, %v2067, 0
        %v2098 = vsel %vm377, %v2068, 0
        %v2101 = vsel %vm377, %v2069, 0
        %v2104 = vsel %vm377, %v2070, 0
        %v2107 = vsel %vm377, %v2071, 0
        %v2110 = vsel %vm377, %v2072, 0
        %v2113 = vsel %vm377, %v2073, 0
        %v2116 = vsel %vm377, %v2074, 0
        %v2119 = vsel %vm377, %v2075, 0
        %v2122 = vsel %vm377, %v2076, 0
        %v2125 = vsel %vm377, %v2077, 0
        %v2128 = vsel %vm377, %v2078, 0
        %v2131 = vsel %vm377, %v2079, 0
        %v2134 = vsel %vm377, %v2080, 0
        %v2137 = vsel %vm377, %v2081, 0
        %v2140 = vsel %vm377, %v2082, 0
        %v2143 = vsel %vm377, %v2083, 0
        %v2146 = vsel %vm377, %v2084, 0
        %v2149 = vsel %vm377, %v2085, 0
        %v2152 = vsel %vm441, %v2087, 0
        %2154 = vmatprep.subr.bf16.mxu0 0
        %2155 = vmatpush1.bf16.msra.mxu0 %v2152
        %2156 = vmatprep.subr.bf16.mxu0 0
        %2157 = vmatpush1.bf16.msra.mxu0 0
        %2158 = vmatprep.subr.bf16.mxu0 0
        %2159 = vmatpush1.bf16.msra.mxu0 0
        %2160 = vmatprep.subr.bf16.mxu0 0
        %2161 = vmatpush1.bf16.msra.mxu0 0
        %2162 = vmatprep.subr.bf16.mxu0 0
        %2163 = vmatpush1.bf16.msra.mxu0 0
        %2164 = vmatprep.subr.bf16.mxu0 0
        %2165 = vmatpush1.bf16.msra.mxu0 0
        %2166 = vmatprep.subr.bf16.mxu0 0
        %2167 = vmatpush1.bf16.msra.mxu0 0
        %2168 = vmatprep.subr.bf16.mxu0 0
        %2169 = vmatpush1.bf16.msra.mxu0 0
        %2170 = vmatprep.subr.bf16.mxu0 0
        %2171 = vmatpush1.bf16.msra.mxu0 0
        %2172 = vmatprep.subr.bf16.mxu0 0
        %2173 = vmatpush1.bf16.msra.mxu0 0
        %2174 = vmatprep.subr.bf16.mxu0 0
        %2175 = vmatpush1.bf16.msra.mxu0 0
        %2176 = vmatprep.subr.bf16.mxu0 0
        %2177 = vmatpush1.bf16.msra.mxu0 0
        %2178 = vmatprep.subr.bf16.mxu0 0
        %2179 = vmatpush1.bf16.msra.mxu0 0
        %2180 = vmatprep.subr.bf16.mxu0 0
        %2181 = vmatpush1.bf16.msra.mxu0 0
        %2182 = vmatprep.subr.bf16.mxu0 0
        %2183 = vmatpush1.bf16.msra.mxu0 0
        %2184 = vmatprep.subr.bf16.mxu0 0
        %2185 = vmatpush1.bf16.msra.mxu0 0
        %2186 = vmatprep.mubr.bf16.mxu0 0
        %2187 = vmatmul.mubr.bf16.gmra.mrb[0].mxu0 %v2089
        %v2188 = vpop.f32.mrb[0].mxu0
        %v2189 = vadd.f32 0.0, %v2188
        %v2190 = vpop.f32.mrb[0].mxu0
        %v2191 = vpop.f32.mrb[0].mxu0
        %v2192 = vadd.f32 0.0, %v2191
        %v2193 = vpop.f32.mrb[0].mxu0
        %2194 = vmatprep.mubr.bf16.mxu0 0
        %2195 = vmatmul.mubr.bf16.gmra.mrb[0].mxu0 %v2092
        %v2196 = vpop.f32.mrb[0].mxu0
        %v2197 = vadd.f32 0.0, %v2196
        %v2198 = vpop.f32.mrb[0].mxu0
        %v2199 = vpop.f32.mrb[0].mxu0
        %v2200 = vadd.f32 0.0, %v2199
        %v2201 = vpop.f32.mrb[0].mxu0
        %2202 = vmatprep.mubr.bf16.mxu0 0
        %2203 = vmatmul.mubr.bf16.gmra.mrb[0].mxu0 %v2095
        %v2204 = vpop.f32.mrb[0].mxu0
        %v2205 = vadd.f32 0.0, %v2204
        %v2206 = vpop.f32.mrb[0].mxu0
        %v2207 = vpop.f32.mrb[0].mxu0
        %v2208 = vadd.f32 0.0, %v2207
        %v2209 = vpop.f32.mrb[0].mxu0
        %2210 = vmatprep.mubr.bf16.mxu0 0
        %2211 = vmatmul.mubr.bf16.gmra.mrb[0].mxu0 %v2098
        %v2212 = vpop.f32.mrb[0].mxu0
        %v2213 = vadd.f32 0.0, %v2212
        %v2214 = vpop.f32.mrb[0].mxu0
        %v2215 = vpop.f32.mrb[0].mxu0
        %v2216 = vadd.f32 0.0, %v2215
        %v2217 = vpop.f32.mrb[0].mxu0
        %2218 = vmatprep.mubr.bf16.mxu0 0
        %2219 = vmatmul.mubr.bf16.gmra.mrb[0].mxu0 %v2101
        %v2220 = vpop.f32.mrb[0].mxu0
        %v2221 = vadd.f32 0.0, %v2220
        %v2222 = vpop.f32.mrb[0].mxu0
        %v2223 = vpop.f32.mrb[0].mxu0
        %v2224 = vadd.f32 0.0, %v2223
        %v2225 = vpop.f32.mrb[0].mxu0
        %2226 = vmatprep.mubr.bf16.mxu0 0
        %2227 = vmatmul.mubr.bf16.gmra.mrb[0].mxu0 %v2104
        %v2228 = vpop.f32.mrb[0].mxu0
        %v2229 = vadd.f32 0.0, %v2228
        %v2230 = vpop.f32.mrb[0].mxu0
        %v2231 = vpop.f32.mrb[0].mxu0
        %v2232 = vadd.f32 0.0, %v2231
        %v2233 = vpop.f32.mrb[0].mxu0
        %2234 = vmatprep.mubr.bf16.mxu0 0
        %2235 = vmatmul.mubr.bf16.gmra.mrb[0].mxu0 %v2107
        %v2236 = vpop.f32.mrb[0].mxu0
        %v2237 = vadd.f32 0.0, %v2236
        %v2238 = vpop.f32.mrb[0].mxu0
        %v2239 = vpop.f32.mrb[0].mxu0
        %v2240 = vadd.f32 0.0, %v2239
        %v2241 = vpop.f32.mrb[0].mxu0
        %2242 = vmatprep.mubr.bf16.mxu0 0
        %2243 = vmatmul.mubr.bf16.gmra.mrb[0].mxu0 %v2110
        %v2244 = vpop.f32.mrb[0].mxu0
        %v2245 = vadd.f32 0.0, %v2244
        %v2246 = vpop.f32.mrb[0].mxu0
        %v2247 = vpop.f32.mrb[0].mxu0
        %v2248 = vadd.f32 0.0, %v2247
        %v2249 = vpop.f32.mrb[0].mxu0
        %2250 = vmatprep.mubr.bf16.mxu0 0
        %2251 = vmatmul.mubr.bf16.gmra.mrb[0].mxu0 %v2113
        %v2252 = vpop.f32.mrb[0].mxu0
        %v2253 = vadd.f32 0.0, %v2252
        %v2254 = vpop.f32.mrb[0].mxu0
        %v2255 = vpop.f32.mrb[0].mxu0
        %v2256 = vadd.f32 0.0, %v2255
        %v2257 = vpop.f32.mrb[0].mxu0
        %2258 = vmatprep.mubr.bf16.mxu0 0
        %2259 = vmatmul.mubr.bf16.gmra.mrb[0].mxu0 %v2116
        %v2260 = vpop.f32.mrb[0].mxu0
        %v2261 = vadd.f32 0.0, %v2260
        %v2262 = vpop.f32.mrb[0].mxu0
        %v2263 = vpop.f32.mrb[0].mxu0
        %v2264 = vadd.f32 0.0, %v2263
        %v2265 = vpop.f32.mrb[0].mxu0
        %2266 = vmatprep.mubr.bf16.mxu0 0
        %2267 = vmatmul.mubr.bf16.gmra.mrb[0].mxu0 %v2119
        %v2268 = vpop.f32.mrb[0].mxu0
        %v2269 = vadd.f32 0.0, %v2268
        %v2270 = vpop.f32.mrb[0].mxu0
        %v2271 = vpop.f32.mrb[0].mxu0
        %v2272 = vadd.f32 0.0, %v2271
        %v2273 = vpop.f32.mrb[0].mxu0
        %2274 = vmatprep.mubr.bf16.mxu0 0
        %2275 = vmatmul.mubr.bf16.gmra.mrb[0].mxu0 %v2122
        %v2276 = vpop.f32.mrb[0].mxu0
        %v2277 = vadd.f32 0.0, %v2276
        %v2278 = vpop.f32.mrb[0].mxu0
        %v2279 = vpop.f32.mrb[0].mxu0
        %v2280 = vadd.f32 0.0, %v2279
        %v2281 = vpop.f32.mrb[0].mxu0
        %2282 = vmatprep.mubr.bf16.mxu0 0
        %2283 = vmatmul.mubr.bf16.gmra.mrb[0].mxu0 %v2125
        %v2284 = vpop.f32.mrb[0].mxu0
        %v2285 = vadd.f32 0.0, %v2284
        %v2286 = vpop.f32.mrb[0].mxu0
        %v2287 = vpop.f32.mrb[0].mxu0
        %v2288 = vadd.f32 0.0, %v2287
        %v2289 = vpop.f32.mrb[0].mxu0
        %2290 = vmatprep.mubr.bf16.mxu0 0
        %2291 = vmatmul.mubr.bf16.gmra.mrb[0].mxu0 %v2128
        %v2292 = vpop.f32.mrb[0].mxu0
        %v2293 = vadd.f32 0.0, %v2292
        %v2294 = vpop.f32.mrb[0].mxu0
        %v2295 = vpop.f32.mrb[0].mxu0
        %v2296 = vadd.f32 0.0, %v2295
        %v2297 = vpop.f32.mrb[0].mxu0
        %2298 = vmatprep.mubr.bf16.mxu0 0
        %2299 = vmatmul.mubr.bf16.gmra.mrb[0].mxu0 %v2131
        %v2300 = vpop.f32.mrb[0].mxu0
        %v2301 = vadd.f32 0.0, %v2300
        %v2302 = vpop.f32.mrb[0].mxu0
        %v2303 = vpop.f32.mrb[0].mxu0
        %v2304 = vadd.f32 0.0, %v2303
        %v2305 = vpop.f32.mrb[0].mxu0
        %2306 = vmatprep.mubr.bf16.mxu0 0
        %2307 = vmatmul.mubr.bf16.gmra.mrb[0].mxu0 %v2134
        %v2308 = vpop.f32.mrb[0].mxu0
        %v2309 = vadd.f32 0.0, %v2308
        %v2310 = vpop.f32.mrb[0].mxu0
        %v2311 = vpop.f32.mrb[0].mxu0
        %v2312 = vadd.f32 0.0, %v2311
        %v2313 = vpop.f32.mrb[0].mxu0
        %2314 = vmatprep.mubr.bf16.mxu0 0
        %2315 = vmatmul.mubr.bf16.gmra.mrb[0].mxu0 %v2137
        %v2316 = vpop.f32.mrb[0].mxu0
        %v2317 = vadd.f32 0.0, %v2316
        %v2318 = vpop.f32.mrb[0].mxu0
        %v2319 = vpop.f32.mrb[0].mxu0
        %v2320 = vadd.f32 0.0, %v2319
        %v2321 = vpop.f32.mrb[0].mxu0
        %2322 = vmatprep.mubr.bf16.mxu0 0
        %2323 = vmatmul.mubr.bf16.gmra.mrb[0].mxu0 %v2140
        %v2324 = vpop.f32.mrb[0].mxu0
        %v2325 = vadd.f32 0.0, %v2324
        %v2326 = vpop.f32.mrb[0].mxu0
        %v2327 = vpop.f32.mrb[0].mxu0
        %v2328 = vadd.f32 0.0, %v2327
        %v2329 = vpop.f32.mrb[0].mxu0
        %2330 = vmatprep.mubr.bf16.mxu0 0
        %2331 = vmatmul.mubr.bf16.gmra.mrb[0].mxu0 %v2143
        %v2332 = vpop.f32.mrb[0].mxu0
        %v2333 = vadd.f32 0.0, %v2332
        %v2334 = vpop.f32.mrb[0].mxu0
        %v2335 = vpop.f32.mrb[0].mxu0
        %v2336 = vadd.f32 0.0, %v2335
        %v2337 = vpop.f32.mrb[0].mxu0
        %2338 = vmatprep.mubr.bf16.mxu0 0
        %2339 = vmatmul.mubr.bf16.gmra.mrb[0].mxu0 %v2146
        %v2340 = vpop.f32.mrb[0].mxu0
        %v2341 = vadd.f32 0.0, %v2340
        %v2342 = vpop.f32.mrb[0].mxu0
        %v2343 = vpop.f32.mrb[0].mxu0
        %v2344 = vadd.f32 0.0, %v2343
        %v2345 = vpop.f32.mrb[0].mxu0
        %2346 = vmatprep.mubr.bf16.mxu0 0
        %2347 = vmatmul.mubr.bf16.gmra.mrb[0].mxu0 %v2149
        %v2348 = vpop.f32.mrb[0].mxu0
        %v2349 = vadd.f32 0.0, %v2348
        %v2350 = vpop.f32.mrb[0].mxu0
        %v2351 = vpop.f32.mrb[0].mxu0
        %v2352 = vpop.f32.mrb[0].mxu0
        %2353 = vdwg.mxu0
        %v2354 = vadd.f32 %v1983, %v2189
        %v2355 = vadd.f32 %v1984, %v2192
        %v2356 = vadd.f32 %v1985, %v2197
        %v2357 = vadd.f32 %v1986, %v2200
        %v2358 = vadd.f32 %v1987, %v2205
        %v2359 = vadd.f32 %v1988, %v2208
        %v2360 = vadd.f32 %v1989, %v2213
        %v2361 = vadd.f32 %v1990, %v2216
        %v2362 = vadd.f32 %v1991, %v2221
        %v2363 = vadd.f32 %v1992, %v2224
        %v2364 = vadd.f32 %v1993, %v2229
        %v2365 = vadd.f32 %v1994, %v2232
        %v2366 = vadd.f32 %v1995, %v2237
        %v2367 = vadd.f32 %v1996, %v2240
        %v2368 = vadd.f32 %v1997, %v2245
        %v2369 = vadd.f32 %v1998, %v2248
        %v2370 = vadd.f32 %v1999, %v2253
        %v2371 = vadd.f32 %v2000, %v2256
        %v2372 = vadd.f32 %v2001, %v2261
        %v2373 = vadd.f32 %v2002, %v2264
        %v2374 = vadd.f32 %v2003, %v2269
        %v2375 = vadd.f32 %v2004, %v2272
        %v2376 = vadd.f32 %v2005, %v2277
        %v2377 = vadd.f32 %v2006, %v2280
        %v2378 = vadd.f32 %v2007, %v2285
        %v2379 = vadd.f32 %v2008, %v2288
        %v2380 = vadd.f32 %v2009, %v2293
        %v2381 = vadd.f32 %v2010, %v2296
        %v2382 = vadd.f32 %v2011, %v2301
        %v2383 = vadd.f32 %v2012, %v2304
        %v2384 = vadd.f32 %v2013, %v2309
        %v2385 = vadd.f32 %v2014, %v2312
        %v2386 = vadd.f32 %v2015, %v2317
        %v2387 = vadd.f32 %v2016, %v2320
        %v2388 = vadd.f32 %v2017, %v2325
        %v2389 = vadd.f32 %v2018, %v2328
        %v2390 = vadd.f32 %v2019, %v2333
        %v2391 = vadd.f32 %v2020, %v2336
        %v2392 = vadd.f32 %v2021, %v2341
        %v2393 = vadd.f32 %v2022, %v2344
        %v2394 = vadd.f32 %v2023, %v2349
        %v2395 = vld [vmem:[%s248 + $0x24] sm:$0xff]
        %v2396 = vld [vmem:[%s248 + $0x2c] sm:$0xff]
        %v2397 = vld [vmem:[%s248 + $0x34] sm:$0xff]
        %v2398 = vld [vmem:[%s248 + $0x3c] sm:$0xff]
        %v2399 = vld [vmem:[%s248 + $0x44] sm:$0xff]
        %v2400 = vld [vmem:[%s248 + $0x4c] sm:$0xff]
        %v2401 = vld [vmem:[%s248 + $0x54] sm:$0xff]
        %v2402 = vld [vmem:[%s248 + $0x5c] sm:$0xff]
        %v2403 = vld [vmem:[%s248 + $0x64] sm:$0xff]
        %v2404 = vld [vmem:[%s248 + $0x6c] sm:$0xff]
        %v2405 = vld [vmem:[%s248 + $0x74] sm:$0xff]
        %v2406 = vld [vmem:[%s248 + $0x7c] sm:$0xff]
        %v2407 = vld [vmem:[%s248 + $0x84] sm:$0xff]
        %v2408 = vld [vmem:[%s248 + $0x8c] sm:$0xff]
        %v2409 = vld [vmem:[%s248 + $0x94] sm:$0xff]
        %v2410 = vld [vmem:[%s248 + $0x9c] sm:$0xff]
        %v2411 = vld [vmem:[%s248 + $0xa4] sm:$0xff]
        %v2412 = vld [vmem:[%s248 + $0xac] sm:$0xff]
        %v2413 = vld [vmem:[%s248 + $0xb4] sm:$0xff]
        %v2414 = vld [vmem:[%s248 + $0xbc] sm:$0xff]
        %v2415 = vld [vmem:[%s248 + $0xc4] sm:$0xff]
        %v2416 = vld [vmem:[%s248 + $0xcc] sm:$0xff]
        %v2417 = vld [vmem:[%s248 + $0xd4] sm:$0xff]
        %v2418 = vld [vmem:[%s248 + $0xdc] sm:$0xff]
        %v2419 = vld [vmem:[%s248 + $0xe4] sm:$0xff]
        %v2420 = vld [vmem:[%s248 + $0xec] sm:$0xff]
        %v2421 = vld [vmem:[%s248 + $0xf4] sm:$0xff]
        %v2422 = vld [vmem:[%s248 + $0xfc] sm:$0xff]
        %v2423 = vld [vmem:[%s248 + $0x104] sm:$0xff]
        %v2424 = vld [vmem:[%s248 + $0x10c] sm:$0xff]
        %v2425 = vld [vmem:[%s248 + $0x114] sm:$0xff]
        %v2426 = vld [vmem:[%s248 + $0x11c] sm:$0xff]
        %v2427 = vld [vmem:[%s248 + $0x124] sm:$0xff]
        %v2428 = vld [vmem:[%s248 + $0x12c] sm:$0xff]
        %v2429 = vld [vmem:[%s248 + $0x134] sm:$0xff]
        %v2430 = vld [vmem:[%s248 + $0x13c] sm:$0xff]
        %v2431 = vld [vmem:[%s248 + $0x144] sm:$0xff]
        %v2432 = vld [vmem:[%s248 + $0x14c] sm:$0xff]
        %v2433 = vld [vmem:[%s248 + $0x154] sm:$0xff]
        %v2434 = vld [vmem:[%s248 + $0x15c] sm:$0xff]
        %v2435 = vld [vmem:[%s248 + $0x164] sm:$0xf]
        %v2436 = vpack.c.bf16 %v2396, %v2395
        %v2437 = vpack.c.bf16 %v2398, %v2397
        %v2438 = vpack.c.bf16 %v2400, %v2399
        %v2439 = vpack.c.bf16 %v2402, %v2401
        %v2440 = vpack.c.bf16 %v2404, %v2403
        %v2441 = vpack.c.bf16 %v2406, %v2405
        %v2442 = vpack.c.bf16 %v2408, %v2407
        %v2443 = vpack.c.bf16 %v2410, %v2409
        %v2444 = vpack.c.bf16 %v2412, %v2411
        %v2445 = vpack.c.bf16 %v2414, %v2413
        %v2446 = vpack.c.bf16 %v2416, %v2415
        %v2447 = vpack.c.bf16 %v2418, %v2417
        %v2448 = vpack.c.bf16 %v2420, %v2419
        %v2449 = vpack.c.bf16 %v2422, %v2421
        %v2450 = vpack.c.bf16 %v2424, %v2423
        %v2451 = vpack.c.bf16 %v2426, %v2425
        %v2452 = vpack.c.bf16 %v2428, %v2427
        %v2453 = vpack.c.bf16 %v2430, %v2429
        %v2454 = vpack.c.bf16 %v2432, %v2431
        %v2455 = vpack.c.bf16 %v2434, %v2433
        %v2456 = vpack.c.bf16 %v2435, %v2435
        %s2457 = scalar_lea.vmem %s1, 12
        %v2458 = vld [vmem:[%s2457] sm:$0x3]
        %v2460 = vsel %vm377, %v2436, 0
        %v2463 = vsel %vm377, %v2437, 0
        %v2466 = vsel %vm377, %v2438, 0
        %v2469 = vsel %vm377, %v2439, 0
        %v2472 = vsel %vm377, %v2440, 0
        %v2475 = vsel %vm377, %v2441, 0
        %v2478 = vsel %vm377, %v2442, 0
        %v2481 = vsel %vm377, %v2443, 0
        %v2484 = vsel %vm377, %v2444, 0
        %v2487 = vsel %vm377, %v2445, 0
        %v2490 = vsel %vm377, %v2446, 0
        %v2493 = vsel %vm377, %v2447, 0
        %v2496 = vsel %vm377, %v2448, 0
        %v2499 = vsel %vm377, %v2449, 0
        %v2502 = vsel %vm377, %v2450, 0
        %v2505 = vsel %vm377, %v2451, 0
        %v2508 = vsel %vm377, %v2452, 0
        %v2511 = vsel %vm377, %v2453, 0
        %v2514 = vsel %vm377, %v2454, 0
        %v2517 = vsel %vm377, %v2455, 0
        %v2520 = vsel %vm377, %v2456, 0
        %v2523 = vsel %vm441, %v2458, 0
        %2525 = vmatprep.subr.bf16.mxu0 0
        %2526 = vmatpush1.bf16.msra.mxu0 %v2523
        %2527 = vmatprep.subr.bf16.mxu0 0
        %2528 = vmatpush1.bf16.msra.mxu0 0
        %2529 = vmatprep.subr.bf16.mxu0 0
        %2530 = vmatpush1.bf16.msra.mxu0 0
        %2531 = vmatprep.subr.bf16.mxu0 0
        %2532 = vmatpush1.bf16.msra.mxu0 0
        %2533 = vmatprep.subr.bf16.mxu0 0
        %2534 = vmatpush1.bf16.msra.mxu0 0
        %2535 = vmatprep.subr.bf16.mxu0 0
        %2536 = vmatpush1.bf16.msra.mxu0 0
        %2537 = vmatprep.subr.bf16.mxu0 0
        %2538 = vmatpush1.bf16.msra.mxu0 0
        %2539 = vmatprep.subr.bf16.mxu0 0
        %2540 = vmatpush1.bf16.msra.mxu0 0
        %2541 = vmatprep.subr.bf16.mxu0 0
        %2542 = vmatpush1.bf16.msra.mxu0 0
        %2543 = vmatprep.subr.bf16.mxu0 0
        %2544 = vmatpush1.bf16.msra.mxu0 0
        %2545 = vmatprep.subr.bf16.mxu0 0
        %2546 = vmatpush1.bf16.msra.mxu0 0
        %2547 = vmatprep.subr.bf16.mxu0 0
        %2548 = vmatpush1.bf16.msra.mxu0 0
        %2549 = vmatprep.subr.bf16.mxu0 0
        %2550 = vmatpush1.bf16.msra.mxu0 0
        %2551 = vmatprep.subr.bf16.mxu0 0
        %2552 = vmatpush1.bf16.msra.mxu0 0
        %2553 = vmatprep.subr.bf16.mxu0 0
        %2554 = vmatpush1.bf16.msra.mxu0 0
        %2555 = vmatprep.subr.bf16.mxu0 0
        %2556 = vmatpush1.bf16.msra.mxu0 0
        %2557 = vmatprep.mubr.bf16.mxu0 0
        %2558 = vmatmul.mubr.bf16.gmra.mrb[0].mxu0 %v2460
        %v2559 = vpop.f32.mrb[0].mxu0
        %v2560 = vadd.f32 0.0, %v2559
        %v2561 = vpop.f32.mrb[0].mxu0
        %v2562 = vpop.f32.mrb[0].mxu0
        %v2563 = vadd.f32 0.0, %v2562
        %v2564 = vpop.f32.mrb[0].mxu0
        %2565 = vmatprep.mubr.bf16.mxu0 0
        %2566 = vmatmul.mubr.bf16.gmra.mrb[0].mxu0 %v2463
        %v2567 = vpop.f32.mrb[0].mxu0
        %v2568 = vadd.f32 0.0, %v2567
        %v2569 = vpop.f32.mrb[0].mxu0
        %v2570 = vpop.f32.mrb[0].mxu0
        %v2571 = vadd.f32 0.0, %v2570
        %v2572 = vpop.f32.mrb[0].mxu0
        %2573 = vmatprep.mubr.bf16.mxu0 0
        %2574 = vmatmul.mubr.bf16.gmra.mrb[0].mxu0 %v2466
        %v2575 = vpop.f32.mrb[0].mxu0
        %v2576 = vadd.f32 0.0, %v2575
        %v2577 = vpop.f32.mrb[0].mxu0
        %v2578 = vpop.f32.mrb[0].mxu0
        %v2579 = vadd.f32 0.0, %v2578
        %v2580 = vpop.f32.mrb[0].mxu0
        %2581 = vmatprep.mubr.bf16.mxu0 0
        %2582 = vmatmul.mubr.bf16.gmra.mrb[0].mxu0 %v2469
        %v2583 = vpop.f32.mrb[0].mxu0
        %v2584 = vadd.f32 0.0, %v2583
        %v2585 = vpop.f32.mrb[0].mxu0
        %v2586 = vpop.f32.mrb[0].mxu0
        %v2587 = vadd.f32 0.0, %v2586
        %v2588 = vpop.f32.mrb[0].mxu0
        %2589 = vmatprep.mubr.bf16.mxu0 0
        %2590 = vmatmul.mubr.bf16.gmra.mrb[0].mxu0 %v2472
        %v2591 = vpop.f32.mrb[0].mxu0
        %v2592 = vadd.f32 0.0, %v2591
        %v2593 = vpop.f32.mrb[0].mxu0
        %v2594 = vpop.f32.mrb[0].mxu0
        %v2595 = vadd.f32 0.0, %v2594
        %v2596 = vpop.f32.mrb[0].mxu0
        %2597 = vmatprep.mubr.bf16.mxu0 0
        %2598 = vmatmul.mubr.bf16.gmra.mrb[0].mxu0 %v2475
        %v2599 = vpop.f32.mrb[0].mxu0
        %v2600 = vadd.f32 0.0, %v2599
        %v2601 = vpop.f32.mrb[0].mxu0
        %v2602 = vpop.f32.mrb[0].mxu0
        %v2603 = vadd.f32 0.0, %v2602
        %v2604 = vpop.f32.mrb[0].mxu0
        %2605 = vmatprep.mubr.bf16.mxu0 0
        %2606 = vmatmul.mubr.bf16.gmra.mrb[0].mxu0 %v2478
        %v2607 = vpop.f32.mrb[0].mxu0
        %v2608 = vadd.f32 0.0, %v2607
        %v2609 = vpop.f32.mrb[0].mxu0
        %v2610 = vpop.f32.mrb[0].mxu0
        %v2611 = vadd.f32 0.0, %v2610
        %v2612 = vpop.f32.mrb[0].mxu0
        %2613 = vmatprep.mubr.bf16.mxu0 0
        %2614 = vmatmul.mubr.bf16.gmra.mrb[0].mxu0 %v2481
        %v2615 = vpop.f32.mrb[0].mxu0
        %v2616 = vadd.f32 0.0, %v2615
        %v2617 = vpop.f32.mrb[0].mxu0
        %v2618 = vpop.f32.mrb[0].mxu0
        %v2619 = vadd.f32 0.0, %v2618
        %v2620 = vpop.f32.mrb[0].mxu0
        %2621 = vmatprep.mubr.bf16.mxu0 0
        %2622 = vmatmul.mubr.bf16.gmra.mrb[0].mxu0 %v2484
        %v2623 = vpop.f32.mrb[0].mxu0
        %v2624 = vadd.f32 0.0, %v2623
        %v2625 = vpop.f32.mrb[0].mxu0
        %v2626 = vpop.f32.mrb[0].mxu0
        %v2627 = vadd.f32 0.0, %v2626
        %v2628 = vpop.f32.mrb[0].mxu0
        %2629 = vmatprep.mubr.bf16.mxu0 0
        %2630 = vmatmul.mubr.bf16.gmra.mrb[0].mxu0 %v2487
        %v2631 = vpop.f32.mrb[0].mxu0
        %v2632 = vadd.f32 0.0, %v2631
        %v2633 = vpop.f32.mrb[0].mxu0
        %v2634 = vpop.f32.mrb[0].mxu0
        %v2635 = vadd.f32 0.0, %v2634
        %v2636 = vpop.f32.mrb[0].mxu0
        %2637 = vmatprep.mubr.bf16.mxu0 0
        %2638 = vmatmul.mubr.bf16.gmra.mrb[0].mxu0 %v2490
        %v2639 = vpop.f32.mrb[0].mxu0
        %v2640 = vadd.f32 0.0, %v2639
        %v2641 = vpop.f32.mrb[0].mxu0
        %v2642 = vpop.f32.mrb[0].mxu0
        %v2643 = vadd.f32 0.0, %v2642
        %v2644 = vpop.f32.mrb[0].mxu0
        %2645 = vmatprep.mubr.bf16.mxu0 0
        %2646 = vmatmul.mubr.bf16.gmra.mrb[0].mxu0 %v2493
        %v2647 = vpop.f32.mrb[0].mxu0
        %v2648 = vadd.f32 0.0, %v2647
        %v2649 = vpop.f32.mrb[0].mxu0
        %v2650 = vpop.f32.mrb[0].mxu0
        %v2651 = vadd.f32 0.0, %v2650
        %v2652 = vpop.f32.mrb[0].mxu0
        %2653 = vmatprep.mubr.bf16.mxu0 0
        %2654 = vmatmul.mubr.bf16.gmra.mrb[0].mxu0 %v2496
        %v2655 = vpop.f32.mrb[0].mxu0
        %v2656 = vadd.f32 0.0, %v2655
        %v2657 = vpop.f32.mrb[0].mxu0
        %v2658 = vpop.f32.mrb[0].mxu0
        %v2659 = vadd.f32 0.0, %v2658
        %v2660 = vpop.f32.mrb[0].mxu0
        %2661 = vmatprep.mubr.bf16.mxu0 0
        %2662 = vmatmul.mubr.bf16.gmra.mrb[0].mxu0 %v2499
        %v2663 = vpop.f32.mrb[0].mxu0
        %v2664 = vadd.f32 0.0, %v2663
        %v2665 = vpop.f32.mrb[0].mxu0
        %v2666 = vpop.f32.mrb[0].mxu0
        %v2667 = vadd.f32 0.0, %v2666
        %v2668 = vpop.f32.mrb[0].mxu0
        %2669 = vmatprep.mubr.bf16.mxu0 0
        %2670 = vmatmul.mubr.bf16.gmra.mrb[0].mxu0 %v2502
        %v2671 = vpop.f32.mrb[0].mxu0
        %v2672 = vadd.f32 0.0, %v2671
        %v2673 = vpop.f32.mrb[0].mxu0
        %v2674 = vpop.f32.mrb[0].mxu0
        %v2675 = vadd.f32 0.0, %v2674
        %v2676 = vpop.f32.mrb[0].mxu0
        %2677 = vmatprep.mubr.bf16.mxu0 0
        %2678 = vmatmul.mubr.bf16.gmra.mrb[0].mxu0 %v2505
        %v2679 = vpop.f32.mrb[0].mxu0
        %v2680 = vadd.f32 0.0, %v2679
        %v2681 = vpop.f32.mrb[0].mxu0
        %v2682 = vpop.f32.mrb[0].mxu0
        %v2683 = vadd.f32 0.0, %v2682
        %v2684 = vpop.f32.mrb[0].mxu0
        %2685 = vmatprep.mubr.bf16.mxu0 0
        %2686 = vmatmul.mubr.bf16.gmra.mrb[0].mxu0 %v2508
        %v2687 = vpop.f32.mrb[0].mxu0
        %v2688 = vadd.f32 0.0, %v2687
        %v2689 = vpop.f32.mrb[0].mxu0
        %v2690 = vpop.f32.mrb[0].mxu0
        %v2691 = vadd.f32 0.0, %v2690
        %v2692 = vpop.f32.mrb[0].mxu0
        %2693 = vmatprep.mubr.bf16.mxu0 0
        %2694 = vmatmul.mubr.bf16.gmra.mrb[0].mxu0 %v2511
        %v2695 = vpop.f32.mrb[0].mxu0
        %v2696 = vadd.f32 0.0, %v2695
        %v2697 = vpop.f32.mrb[0].mxu0
        %v2698 = vpop.f32.mrb[0].mxu0
        %v2699 = vadd.f32 0.0, %v2698
        %v2700 = vpop.f32.mrb[0].mxu0
        %2701 = vmatprep.mubr.bf16.mxu0 0
        %2702 = vmatmul.mubr.bf16.gmra.mrb[0].mxu0 %v2514
        %v2703 = vpop.f32.mrb[0].mxu0
        %v2704 = vadd.f32 0.0, %v2703
        %v2705 = vpop.f32.mrb[0].mxu0
        %v2706 = vpop.f32.mrb[0].mxu0
        %v2707 = vadd.f32 0.0, %v2706
        %v2708 = vpop.f32.mrb[0].mxu0
        %2709 = vmatprep.mubr.bf16.mxu0 0
        %2710 = vmatmul.mubr.bf16.gmra.mrb[0].mxu0 %v2517
        %v2711 = vpop.f32.mrb[0].mxu0
        %v2712 = vadd.f32 0.0, %v2711
        %v2713 = vpop.f32.mrb[0].mxu0
        %v2714 = vpop.f32.mrb[0].mxu0
        %v2715 = vadd.f32 0.0, %v2714
        %v2716 = vpop.f32.mrb[0].mxu0
        %2717 = vmatprep.mubr.bf16.mxu0 0
        %2718 = vmatmul.mubr.bf16.gmra.mrb[0].mxu0 %v2520
        %v2719 = vpop.f32.mrb[0].mxu0
        %v2720 = vadd.f32 0.0, %v2719
        %v2721 = vpop.f32.mrb[0].mxu0
        %v2722 = vpop.f32.mrb[0].mxu0
        %v2723 = vpop.f32.mrb[0].mxu0
        %2724 = vdwg.mxu0
        %v2725 = vadd.f32 %v2354, %v2560
        %v2726 = vadd.f32 %v2355, %v2563
        %v2727 = vadd.f32 %v2356, %v2568
        %v2728 = vadd.f32 %v2357, %v2571
        %v2729 = vadd.f32 %v2358, %v2576
        %v2730 = vadd.f32 %v2359, %v2579
        %v2731 = vadd.f32 %v2360, %v2584
        %v2732 = vadd.f32 %v2361, %v2587
        %v2733 = vadd.f32 %v2362, %v2592
        %v2734 = vadd.f32 %v2363, %v2595
        %v2735 = vadd.f32 %v2364, %v2600
        %v2736 = vadd.f32 %v2365, %v2603
        %v2737 = vadd.f32 %v2366, %v2608
        %v2738 = vadd.f32 %v2367, %v2611
        %v2739 = vadd.f32 %v2368, %v2616
        %v2740 = vadd.f32 %v2369, %v2619
        %v2741 = vadd.f32 %v2370, %v2624
        %v2742 = vadd.f32 %v2371, %v2627
        %v2743 = vadd.f32 %v2372, %v2632
        %v2744 = vadd.f32 %v2373, %v2635
        %v2745 = vadd.f32 %v2374, %v2640
        %v2746 = vadd.f32 %v2375, %v2643
        %v2747 = vadd.f32 %v2376, %v2648
        %v2748 = vadd.f32 %v2377, %v2651
        %v2749 = vadd.f32 %v2378, %v2656
        %v2750 = vadd.f32 %v2379, %v2659
        %v2751 = vadd.f32 %v2380, %v2664
        %v2752 = vadd.f32 %v2381, %v2667
        %v2753 = vadd.f32 %v2382, %v2672
        %v2754 = vadd.f32 %v2383, %v2675
        %v2755 = vadd.f32 %v2384, %v2680
        %v2756 = vadd.f32 %v2385, %v2683
        %v2757 = vadd.f32 %v2386, %v2688
        %v2758 = vadd.f32 %v2387, %v2691
        %v2759 = vadd.f32 %v2388, %v2696
        %v2760 = vadd.f32 %v2389, %v2699
        %v2761 = vadd.f32 %v2390, %v2704
        %v2762 = vadd.f32 %v2391, %v2707
        %v2763 = vadd.f32 %v2392, %v2712
        %v2764 = vadd.f32 %v2393, %v2715
        %v2765 = vadd.f32 %v2394, %v2720
        %v2766 = vld [vmem:[%s248 + $0x25] sm:$0xff]
        %v2767 = vld [vmem:[%s248 + $0x2d] sm:$0xff]
        %v2768 = vld [vmem:[%s248 + $0x35] sm:$0xff]
        %v2769 = vld [vmem:[%s248 + $0x3d] sm:$0xff]
        %v2770 = vld [vmem:[%s248 + $0x45] sm:$0xff]
        %v2771 = vld [vmem:[%s248 + $0x4d] sm:$0xff]
        %v2772 = vld [vmem:[%s248 + $0x55] sm:$0xff]
        %v2773 = vld [vmem:[%s248 + $0x5d] sm:$0xff]
        %v2774 = vld [vmem:[%s248 + $0x65] sm:$0xff]
        %v2775 = vld [vmem:[%s248 + $0x6d] sm:$0xff]
        %v2776 = vld [vmem:[%s248 + $0x75] sm:$0xff]
        %v2777 = vld [vmem:[%s248 + $0x7d] sm:$0xff]
        %v2778 = vld [vmem:[%s248 + $0x85] sm:$0xff]
        %v2779 = vld [vmem:[%s248 + $0x8d] sm:$0xff]
        %v2780 = vld [vmem:[%s248 + $0x95] sm:$0xff]
        %v2781 = vld [vmem:[%s248 + $0x9d] sm:$0xff]
        %v2782 = vld [vmem:[%s248 + $0xa5] sm:$0xff]
        %v2783 = vld [vmem:[%s248 + $0xad] sm:$0xff]
        %v2784 = vld [vmem:[%s248 + $0xb5] sm:$0xff]
        %v2785 = vld [vmem:[%s248 + $0xbd] sm:$0xff]
        %v2786 = vld [vmem:[%s248 + $0xc5] sm:$0xff]
        %v2787 = vld [vmem:[%s248 + $0xcd] sm:$0xff]
        %v2788 = vld [vmem:[%s248 + $0xd5] sm:$0xff]
        %v2789 = vld [vmem:[%s248 + $0xdd] sm:$0xff]
        %v2790 = vld [vmem:[%s248 + $0xe5] sm:$0xff]
        %v2791 = vld [vmem:[%s248 + $0xed] sm:$0xff]
        %v2792 = vld [vmem:[%s248 + $0xf5] sm:$0xff]
        %v2793 = vld [vmem:[%s248 + $0xfd] sm:$0xff]
        %v2794 = vld [vmem:[%s248 + $0x105] sm:$0xff]
        %v2795 = vld [vmem:[%s248 + $0x10d] sm:$0xff]
        %v2796 = vld [vmem:[%s248 + $0x115] sm:$0xff]
        %v2797 = vld [vmem:[%s248 + $0x11d] sm:$0xff]
        %v2798 = vld [vmem:[%s248 + $0x125] sm:$0xff]
        %v2799 = vld [vmem:[%s248 + $0x12d] sm:$0xff]
        %v2800 = vld [vmem:[%s248 + $0x135] sm:$0xff]
        %v2801 = vld [vmem:[%s248 + $0x13d] sm:$0xff]
        %v2802 = vld [vmem:[%s248 + $0x145] sm:$0xff]
        %v2803 = vld [vmem:[%s248 + $0x14d] sm:$0xff]
        %v2804 = vld [vmem:[%s248 + $0x155] sm:$0xff]
        %v2805 = vld [vmem:[%s248 + $0x15d] sm:$0xff]
        %v2806 = vld [vmem:[%s248 + $0x165] sm:$0xf]
        %v2807 = vpack.c.bf16 %v2767, %v2766
        %v2808 = vpack.c.bf16 %v2769, %v2768
        %v2809 = vpack.c.bf16 %v2771, %v2770
        %v2810 = vpack.c.bf16 %v2773, %v2772
        %v2811 = vpack.c.bf16 %v2775, %v2774
        %v2812 = vpack.c.bf16 %v2777, %v2776
        %v2813 = vpack.c.bf16 %v2779, %v2778
        %v2814 = vpack.c.bf16 %v2781, %v2780
        %v2815 = vpack.c.bf16 %v2783, %v2782
        %v2816 = vpack.c.bf16 %v2785, %v2784
        %v2817 = vpack.c.bf16 %v2787, %v2786
        %v2818 = vpack.c.bf16 %v2789, %v2788
        %v2819 = vpack.c.bf16 %v2791, %v2790
        %v2820 = vpack.c.bf16 %v2793, %v2792
        %v2821 = vpack.c.bf16 %v2795, %v2794
        %v2822 = vpack.c.bf16 %v2797, %v2796
        %v2823 = vpack.c.bf16 %v2799, %v2798
        %v2824 = vpack.c.bf16 %v2801, %v2800
        %v2825 = vpack.c.bf16 %v2803, %v2802
        %v2826 = vpack.c.bf16 %v2805, %v2804
        %v2827 = vpack.c.bf16 %v2806, %v2806
        %s2828 = scalar_lea.vmem %s1, 14
        %v2829 = vld [vmem:[%s2828] sm:$0x3]
        %v2831 = vsel %vm377, %v2807, 0
        %v2834 = vsel %vm377, %v2808, 0
        %v2837 = vsel %vm377, %v2809, 0
        %v2840 = vsel %vm377, %v2810, 0
        %v2843 = vsel %vm377, %v2811, 0
        %v2846 = vsel %vm377, %v2812, 0
        %v2849 = vsel %vm377, %v2813, 0
        %v2852 = vsel %vm377, %v2814, 0
        %v2855 = vsel %vm377, %v2815, 0
        %v2858 = vsel %vm377, %v2816, 0
        %v2861 = vsel %vm377, %v2817, 0
        %v2864 = vsel %vm377, %v2818, 0
        %v2867 = vsel %vm377, %v2819, 0
        %v2870 = vsel %vm377, %v2820, 0
        %v2873 = vsel %vm377, %v2821, 0
        %v2876 = vsel %vm377, %v2822, 0
        %v2879 = vsel %vm377, %v2823, 0
        %v2882 = vsel %vm377, %v2824, 0
        %v2885 = vsel %vm377, %v2825, 0
        %v2888 = vsel %vm377, %v2826, 0
        %v2891 = vsel %vm377, %v2827, 0
        %v2894 = vsel %vm441, %v2829, 0
        %2896 = vmatprep.subr.bf16.mxu0 0
        %2897 = vmatpush1.bf16.msra.mxu0 %v2894
        %2898 = vmatprep.subr.bf16.mxu0 0
        %2899 = vmatpush1.bf16.msra.mxu0 0
        %2900 = vmatprep.subr.bf16.mxu0 0
        %2901 = vmatpush1.bf16.msra.mxu0 0
        %2902 = vmatprep.subr.bf16.mxu0 0
        %2903 = vmatpush1.bf16.msra.mxu0 0
        %2904 = vmatprep.subr.bf16.mxu0 0
        %2905 = vmatpush1.bf16.msra.mxu0 0
        %2906 = vmatprep.subr.bf16.mxu0 0
        %2907 = vmatpush1.bf16.msra.mxu0 0
        %2908 = vmatprep.subr.bf16.mxu0 0
        %2909 = vmatpush1.bf16.msra.mxu0 0
        %2910 = vmatprep.subr.bf16.mxu0 0
        %2911 = vmatpush1.bf16.msra.mxu0 0
        %2912 = vmatprep.subr.bf16.mxu0 0
        %2913 = vmatpush1.bf16.msra.mxu0 0
        %2914 = vmatprep.subr.bf16.mxu0 0
        %2915 = vmatpush1.bf16.msra.mxu0 0
        %2916 = vmatprep.subr.bf16.mxu0 0
        %2917 = vmatpush1.bf16.msra.mxu0 0
        %2918 = vmatprep.subr.bf16.mxu0 0
        %2919 = vmatpush1.bf16.msra.mxu0 0
        %2920 = vmatprep.subr.bf16.mxu0 0
        %2921 = vmatpush1.bf16.msra.mxu0 0
        %2922 = vmatprep.subr.bf16.mxu0 0
        %2923 = vmatpush1.bf16.msra.mxu0 0
        %2924 = vmatprep.subr.bf16.mxu0 0
        %2925 = vmatpush1.bf16.msra.mxu0 0
        %2926 = vmatprep.subr.bf16.mxu0 0
        %2927 = vmatpush1.bf16.msra.mxu0 0
        %2928 = vmatprep.mubr.bf16.mxu0 0
        %2929 = vmatmul.mubr.bf16.gmra.mrb[0].mxu0 %v2831
        %v2930 = vpop.f32.mrb[0].mxu0
        %v2931 = vadd.f32 0.0, %v2930
        %v2932 = vpop.f32.mrb[0].mxu0
        %v2933 = vpop.f32.mrb[0].mxu0
        %v2934 = vadd.f32 0.0, %v2933
        %v2935 = vpop.f32.mrb[0].mxu0
        %2936 = vmatprep.mubr.bf16.mxu0 0
        %2937 = vmatmul.mubr.bf16.gmra.mrb[0].mxu0 %v2834
        %v2938 = vpop.f32.mrb[0].mxu0
        %v2939 = vadd.f32 0.0, %v2938
        %v2940 = vpop.f32.mrb[0].mxu0
        %v2941 = vpop.f32.mrb[0].mxu0
        %v2942 = vadd.f32 0.0, %v2941
        %v2943 = vpop.f32.mrb[0].mxu0
        %2944 = vmatprep.mubr.bf16.mxu0 0
        %2945 = vmatmul.mubr.bf16.gmra.mrb[0].mxu0 %v2837
        %v2946 = vpop.f32.mrb[0].mxu0
        %v2947 = vadd.f32 0.0, %v2946
        %v2948 = vpop.f32.mrb[0].mxu0
        %v2949 = vpop.f32.mrb[0].mxu0
        %v2950 = vadd.f32 0.0, %v2949
        %v2951 = vpop.f32.mrb[0].mxu0
        %2952 = vmatprep.mubr.bf16.mxu0 0
        %2953 = vmatmul.mubr.bf16.gmra.mrb[0].mxu0 %v2840
        %v2954 = vpop.f32.mrb[0].mxu0
        %v2955 = vadd.f32 0.0, %v2954
        %v2956 = vpop.f32.mrb[0].mxu0
        %v2957 = vpop.f32.mrb[0].mxu0
        %v2958 = vadd.f32 0.0, %v2957
        %v2959 = vpop.f32.mrb[0].mxu0
        %2960 = vmatprep.mubr.bf16.mxu0 0
        %2961 = vmatmul.mubr.bf16.gmra.mrb[0].mxu0 %v2843
        %v2962 = vpop.f32.mrb[0].mxu0
        %v2963 = vadd.f32 0.0, %v2962
        %v2964 = vpop.f32.mrb[0].mxu0
        %v2965 = vpop.f32.mrb[0].mxu0
        %v2966 = vadd.f32 0.0, %v2965
        %v2967 = vpop.f32.mrb[0].mxu0
        %2968 = vmatprep.mubr.bf16.mxu0 0
        %2969 = vmatmul.mubr.bf16.gmra.mrb[0].mxu0 %v2846
        %v2970 = vpop.f32.mrb[0].mxu0
        %v2971 = vadd.f32 0.0, %v2970
        %v2972 = vpop.f32.mrb[0].mxu0
        %v2973 = vpop.f32.mrb[0].mxu0
        %v2974 = vadd.f32 0.0, %v2973
        %v2975 = vpop.f32.mrb[0].mxu0
        %2976 = vmatprep.mubr.bf16.mxu0 0
        %2977 = vmatmul.mubr.bf16.gmra.mrb[0].mxu0 %v2849
        %v2978 = vpop.f32.mrb[0].mxu0
        %v2979 = vadd.f32 0.0, %v2978
        %v2980 = vpop.f32.mrb[0].mxu0
        %v2981 = vpop.f32.mrb[0].mxu0
        %v2982 = vadd.f32 0.0, %v2981
        %v2983 = vpop.f32.mrb[0].mxu0
        %2984 = vmatprep.mubr.bf16.mxu0 0
        %2985 = vmatmul.mubr.bf16.gmra.mrb[0].mxu0 %v2852
        %v2986 = vpop.f32.mrb[0].mxu0
        %v2987 = vadd.f32 0.0, %v2986
        %v2988 = vpop.f32.mrb[0].mxu0
        %v2989 = vpop.f32.mrb[0].mxu0
        %v2990 = vadd.f32 0.0, %v2989
        %v2991 = vpop.f32.mrb[0].mxu0
        %2992 = vmatprep.mubr.bf16.mxu0 0
        %2993 = vmatmul.mubr.bf16.gmra.mrb[0].mxu0 %v2855
        %v2994 = vpop.f32.mrb[0].mxu0
        %v2995 = vadd.f32 0.0, %v2994
        %v2996 = vpop.f32.mrb[0].mxu0
        %v2997 = vpop.f32.mrb[0].mxu0
        %v2998 = vadd.f32 0.0, %v2997
        %v2999 = vpop.f32.mrb[0].mxu0
        %3000 = vmatprep.mubr.bf16.mxu0 0
        %3001 = vmatmul.mubr.bf16.gmra.mrb[0].mxu0 %v2858
        %v3002 = vpop.f32.mrb[0].mxu0
        %v3003 = vadd.f32 0.0, %v3002
        %v3004 = vpop.f32.mrb[0].mxu0
        %v3005 = vpop.f32.mrb[0].mxu0
        %v3006 = vadd.f32 0.0, %v3005
        %v3007 = vpop.f32.mrb[0].mxu0
        %3008 = vmatprep.mubr.bf16.mxu0 0
        %3009 = vmatmul.mubr.bf16.gmra.mrb[0].mxu0 %v2861
        %v3010 = vpop.f32.mrb[0].mxu0
        %v3011 = vadd.f32 0.0, %v3010
        %v3012 = vpop.f32.mrb[0].mxu0
        %v3013 = vpop.f32.mrb[0].mxu0
        %v3014 = vadd.f32 0.0, %v3013
        %v3015 = vpop.f32.mrb[0].mxu0
        %3016 = vmatprep.mubr.bf16.mxu0 0
        %3017 = vmatmul.mubr.bf16.gmra.mrb[0].mxu0 %v2864
        %v3018 = vpop.f32.mrb[0].mxu0
        %v3019 = vadd.f32 0.0, %v3018
        %v3020 = vpop.f32.mrb[0].mxu0
        %v3021 = vpop.f32.mrb[0].mxu0
        %v3022 = vadd.f32 0.0, %v3021
        %v3023 = vpop.f32.mrb[0].mxu0
        %3024 = vmatprep.mubr.bf16.mxu0 0
        %3025 = vmatmul.mubr.bf16.gmra.mrb[0].mxu0 %v2867
        %v3026 = vpop.f32.mrb[0].mxu0
        %v3027 = vadd.f32 0.0, %v3026
        %v3028 = vpop.f32.mrb[0].mxu0
        %v3029 = vpop.f32.mrb[0].mxu0
        %v3030 = vadd.f32 0.0, %v3029
        %v3031 = vpop.f32.mrb[0].mxu0
        %3032 = vmatprep.mubr.bf16.mxu0 0
        %3033 = vmatmul.mubr.bf16.gmra.mrb[0].mxu0 %v2870
        %v3034 = vpop.f32.mrb[0].mxu0
        %v3035 = vadd.f32 0.0, %v3034
        %v3036 = vpop.f32.mrb[0].mxu0
        %v3037 = vpop.f32.mrb[0].mxu0
        %v3038 = vadd.f32 0.0, %v3037
        %v3039 = vpop.f32.mrb[0].mxu0
        %3040 = vmatprep.mubr.bf16.mxu0 0
        %3041 = vmatmul.mubr.bf16.gmra.mrb[0].mxu0 %v2873
        %v3042 = vpop.f32.mrb[0].mxu0
        %v3043 = vadd.f32 0.0, %v3042
        %v3044 = vpop.f32.mrb[0].mxu0
        %v3045 = vpop.f32.mrb[0].mxu0
        %v3046 = vadd.f32 0.0, %v3045
        %v3047 = vpop.f32.mrb[0].mxu0
        %3048 = vmatprep.mubr.bf16.mxu0 0
        %3049 = vmatmul.mubr.bf16.gmra.mrb[0].mxu0 %v2876
        %v3050 = vpop.f32.mrb[0].mxu0
        %v3051 = vadd.f32 0.0, %v3050
        %v3052 = vpop.f32.mrb[0].mxu0
        %v3053 = vpop.f32.mrb[0].mxu0
        %v3054 = vadd.f32 0.0, %v3053
        %v3055 = vpop.f32.mrb[0].mxu0
        %3056 = vmatprep.mubr.bf16.mxu0 0
        %3057 = vmatmul.mubr.bf16.gmra.mrb[0].mxu0 %v2879
        %v3058 = vpop.f32.mrb[0].mxu0
        %v3059 = vadd.f32 0.0, %v3058
        %v3060 = vpop.f32.mrb[0].mxu0
        %v3061 = vpop.f32.mrb[0].mxu0
        %v3062 = vadd.f32 0.0, %v3061
        %v3063 = vpop.f32.mrb[0].mxu0
        %3064 = vmatprep.mubr.bf16.mxu0 0
        %3065 = vmatmul.mubr.bf16.gmra.mrb[0].mxu0 %v2882
        %v3066 = vpop.f32.mrb[0].mxu0
        %v3067 = vadd.f32 0.0, %v3066
        %v3068 = vpop.f32.mrb[0].mxu0
        %v3069 = vpop.f32.mrb[0].mxu0
        %v3070 = vadd.f32 0.0, %v3069
        %v3071 = vpop.f32.mrb[0].mxu0
        %3072 = vmatprep.mubr.bf16.mxu0 0
        %3073 = vmatmul.mubr.bf16.gmra.mrb[0].mxu0 %v2885
        %v3074 = vpop.f32.mrb[0].mxu0
        %v3075 = vadd.f32 0.0, %v3074
        %v3076 = vpop.f32.mrb[0].mxu0
        %v3077 = vpop.f32.mrb[0].mxu0
        %v3078 = vadd.f32 0.0, %v3077
        %v3079 = vpop.f32.mrb[0].mxu0
        %3080 = vmatprep.mubr.bf16.mxu0 0
        %3081 = vmatmul.mubr.bf16.gmra.mrb[0].mxu0 %v2888
        %v3082 = vpop.f32.mrb[0].mxu0
        %v3083 = vadd.f32 0.0, %v3082
        %v3084 = vpop.f32.mrb[0].mxu0
        %v3085 = vpop.f32.mrb[0].mxu0
        %v3086 = vadd.f32 0.0, %v3085
        %v3087 = vpop.f32.mrb[0].mxu0
        %3088 = vmatprep.mubr.bf16.mxu0 0
        %3089 = vmatmul.mubr.bf16.gmra.mrb[0].mxu0 %v2891
        %v3090 = vpop.f32.mrb[0].mxu0
        %v3091 = vadd.f32 0.0, %v3090
        %v3092 = vpop.f32.mrb[0].mxu0
        %v3093 = vpop.f32.mrb[0].mxu0
        %v3094 = vpop.f32.mrb[0].mxu0
        %3095 = vdwg.mxu0
        %v3096 = vadd.f32 %v2725, %v2931
        %v3097 = vadd.f32 %v2726, %v2934
        %v3098 = vadd.f32 %v2727, %v2939
        %v3099 = vadd.f32 %v2728, %v2942
        %v3100 = vadd.f32 %v2729, %v2947
        %v3101 = vadd.f32 %v2730, %v2950
        %v3102 = vadd.f32 %v2731, %v2955
        %v3103 = vadd.f32 %v2732, %v2958
        %v3104 = vadd.f32 %v2733, %v2963
        %v3105 = vadd.f32 %v2734, %v2966
        %v3106 = vadd.f32 %v2735, %v2971
        %v3107 = vadd.f32 %v2736, %v2974
        %v3108 = vadd.f32 %v2737, %v2979
        %v3109 = vadd.f32 %v2738, %v2982
        %v3110 = vadd.f32 %v2739, %v2987
        %v3111 = vadd.f32 %v2740, %v2990
        %v3112 = vadd.f32 %v2741, %v2995
        %v3113 = vadd.f32 %v2742, %v2998
        %v3114 = vadd.f32 %v2743, %v3003
        %v3115 = vadd.f32 %v2744, %v3006
        %v3116 = vadd.f32 %v2745, %v3011
        %v3117 = vadd.f32 %v2746, %v3014
        %v3118 = vadd.f32 %v2747, %v3019
        %v3119 = vadd.f32 %v2748, %v3022
        %v3120 = vadd.f32 %v2749, %v3027
        %v3121 = vadd.f32 %v2750, %v3030
        %v3122 = vadd.f32 %v2751, %v3035
        %v3123 = vadd.f32 %v2752, %v3038
        %v3124 = vadd.f32 %v2753, %v3043
        %v3125 = vadd.f32 %v2754, %v3046
        %v3126 = vadd.f32 %v2755, %v3051
        %v3127 = vadd.f32 %v2756, %v3054
        %v3128 = vadd.f32 %v2757, %v3059
        %v3129 = vadd.f32 %v2758, %v3062
        %v3130 = vadd.f32 %v2759, %v3067
        %v3131 = vadd.f32 %v2760, %v3070
        %v3132 = vadd.f32 %v2761, %v3075
        %v3133 = vadd.f32 %v2762, %v3078
        %v3134 = vadd.f32 %v2763, %v3083
        %v3135 = vadd.f32 %v2764, %v3086
        %v3136 = vadd.f32 %v2765, %v3091
        %v3137 = vld [vmem:[%s248 + $0x26] sm:$0xff]
        %v3138 = vld [vmem:[%s248 + $0x2e] sm:$0xff]
        %v3139 = vld [vmem:[%s248 + $0x36] sm:$0xff]
        %v3140 = vld [vmem:[%s248 + $0x3e] sm:$0xff]
        %v3141 = vld [vmem:[%s248 + $0x46] sm:$0xff]
        %v3142 = vld [vmem:[%s248 + $0x4e] sm:$0xff]
        %v3143 = vld [vmem:[%s248 + $0x56] sm:$0xff]
        %v3144 = vld [vmem:[%s248 + $0x5e] sm:$0xff]
        %v3145 = vld [vmem:[%s248 + $0x66] sm:$0xff]
        %v3146 = vld [vmem:[%s248 + $0x6e] sm:$0xff]
        %v3147 = vld [vmem:[%s248 + $0x76] sm:$0xff]
        %v3148 = vld [vmem:[%s248 + $0x7e] sm:$0xff]
        %v3149 = vld [vmem:[%s248 + $0x86] sm:$0xff]
        %v3150 = vld [vmem:[%s248 + $0x8e] sm:$0xff]
        %v3151 = vld [vmem:[%s248 + $0x96] sm:$0xff]
        %v3152 = vld [vmem:[%s248 + $0x9e] sm:$0xff]
        %v3153 = vld [vmem:[%s248 + $0xa6] sm:$0xff]
        %v3154 = vld [vmem:[%s248 + $0xae] sm:$0xff]
        %v3155 = vld [vmem:[%s248 + $0xb6] sm:$0xff]
        %v3156 = vld [vmem:[%s248 + $0xbe] sm:$0xff]
        %v3157 = vld [vmem:[%s248 + $0xc6] sm:$0xff]
        %v3158 = vld [vmem:[%s248 + $0xce] sm:$0xff]
        %v3159 = vld [vmem:[%s248 + $0xd6] sm:$0xff]
        %v3160 = vld [vmem:[%s248 + $0xde] sm:$0xff]
        %v3161 = vld [vmem:[%s248 + $0xe6] sm:$0xff]
        %v3162 = vld [vmem:[%s248 + $0xee] sm:$0xff]
        %v3163 = vld [vmem:[%s248 + $0xf6] sm:$0xff]
        %v3164 = vld [vmem:[%s248 + $0xfe] sm:$0xff]
        %v3165 = vld [vmem:[%s248 + $0x106] sm:$0xff]
        %v3166 = vld [vmem:[%s248 + $0x10e] sm:$0xff]
        %v3167 = vld [vmem:[%s248 + $0x116] sm:$0xff]
        %v3168 = vld [vmem:[%s248 + $0x11e] sm:$0xff]
        %v3169 = vld [vmem:[%s248 + $0x126] sm:$0xff]
        %v3170 = vld [vmem:[%s248 + $0x12e] sm:$0xff]
        %v3171 = vld [vmem:[%s248 + $0x136] sm:$0xff]
        %v3172 = vld [vmem:[%s248 + $0x13e] sm:$0xff]
        %v3173 = vld [vmem:[%s248 + $0x146] sm:$0xff]
        %v3174 = vld [vmem:[%s248 + $0x14e] sm:$0xff]
        %v3175 = vld [vmem:[%s248 + $0x156] sm:$0xff]
        %v3176 = vld [vmem:[%s248 + $0x15e] sm:$0xff]
        %v3177 = vld [vmem:[%s248 + $0x166] sm:$0xf]
        %v3178 = vpack.c.bf16 %v3138, %v3137
        %v3179 = vpack.c.bf16 %v3140, %v3139
        %v3180 = vpack.c.bf16 %v3142, %v3141
        %v3181 = vpack.c.bf16 %v3144, %v3143
        %v3182 = vpack.c.bf16 %v3146, %v3145
        %v3183 = vpack.c.bf16 %v3148, %v3147
        %v3184 = vpack.c.bf16 %v3150, %v3149
        %v3185 = vpack.c.bf16 %v3152, %v3151
        %v3186 = vpack.c.bf16 %v3154, %v3153
        %v3187 = vpack.c.bf16 %v3156, %v3155
        %v3188 = vpack.c.bf16 %v3158, %v3157
        %v3189 = vpack.c.bf16 %v3160, %v3159
        %v3190 = vpack.c.bf16 %v3162, %v3161
        %v3191 = vpack.c.bf16 %v3164, %v3163
        %v3192 = vpack.c.bf16 %v3166, %v3165
        %v3193 = vpack.c.bf16 %v3168, %v3167
        %v3194 = vpack.c.bf16 %v3170, %v3169
        %v3195 = vpack.c.bf16 %v3172, %v3171
        %v3196 = vpack.c.bf16 %v3174, %v3173
        %v3197 = vpack.c.bf16 %v3176, %v3175
        %v3198 = vpack.c.bf16 %v3177, %v3177
        %s3199 = scalar_lea.vmem %s1, 16
        %v3200 = vld [vmem:[%s3199] sm:$0x3]
        %v3202 = vsel %vm377, %v3178, 0
        %v3205 = vsel %vm377, %v3179, 0
        %v3208 = vsel %vm377, %v3180, 0
        %v3211 = vsel %vm377, %v3181, 0
        %v3214 = vsel %vm377, %v3182, 0
        %v3217 = vsel %vm377, %v3183, 0
        %v3220 = vsel %vm377, %v3184, 0
        %v3223 = vsel %vm377, %v3185, 0
        %v3226 = vsel %vm377, %v3186, 0
        %v3229 = vsel %vm377, %v3187, 0
        %v3232 = vsel %vm377, %v3188, 0
        %v3235 = vsel %vm377, %v3189, 0
        %v3238 = vsel %vm377, %v3190, 0
        %v3241 = vsel %vm377, %v3191, 0
        %v3244 = vsel %vm377, %v3192, 0
        %v3247 = vsel %vm377, %v3193, 0
        %v3250 = vsel %vm377, %v3194, 0
        %v3253 = vsel %vm377, %v3195, 0
        %v3256 = vsel %vm377, %v3196, 0
        %v3259 = vsel %vm377, %v3197, 0
        %v3262 = vsel %vm377, %v3198, 0
        %v3265 = vsel %vm441, %v3200, 0
        %3267 = vmatprep.subr.bf16.mxu0 0
        %3268 = vmatpush1.bf16.msra.mxu0 %v3265
        %3269 = vmatprep.subr.bf16.mxu0 0
        %3270 = vmatpush1.bf16.msra.mxu0 0
        %3271 = vmatprep.subr.bf16.mxu0 0
        %3272 = vmatpush1.bf16.msra.mxu0 0
        %3273 = vmatprep.subr.bf16.mxu0 0
        %3274 = vmatpush1.bf16.msra.mxu0 0
        %3275 = vmatprep.subr.bf16.mxu0 0
        %3276 = vmatpush1.bf16.msra.mxu0 0
        %3277 = vmatprep.subr.bf16.mxu0 0
        %3278 = vmatpush1.bf16.msra.mxu0 0
        %3279 = vmatprep.subr.bf16.mxu0 0
        %3280 = vmatpush1.bf16.msra.mxu0 0
        %3281 = vmatprep.subr.bf16.mxu0 0
        %3282 = vmatpush1.bf16.msra.mxu0 0
        %3283 = vmatprep.subr.bf16.mxu0 0
        %3284 = vmatpush1.bf16.msra.mxu0 0
        %3285 = vmatprep.subr.bf16.mxu0 0
        %3286 = vmatpush1.bf16.msra.mxu0 0
        %3287 = vmatprep.subr.bf16.mxu0 0
        %3288 = vmatpush1.bf16.msra.mxu0 0
        %3289 = vmatprep.subr.bf16.mxu0 0
        %3290 = vmatpush1.bf16.msra.mxu0 0
        %3291 = vmatprep.subr.bf16.mxu0 0
        %3292 = vmatpush1.bf16.msra.mxu0 0
        %3293 = vmatprep.subr.bf16.mxu0 0
        %3294 = vmatpush1.bf16.msra.mxu0 0
        %3295 = vmatprep.subr.bf16.mxu0 0
        %3296 = vmatpush1.bf16.msra.mxu0 0
        %3297 = vmatprep.subr.bf16.mxu0 0
        %3298 = vmatpush1.bf16.msra.mxu0 0
        %3299 = vmatprep.mubr.bf16.mxu0 0
        %3300 = vmatmul.mubr.bf16.gmra.mrb[0].mxu0 %v3202
        %v3301 = vpop.f32.mrb[0].mxu0
        %v3302 = vadd.f32 0.0, %v3301
        %v3303 = vpop.f32.mrb[0].mxu0
        %v3304 = vpop.f32.mrb[0].mxu0
        %v3305 = vadd.f32 0.0, %v3304
        %v3306 = vpop.f32.mrb[0].mxu0
        %3307 = vmatprep.mubr.bf16.mxu0 0
        %3308 = vmatmul.mubr.bf16.gmra.mrb[0].mxu0 %v3205
        %v3309 = vpop.f32.mrb[0].mxu0
        %v3310 = vadd.f32 0.0, %v3309
        %v3311 = vpop.f32.mrb[0].mxu0
        %v3312 = vpop.f32.mrb[0].mxu0
        %v3313 = vadd.f32 0.0, %v3312
        %v3314 = vpop.f32.mrb[0].mxu0
        %3315 = vmatprep.mubr.bf16.mxu0 0
        %3316 = vmatmul.mubr.bf16.gmra.mrb[0].mxu0 %v3208
        %v3317 = vpop.f32.mrb[0].mxu0
        %v3318 = vadd.f32 0.0, %v3317
        %v3319 = vpop.f32.mrb[0].mxu0
        %v3320 = vpop.f32.mrb[0].mxu0
        %v3321 = vadd.f32 0.0, %v3320
        %v3322 = vpop.f32.mrb[0].mxu0
        %3323 = vmatprep.mubr.bf16.mxu0 0
        %3324 = vmatmul.mubr.bf16.gmra.mrb[0].mxu0 %v3211
        %v3325 = vpop.f32.mrb[0].mxu0
        %v3326 = vadd.f32 0.0, %v3325
        %v3327 = vpop.f32.mrb[0].mxu0
        %v3328 = vpop.f32.mrb[0].mxu0
        %v3329 = vadd.f32 0.0, %v3328
        %v3330 = vpop.f32.mrb[0].mxu0
        %3331 = vmatprep.mubr.bf16.mxu0 0
        %3332 = vmatmul.mubr.bf16.gmra.mrb[0].mxu0 %v3214
        %v3333 = vpop.f32.mrb[0].mxu0
        %v3334 = vadd.f32 0.0, %v3333
        %v3335 = vpop.f32.mrb[0].mxu0
        %v3336 = vpop.f32.mrb[0].mxu0
        %v3337 = vadd.f32 0.0, %v3336
        %v3338 = vpop.f32.mrb[0].mxu0
        %3339 = vmatprep.mubr.bf16.mxu0 0
        %3340 = vmatmul.mubr.bf16.gmra.mrb[0].mxu0 %v3217
        %v3341 = vpop.f32.mrb[0].mxu0
        %v3342 = vadd.f32 0.0, %v3341
        %v3343 = vpop.f32.mrb[0].mxu0
        %v3344 = vpop.f32.mrb[0].mxu0
        %v3345 = vadd.f32 0.0, %v3344
        %v3346 = vpop.f32.mrb[0].mxu0
        %3347 = vmatprep.mubr.bf16.mxu0 0
        %3348 = vmatmul.mubr.bf16.gmra.mrb[0].mxu0 %v3220
        %v3349 = vpop.f32.mrb[0].mxu0
        %v3350 = vadd.f32 0.0, %v3349
        %v3351 = vpop.f32.mrb[0].mxu0
        %v3352 = vpop.f32.mrb[0].mxu0
        %v3353 = vadd.f32 0.0, %v3352
        %v3354 = vpop.f32.mrb[0].mxu0
        %3355 = vmatprep.mubr.bf16.mxu0 0
        %3356 = vmatmul.mubr.bf16.gmra.mrb[0].mxu0 %v3223
        %v3357 = vpop.f32.mrb[0].mxu0
        %v3358 = vadd.f32 0.0, %v3357
        %v3359 = vpop.f32.mrb[0].mxu0
        %v3360 = vpop.f32.mrb[0].mxu0
        %v3361 = vadd.f32 0.0, %v3360
        %v3362 = vpop.f32.mrb[0].mxu0
        %3363 = vmatprep.mubr.bf16.mxu0 0
        %3364 = vmatmul.mubr.bf16.gmra.mrb[0].mxu0 %v3226
        %v3365 = vpop.f32.mrb[0].mxu0
        %v3366 = vadd.f32 0.0, %v3365
        %v3367 = vpop.f32.mrb[0].mxu0
        %v3368 = vpop.f32.mrb[0].mxu0
        %v3369 = vadd.f32 0.0, %v3368
        %v3370 = vpop.f32.mrb[0].mxu0
        %3371 = vmatprep.mubr.bf16.mxu0 0
        %3372 = vmatmul.mubr.bf16.gmra.mrb[0].mxu0 %v3229
        %v3373 = vpop.f32.mrb[0].mxu0
        %v3374 = vadd.f32 0.0, %v3373
        %v3375 = vpop.f32.mrb[0].mxu0
        %v3376 = vpop.f32.mrb[0].mxu0
        %v3377 = vadd.f32 0.0, %v3376
        %v3378 = vpop.f32.mrb[0].mxu0
        %3379 = vmatprep.mubr.bf16.mxu0 0
        %3380 = vmatmul.mubr.bf16.gmra.mrb[0].mxu0 %v3232
        %v3381 = vpop.f32.mrb[0].mxu0
        %v3382 = vadd.f32 0.0, %v3381
        %v3383 = vpop.f32.mrb[0].mxu0
        %v3384 = vpop.f32.mrb[0].mxu0
        %v3385 = vadd.f32 0.0, %v3384
        %v3386 = vpop.f32.mrb[0].mxu0
        %3387 = vmatprep.mubr.bf16.mxu0 0
        %3388 = vmatmul.mubr.bf16.gmra.mrb[0].mxu0 %v3235
        %v3389 = vpop.f32.mrb[0].mxu0
        %v3390 = vadd.f32 0.0, %v3389
        %v3391 = vpop.f32.mrb[0].mxu0
        %v3392 = vpop.f32.mrb[0].mxu0
        %v3393 = vadd.f32 0.0, %v3392
        %v3394 = vpop.f32.mrb[0].mxu0
        %3395 = vmatprep.mubr.bf16.mxu0 0
        %3396 = vmatmul.mubr.bf16.gmra.mrb[0].mxu0 %v3238
        %v3397 = vpop.f32.mrb[0].mxu0
        %v3398 = vadd.f32 0.0, %v3397
        %v3399 = vpop.f32.mrb[0].mxu0
        %v3400 = vpop.f32.mrb[0].mxu0
        %v3401 = vadd.f32 0.0, %v3400
        %v3402 = vpop.f32.mrb[0].mxu0
        %3403 = vmatprep.mubr.bf16.mxu0 0
        %3404 = vmatmul.mubr.bf16.gmra.mrb[0].mxu0 %v3241
        %v3405 = vpop.f32.mrb[0].mxu0
        %v3406 = vadd.f32 0.0, %v3405
        %v3407 = vpop.f32.mrb[0].mxu0
        %v3408 = vpop.f32.mrb[0].mxu0
        %v3409 = vadd.f32 0.0, %v3408
        %v3410 = vpop.f32.mrb[0].mxu0
        %3411 = vmatprep.mubr.bf16.mxu0 0
        %3412 = vmatmul.mubr.bf16.gmra.mrb[0].mxu0 %v3244
        %v3413 = vpop.f32.mrb[0].mxu0
        %v3414 = vadd.f32 0.0, %v3413
        %v3415 = vpop.f32.mrb[0].mxu0
        %v3416 = vpop.f32.mrb[0].mxu0
        %v3417 = vadd.f32 0.0, %v3416
        %v3418 = vpop.f32.mrb[0].mxu0
        %3419 = vmatprep.mubr.bf16.mxu0 0
        %3420 = vmatmul.mubr.bf16.gmra.mrb[0].mxu0 %v3247
        %v3421 = vpop.f32.mrb[0].mxu0
        %v3422 = vadd.f32 0.0, %v3421
        %v3423 = vpop.f32.mrb[0].mxu0
        %v3424 = vpop.f32.mrb[0].mxu0
        %v3425 = vadd.f32 0.0, %v3424
        %v3426 = vpop.f32.mrb[0].mxu0
        %3427 = vmatprep.mubr.bf16.mxu0 0
        %3428 = vmatmul.mubr.bf16.gmra.mrb[0].mxu0 %v3250
        %v3429 = vpop.f32.mrb[0].mxu0
        %v3430 = vadd.f32 0.0, %v3429
        %v3431 = vpop.f32.mrb[0].mxu0
        %v3432 = vpop.f32.mrb[0].mxu0
        %v3433 = vadd.f32 0.0, %v3432
        %v3434 = vpop.f32.mrb[0].mxu0
        %3435 = vmatprep.mubr.bf16.mxu0 0
        %3436 = vmatmul.mubr.bf16.gmra.mrb[0].mxu0 %v3253
        %v3437 = vpop.f32.mrb[0].mxu0
        %v3438 = vadd.f32 0.0, %v3437
        %v3439 = vpop.f32.mrb[0].mxu0
        %v3440 = vpop.f32.mrb[0].mxu0
        %v3441 = vadd.f32 0.0, %v3440
        %v3442 = vpop.f32.mrb[0].mxu0
        %3443 = vmatprep.mubr.bf16.mxu0 0
        %3444 = vmatmul.mubr.bf16.gmra.mrb[0].mxu0 %v3256
        %v3445 = vpop.f32.mrb[0].mxu0
        %v3446 = vadd.f32 0.0, %v3445
        %v3447 = vpop.f32.mrb[0].mxu0
        %v3448 = vpop.f32.mrb[0].mxu0
        %v3449 = vadd.f32 0.0, %v3448
        %v3450 = vpop.f32.mrb[0].mxu0
        %3451 = vmatprep.mubr.bf16.mxu0 0
        %3452 = vmatmul.mubr.bf16.gmra.mrb[0].mxu0 %v3259
        %v3453 = vpop.f32.mrb[0].mxu0
        %v3454 = vadd.f32 0.0, %v3453
        %v3455 = vpop.f32.mrb[0].mxu0
        %v3456 = vpop.f32.mrb[0].mxu0
        %v3457 = vadd.f32 0.0, %v3456
        %v3458 = vpop.f32.mrb[0].mxu0
        %3459 = vmatprep.mubr.bf16.mxu0 0
        %3460 = vmatmul.mubr.bf16.gmra.mrb[0].mxu0 %v3262
        %v3461 = vpop.f32.mrb[0].mxu0
        %v3462 = vadd.f32 0.0, %v3461
        %v3463 = vpop.f32.mrb[0].mxu0
        %v3464 = vpop.f32.mrb[0].mxu0
        %v3465 = vpop.f32.mrb[0].mxu0
        %3466 = vdwg.mxu0
        %v3467 = vadd.f32 %v3096, %v3302
        %v3468 = vadd.f32 %v3097, %v3305
        %v3469 = vadd.f32 %v3098, %v3310
        %v3470 = vadd.f32 %v3099, %v3313
        %v3471 = vadd.f32 %v3100, %v3318
        %v3472 = vadd.f32 %v3101, %v3321
        %v3473 = vadd.f32 %v3102, %v3326
        %v3474 = vadd.f32 %v3103, %v3329
        %v3475 = vadd.f32 %v3104, %v3334
        %v3476 = vadd.f32 %v3105, %v3337
        %v3477 = vadd.f32 %v3106, %v3342
        %v3478 = vadd.f32 %v3107, %v3345
        %v3479 = vadd.f32 %v3108, %v3350
        %v3480 = vadd.f32 %v3109, %v3353
        %v3481 = vadd.f32 %v3110, %v3358
        %v3482 = vadd.f32 %v3111, %v3361
        %v3483 = vadd.f32 %v3112, %v3366
        %v3484 = vadd.f32 %v3113, %v3369
        %v3485 = vadd.f32 %v3114, %v3374
        %v3486 = vadd.f32 %v3115, %v3377
        %v3487 = vadd.f32 %v3116, %v3382
        %v3488 = vadd.f32 %v3117, %v3385
        %v3489 = vadd.f32 %v3118, %v3390
        %v3490 = vadd.f32 %v3119, %v3393
        %v3491 = vadd.f32 %v3120, %v3398
        %v3492 = vadd.f32 %v3121, %v3401
        %v3493 = vadd.f32 %v3122, %v3406
        %v3494 = vadd.f32 %v3123, %v3409
        %v3495 = vadd.f32 %v3124, %v3414
        %v3496 = vadd.f32 %v3125, %v3417
        %v3497 = vadd.f32 %v3126, %v3422
        %v3498 = vadd.f32 %v3127, %v3425
        %v3499 = vadd.f32 %v3128, %v3430
        %v3500 = vadd.f32 %v3129, %v3433
        %v3501 = vadd.f32 %v3130, %v3438
        %v3502 = vadd.f32 %v3131, %v3441
        %v3503 = vadd.f32 %v3132, %v3446
        %v3504 = vadd.f32 %v3133, %v3449
        %v3505 = vadd.f32 %v3134, %v3454
        %v3506 = vadd.f32 %v3135, %v3457
        %v3507 = vadd.f32 %v3136, %v3462
        %v3508 = vld [vmem:[%s2] sm:$0x1]
        %v3510 = vlaneseq
        %v3511 = vshrl.u32 %v3510, 7
        %v3512 = vsub.s32 0, %v3511
        %v3513 = vrot.slane %v3508, %v3512
        %v3515 = vadd.f32 %v3467, %v3513
        %v3516 = vadd.f32 %v3468, %v3513
        %v3517 = vadd.f32 %v3469, %v3513
        %v3518 = vadd.f32 %v3470, %v3513
        %v3519 = vadd.f32 %v3471, %v3513
        %v3520 = vadd.f32 %v3472, %v3513
        %v3521 = vadd.f32 %v3473, %v3513
        %v3522 = vadd.f32 %v3474, %v3513
        %v3523 = vadd.f32 %v3475, %v3513
        %v3524 = vadd.f32 %v3476, %v3513
        %v3525 = vadd.f32 %v3477, %v3513
        %v3526 = vadd.f32 %v3478, %v3513
        %v3527 = vadd.f32 %v3479, %v3513
        %v3528 = vadd.f32 %v3480, %v3513
        %v3529 = vadd.f32 %v3481, %v3513
        %v3530 = vadd.f32 %v3482, %v3513
        %v3531 = vadd.f32 %v3483, %v3513
        %v3532 = vadd.f32 %v3484, %v3513
        %v3533 = vadd.f32 %v3485, %v3513
        %v3534 = vadd.f32 %v3486, %v3513
        %v3535 = vadd.f32 %v3487, %v3513
        %v3536 = vadd.f32 %v3488, %v3513
        %v3537 = vadd.f32 %v3489, %v3513
        %v3538 = vadd.f32 %v3490, %v3513
        %v3539 = vadd.f32 %v3491, %v3513
        %v3540 = vadd.f32 %v3492, %v3513
        %v3541 = vadd.f32 %v3493, %v3513
        %v3542 = vadd.f32 %v3494, %v3513
        %v3543 = vadd.f32 %v3495, %v3513
        %v3544 = vadd.f32 %v3496, %v3513
        %v3545 = vadd.f32 %v3497, %v3513
        %v3546 = vadd.f32 %v3498, %v3513
        %v3547 = vadd.f32 %v3499, %v3513
        %v3548 = vadd.f32 %v3500, %v3513
        %v3549 = vadd.f32 %v3501, %v3513
        %v3550 = vadd.f32 %v3502, %v3513
        %v3551 = vadd.f32 %v3503, %v3513
        %v3552 = vadd.f32 %v3504, %v3513
        %v3553 = vadd.f32 %v3505, %v3513
        %v3554 = vadd.f32 %v3506, %v3513
        %v3555 = vadd.f32 %v3507, %v3513
        %v3556 = vmax.f32 %v3515, 0.0
        %v3557 = vmax.f32 %v3516, 0.0
        %v3558 = vmax.f32 %v3517, 0.0
        %v3559 = vmax.f32 %v3518, 0.0
        %v3560 = vmax.f32 %v3519, 0.0
        %v3561 = vmax.f32 %v3520, 0.0
        %v3562 = vmax.f32 %v3521, 0.0
        %v3563 = vmax.f32 %v3522, 0.0
        %v3564 = vmax.f32 %v3523, 0.0
        %v3565 = vmax.f32 %v3524, 0.0
        %v3566 = vmax.f32 %v3525, 0.0
        %v3567 = vmax.f32 %v3526, 0.0
        %v3568 = vmax.f32 %v3527, 0.0
        %v3569 = vmax.f32 %v3528, 0.0
        %v3570 = vmax.f32 %v3529, 0.0
        %v3571 = vmax.f32 %v3530, 0.0
        %v3572 = vmax.f32 %v3531, 0.0
        %v3573 = vmax.f32 %v3532, 0.0
        %v3574 = vmax.f32 %v3533, 0.0
        %v3575 = vmax.f32 %v3534, 0.0
        %v3576 = vmax.f32 %v3535, 0.0
        %v3577 = vmax.f32 %v3536, 0.0
        %v3578 = vmax.f32 %v3537, 0.0
        %v3579 = vmax.f32 %v3538, 0.0
        %v3580 = vmax.f32 %v3539, 0.0
        %v3581 = vmax.f32 %v3540, 0.0
        %v3582 = vmax.f32 %v3541, 0.0
        %v3583 = vmax.f32 %v3542, 0.0
        %v3584 = vmax.f32 %v3543, 0.0
        %v3585 = vmax.f32 %v3544, 0.0
        %v3586 = vmax.f32 %v3545, 0.0
        %v3587 = vmax.f32 %v3546, 0.0
        %v3588 = vmax.f32 %v3547, 0.0
        %v3589 = vmax.f32 %v3548, 0.0
        %v3590 = vmax.f32 %v3549, 0.0
        %v3591 = vmax.f32 %v3550, 0.0
        %v3592 = vmax.f32 %v3551, 0.0
        %v3593 = vmax.f32 %v3552, 0.0
        %v3594 = vmax.f32 %v3553, 0.0
        %v3595 = vmax.f32 %v3554, 0.0
        %v3596 = vmax.f32 %v3555, 0.0
        %v3597 = vld [vmem:[%s3] sm:$0x7]
        %v3599 = vlaneseq
        %v3600 = vshrl.u32 %v3599, 7
        %v3601 = vsub.s32 0, %v3600
        %v3602 = vrot.slane %v3597, %v3601
        %v3603 = vlaneseq
        %v3604 = vshrl.u32 %v3603, 7
        %v3605 = vsub.s32 1, %v3604
        %v3606 = vrot.slane %v3597, %v3605
        %v3607 = vlaneseq
        %v3608 = vshrl.u32 %v3607, 7
        %v3609 = vsub.s32 2, %v3608
        %v3610 = vrot.slane %v3597, %v3609
        %vm3613 = vcmask 556032
        %v3614 = vsel %vm3613, %v3610, 0
        %vm3616 = vcmask 1043456
        %v3618 = vsel %vm3616, %v3596, 0
        %3620 = vmatprep.subr.mxu0 0.0
        %3621 = vmatpush1.msra.mxu0 %v3556
        %3622 = vmatprep.subr.mxu0 0.0
        %3623 = vmatpush1.msra.mxu0 %v3557
        %3624 = vmatprep.subr.mxu0 0.0
        %3625 = vmatpush1.msra.mxu0 %v3558
        %3626 = vmatprep.subr.mxu0 0.0
        %3627 = vmatpush1.msra.mxu0 %v3559
        %3628 = vmatprep.subr.mxu0 0.0
        %3629 = vmatpush1.msra.mxu0 %v3560
        %3630 = vmatprep.subr.mxu0 0.0
        %3631 = vmatpush1.msra.mxu0 %v3561
        %3632 = vmatprep.subr.mxu0 0.0
        %3633 = vmatpush1.msra.mxu0 %v3562
        %3634 = vmatprep.subr.mxu0 0.0
        %3635 = vmatpush1.msra.mxu0 %v3563
        %3636 = vmatprep.subr.mxu0 0.0
        %3637 = vmatpush1.msra.mxu0 %v3564
        %3638 = vmatprep.subr.mxu0 0.0
        %3639 = vmatpush1.msra.mxu0 %v3565
        %3640 = vmatprep.subr.mxu0 0.0
        %3641 = vmatpush1.msra.mxu0 %v3566
        %3642 = vmatprep.subr.mxu0 0.0
        %3643 = vmatpush1.msra.mxu0 %v3567
        %3644 = vmatprep.subr.mxu0 0.0
        %3645 = vmatpush1.msra.mxu0 %v3568
        %3646 = vmatprep.subr.mxu0 0.0
        %3647 = vmatpush1.msra.mxu0 %v3569
        %3648 = vmatprep.subr.mxu0 0.0
        %3649 = vmatpush1.msra.mxu0 %v3570
        %3650 = vmatprep.subr.mxu0 0.0
        %3651 = vmatpush1.msra.mxu0 %v3571
        %3652 = vmatprep.subr.mxu0 0.0
        %3653 = vmatpush1.msra.mxu0 %v3572
        %3654 = vmatprep.subr.mxu0 0.0
        %3655 = vmatpush1.msra.mxu0 %v3573
        %3656 = vmatprep.subr.mxu0 0.0
        %3657 = vmatpush1.msra.mxu0 %v3574
        %3658 = vmatprep.subr.mxu0 0.0
        %3659 = vmatpush1.msra.mxu0 %v3575
        %3660 = vmatprep.subr.mxu0 0.0
        %3661 = vmatpush1.msra.mxu0 %v3576
        %3662 = vmatprep.subr.mxu0 0.0
        %3663 = vmatpush1.msra.mxu0 %v3577
        %3664 = vmatprep.subr.mxu0 0.0
        %3665 = vmatpush1.msra.mxu0 %v3578
        %3666 = vmatprep.subr.mxu0 0.0
        %3667 = vmatpush1.msra.mxu0 %v3579
        %3668 = vmatprep.subr.mxu0 0.0
        %3669 = vmatpush1.msra.mxu0 %v3580
        %3670 = vmatprep.subr.mxu0 0.0
        %3671 = vmatpush1.msra.mxu0 %v3581
        %3672 = vmatprep.subr.mxu0 0.0
        %3673 = vmatpush1.msra.mxu0 %v3582
        %3674 = vmatprep.subr.mxu0 0.0
        %3675 = vmatpush1.msra.mxu0 %v3583
        %3676 = vmatprep.subr.mxu0 0.0
        %3677 = vmatpush1.msra.mxu0 %v3584
        %3678 = vmatprep.subr.mxu0 0.0
        %3679 = vmatpush1.msra.mxu0 %v3585
        %3680 = vmatprep.subr.mxu0 0.0
        %3681 = vmatpush1.msra.mxu0 %v3586
        %3682 = vmatprep.subr.mxu0 0.0
        %3683 = vmatpush1.msra.mxu0 %v3587
        %3684 = vmatprep.mubr.f32.mxu0 %v3606
        %3685 = vmatmul.mubr.f32.gmra.mrb[0].mxu0 %v3602
        %v3686 = vpop.f32.mrb[0].mxu0
        %v3687 = vadd.f32 0.0, %v3686
        %v3688 = vpop.f32.mrb[0].mxu0
        %3689 = vdwg.mxu0
        %3690 = vmatprep.subr.mxu0 0.0
        %3691 = vmatpush1.msra.mxu0 %v3588
        %3692 = vmatprep.subr.mxu0 0.0
        %3693 = vmatpush1.msra.mxu0 %v3589
        %3694 = vmatprep.subr.mxu0 0.0
        %3695 = vmatpush1.msra.mxu0 %v3590
        %3696 = vmatprep.subr.mxu0 0.0
        %3697 = vmatpush1.msra.mxu0 %v3591
        %3698 = vmatprep.subr.mxu0 0.0
        %3699 = vmatpush1.msra.mxu0 %v3592
        %3700 = vmatprep.subr.mxu0 0.0
        %3701 = vmatpush1.msra.mxu0 %v3593
        %3702 = vmatprep.subr.mxu0 0.0
        %3703 = vmatpush1.msra.mxu0 %v3594
        %3704 = vmatprep.subr.mxu0 0.0
        %3705 = vmatpush1.msra.mxu0 %v3595
        %3706 = vmatprep.subr.mxu0 0.0
        %3707 = vmatpush1.msra.mxu0 %v3618
        %3708 = vmatprep.subr.mxu0 0.0
        %3709 = vmatpush1.msra.mxu0 0.0
        %3710 = vmatprep.subr.mxu0 0.0
        %3711 = vmatpush1.msra.mxu0 0.0
        %3712 = vmatprep.subr.mxu0 0.0
        %3713 = vmatpush1.msra.mxu0 0.0
        %3714 = vmatprep.subr.mxu0 0.0
        %3715 = vmatpush1.msra.mxu0 0.0
        %3716 = vmatprep.subr.mxu0 0.0
        %3717 = vmatpush1.msra.mxu0 0.0
        %3718 = vmatprep.subr.mxu0 0.0
        %3719 = vmatpush1.msra.mxu0 0.0
        %3720 = vmatprep.subr.mxu0 0.0
        %3721 = vmatpush1.msra.mxu0 0.0
        %3722 = vmatprep.subr.mxu0 0.0
        %3723 = vmatpush1.msra.mxu0 0.0
        %3724 = vmatprep.subr.mxu0 0.0
        %3725 = vmatpush1.msra.mxu0 0.0
        %3726 = vmatprep.subr.mxu0 0.0
        %3727 = vmatpush1.msra.mxu0 0.0
        %3728 = vmatprep.subr.mxu0 0.0
        %3729 = vmatpush1.msra.mxu0 0.0
        %3730 = vmatprep.subr.mxu0 0.0
        %3731 = vmatpush1.msra.mxu0 0.0
        %3732 = vmatprep.subr.mxu0 0.0
        %3733 = vmatpush1.msra.mxu0 0.0
        %3734 = vmatprep.subr.mxu0 0.0
        %3735 = vmatpush1.msra.mxu0 0.0
        %3736 = vmatprep.subr.mxu0 0.0
        %3737 = vmatpush1.msra.mxu0 0.0
        %3738 = vmatprep.subr.mxu0 0.0
        %3739 = vmatpush1.msra.mxu0 0.0
        %3740 = vmatprep.subr.mxu0 0.0
        %3741 = vmatpush1.msra.mxu0 0.0
        %3742 = vmatprep.subr.mxu0 0.0
        %3743 = vmatpush1.msra.mxu0 0.0
        %3744 = vmatprep.subr.mxu0 0.0
        %3745 = vmatpush1.msra.mxu0 0.0
        %3746 = vmatprep.subr.mxu0 0.0
        %3747 = vmatpush1.msra.mxu0 0.0
        %3748 = vmatprep.subr.mxu0 0.0
        %3749 = vmatpush1.msra.mxu0 0.0
        %3750 = vmatprep.subr.mxu0 0.0
        %3751 = vmatpush1.msra.mxu0 0.0
        %3752 = vmatprep.subr.mxu0 0.0
        %3753 = vmatpush1.msra.mxu0 0.0
        %3754 = vmatprep.mubr.f32.mxu0 0.0
        %3755 = vmatmul.mubr.f32.gmra.mrb[0].mxu0 %v3614
        %v3756 = vpop.f32.mrb[0].mxu0
        %v3757 = vadd.f32 %v3687, %v3756
        %v3758 = vpop.f32.mrb[0].mxu0
        %3759 = vdwg.mxu0
        %v3760 = vpack.c.bf16 %v3757, %v3757
        %v3761 = vld [vmem:[%s4] sm:$0xf]
        %v3762 = vld [vmem:[%s4 + $0x4] sm:$0xf]
        %v3763 = vld [vmem:[%s4 + $0x8] sm:$0xf]
        %v3764 = vld [vmem:[%s4 + $0xc] sm:$0xf]
        %v3765 = vld [vmem:[%s4 + $0x10] sm:$0xf]
        %v3766 = vld [vmem:[%s4 + $0x14] sm:$0xf]
        %v3767 = vld [vmem:[%s4 + $0x18] sm:$0xf]
        %v3768 = vld [vmem:[%s4 + $0x1c] sm:$0xf]
        %v3769 = vld [vmem:[%s4 + $0x20] sm:$0xf]
        %v3770 = vld [vmem:[%s4 + $0x24] sm:$0xf]
        %v3771 = vld [vmem:[%s4 + $0x28] sm:$0xf]
        %v3772 = vld [vmem:[%s4 + $0x2c] sm:$0xf]
        %v3773 = vld [vmem:[%s4 + $0x30] sm:$0xf]
        %v3774 = vld [vmem:[%s4 + $0x34] sm:$0xf]
        %v3775 = vld [vmem:[%s4 + $0x38] sm:$0xf]
        %v3776 = vld [vmem:[%s4 + $0x3c] sm:$0xf]
        %v3777 = vld [vmem:[%s5] sm:$0x1]
        %v3794 = vunpack.c.l.b16 %v3761
        %v3795 = vunpack.c.l.b16 %v3762
        %v3796 = vunpack.c.l.b16 %v3763
        %v3797 = vunpack.c.l.b16 %v3764
        %v3798 = vunpack.c.l.b16 %v3765
        %v3799 = vunpack.c.l.b16 %v3766
        %v3800 = vunpack.c.l.b16 %v3767
        %v3801 = vunpack.c.l.b16 %v3768
        %v3802 = vunpack.c.l.b16 %v3769
        %v3803 = vunpack.c.l.b16 %v3770
        %v3804 = vunpack.c.l.b16 %v3771
        %v3805 = vunpack.c.l.b16 %v3772
        %v3806 = vunpack.c.l.b16 %v3773
        %v3807 = vunpack.c.l.b16 %v3774
        %v3808 = vunpack.c.l.b16 %v3775
        %v3809 = vunpack.c.l.b16 %v3776
        %v3810 = vpack.c.b16 %v3795, %v3794
        %v3811 = vpack.c.b16 %v3797, %v3796
        %v3812 = vpack.c.b16 %v3799, %v3798
        %v3813 = vpack.c.b16 %v3801, %v3800
        %v3814 = vpack.c.b16 %v3803, %v3802
        %v3815 = vpack.c.b16 %v3805, %v3804
        %v3816 = vpack.c.b16 %v3807, %v3806
        %v3817 = vpack.c.b16 %v3809, %v3808
        %3826 = vmatprep.subr.bf16.mxu0 0
        %3827 = vmatpush1.bf16.msra.mxu0 %v3810
        %3828 = vmatprep.subr.bf16.mxu0 0
        %3829 = vmatpush1.bf16.msra.mxu0 %v3811
        %3830 = vmatprep.subr.bf16.mxu0 0
        %3831 = vmatpush1.bf16.msra.mxu0 %v3812
        %3832 = vmatprep.subr.bf16.mxu0 0
        %3833 = vmatpush1.bf16.msra.mxu0 %v3813
        %3834 = vmatprep.subr.bf16.mxu0 0
        %3835 = vmatpush1.bf16.msra.mxu0 %v3814
        %3836 = vmatprep.subr.bf16.mxu0 0
        %3837 = vmatpush1.bf16.msra.mxu0 %v3815
        %3838 = vmatprep.subr.bf16.mxu0 0
        %3839 = vmatpush1.bf16.msra.mxu0 %v3816
        %3840 = vmatprep.subr.bf16.mxu0 0
        %3841 = vmatpush1.bf16.msra.mxu0 %v3817
        %3842 = vmatprep.subr.bf16.mxu0 0
        %3843 = vmatpush1.bf16.msra.mxu0 0
        %3844 = vmatprep.subr.bf16.mxu0 0
        %3845 = vmatpush1.bf16.msra.mxu0 0
        %3846 = vmatprep.subr.bf16.mxu0 0
        %3847 = vmatpush1.bf16.msra.mxu0 0
        %3848 = vmatprep.subr.bf16.mxu0 0
        %3849 = vmatpush1.bf16.msra.mxu0 0
        %3850 = vmatprep.subr.bf16.mxu0 0
        %3851 = vmatpush1.bf16.msra.mxu0 0
        %3852 = vmatprep.subr.bf16.mxu0 0
        %3853 = vmatpush1.bf16.msra.mxu0 0
        %3854 = vmatprep.subr.bf16.mxu0 0
        %3855 = vmatpush1.bf16.msra.mxu0 0
        %3856 = vmatprep.subr.bf16.mxu0 0
        %3857 = vmatpush1.bf16.msra.mxu0 0
        %3858 = vmatprep.mubr.bf16.mxu0 0
        %3859 = vmatmul.mubr.bf16.gmra.mrb[0].mxu0 %v3760
        %v3860 = vpop.f32.mrb[0].mxu0
        %v3861 = vadd.f32 %v3777, %v3860
        %v3862 = vpop.f32.mrb[0].mxu0
        %v3863 = vpop.f32.mrb[0].mxu0
        %v3864 = vpop.f32.mrb[0].mxu0
        %3865 = vdwg.mxu0
        %3866 = vst [vmem:[%s243] sm:$0x1] %v3861
        %s3867 = sand.u32 %s159, 1
        %s3868 = scalar_lea.sflag [#allocation3], %s3867
        %s3869 = sand.u32 %s159, 1
        %s3870 = scalar_lea.vmem [#allocation2], %s3869
        // Predicated region
        $region45: #{basic_model_forward.1} parent=43 // pred_check
          %p3871 = pneg %p169
        $region46: #{basic_model_forward.1} parent=43 // pred_check_branch
          %3873 = sbr.rel (%p3871) target = $region48
        $region47: #{basic_model_forward.1} parent=43 // pred_region
          %s3875 = ssub.s32 16, 16
          %3876 = vsyncadd %s3868, %s3875
          %s3877 = smul.addr %s20, 16
          %s3878 = scalar_lea.hbm %s6, %s3877
          %s3880 = sshll.u32 %s3870, 4
          %s3881 = int_to_ptr.vmem [resolvable:$true] %s3880
          %3883 = dma.vmem_to_hbm [thread:$0]  %s3881, 16, %s3878, %s3868
        $region48: #{basic_model_forward.1} parent=43 // pred_fallthru
          _
      $region44: #{basic_model_forward.1} parent=5 // pred_fallthru
        _
      %p3884 = scmp.le.s32.totalorder 2, %s15
      // Predicated region
      $region49: #{basic_model_forward.1} parent=5 // pred_check
        %p3885 = pneg %p3884
      $region50: #{basic_model_forward.1} parent=5 // pred_check_branch
        %3887 = sbr.rel (%p3885) target = $region52
      $region51: #{basic_model_forward.1} parent=5 // pred_region
        %s3888 = ssub.s32 %s15, 2
        // Predicated region
        $region53: #{basic_model_forward.1} parent=51 // pred_check
          %p3889 = pneg %p175
        $region54: #{basic_model_forward.1} parent=51 // pred_check_branch
          %3891 = sbr.rel (%p3889) target = $region56
        $region55: #{basic_model_forward.1} parent=51 // pred_region
          %s3892 = sand.u32 %s160, 1
          %s3893 = scalar_lea.sflag [#allocation3], %s3892
          %s3894 = sand.u32 %s160, 1
          %s3895 = scalar_lea.vmem [#allocation2], %s3894
          %3896 = dma.done %s3893, 16
        $region56: #{basic_model_forward.1} parent=51 // pred_fallthru
          _
      $region52: #{basic_model_forward.1} parent=5 // pred_fallthru
        _
    $region6: #{basic_model_forward.1} parent=1 // loop_footer
      %s19 = sadd.s32 1, %s15
    $region7: #{basic_model_forward.1} parent=1 // loop_footer_branch
      %14 = sbr.rel target = $region3
    $region8: #{basic_model_forward.1} parent=1 // loop_exit
      _
    %3897 = vsyncpa [#allocation3], 1
    %s3898 = scalar_lea.sflag [#allocation3], 1
    %3899 = vsyncpa %s3898, 1

</llo_original>
